<compile_context>
chip_gen: v7x
topology: tpu7x:2x2x1
jax: 0.10.0
libtpu: 0.0.40
codegen_flags: <defaults>
</compile_context>

<pallas_src>
import functools

import jax
import jax.numpy as jnp
from jax import lax
from jax.experimental import pallas as pl
from jax.experimental.pallas import tpu as pltpu

# ----------------------------------------------------------------------------
# Model dimensions (PyTorch spec) and lane-aligned padded dimensions.
# ----------------------------------------------------------------------------
DIMS = [28 * 28, 278, 278, 278, 278, 278, 278, 10]
NUM_LAYERS = 7
NUM_CLASSES = 10

IN_DIM = DIMS[0]                      # 784: kept unpadded (multiple of 16)
HID_PAD = 384                         # 278 -> 384 (3 x 128 lanes)
OUT_PAD = 128                         # 10  -> 128 lanes (lane-dense vst)
DIMS_PAD = [IN_DIM] + [HID_PAD] * 6 + [OUT_PAD]

MAX_TB = 512                          # batch-tile cap (review: 256 -> 512)
BATCH_ALIGN = 16                      # sublane multiple safe for f32 & bf16 tiles
VMEM_LIMIT_BYTES = 40 * 1024 * 1024   # explicit scoped-VMEM limit (< v7x 64 MiB)


def _round_up(x, m):
    return (x + m - 1) // m * m


def _cdiv(a, b):
    return -(-a // b)


# ----------------------------------------------------------------------------
# Fused kernel: 7x (matmul + bias + activation) entirely in VMEM.
# ----------------------------------------------------------------------------
def _fused_mlp_kernel(x_ref, *refs, num_classes):
    w_refs = refs[0:NUM_LAYERS]                                 # bf16 weights
    b_refs = refs[NUM_LAYERS:2 * NUM_LAYERS]                    # f32 biases
    h_refs = refs[2 * NUM_LAYERS:2 * NUM_LAYERS + NUM_LAYERS - 1]  # bf16 embeds
    out_ref = refs[2 * NUM_LAYERS + NUM_LAYERS - 1]             # f32 softmax

    h = x_ref[...]                                              # already bf16
    for li in range(NUM_LAYERS - 1):
        y = jnp.dot(h, w_refs[li][...], preferred_element_type=jnp.float32)
        y = jnp.maximum(y + b_refs[li][...], 0.0)               # f32 bias + ReLU
        h = y.astype(jnp.bfloat16)           # one cast: next-layer input + output
        h_refs[li][...] = h

    logits = jnp.dot(h, w_refs[-1][...], preferred_element_type=jnp.float32)
    logits = logits + b_refs[-1][...]

    # Mask padded logit lanes so the softmax only covers the real classes.
    col = lax.broadcasted_iota(jnp.int32, logits.shape, 1)
    logits = jnp.where(col < num_classes, logits, -1e30)

    m = jnp.max(logits, axis=-1, keepdims=True)
    e = jnp.exp(logits - m)
    s = jnp.sum(e, axis=-1, keepdims=True)
    out_ref[...] = (e / s).astype(out_ref.dtype)                # exact divide


# ----------------------------------------------------------------------------
# BlockSpec helpers: constant-index (VMEM-resident) blocks, single-buffered
# when the installed Pallas supports pipeline_mode=pl.Buffered(1).
# ----------------------------------------------------------------------------
_SINGLE_BUFFER_OK = None


def _single_buffered_const_specs_supported():
    """Probe once whether pipeline_mode=pl.Buffered(1) compiles and runs."""
    global _SINGLE_BUFFER_OK
    if _SINGLE_BUFFER_OK is None:
        try:
            def _probe_kernel(x_ref, o_ref):
                o_ref[...] = x_ref[...] + 1.0

            spec = pl.BlockSpec((8, 128), lambda i: (0, 0),
                                pipeline_mode=pl.Buffered(1))
            fn = pl.pallas_call(
                _probe_kernel,
                out_shape=jax.ShapeDtypeStruct((8, 128), jnp.float32),
                grid=(2,),
                in_specs=[spec],
                out_specs=pl.BlockSpec((8, 128), lambda i: (0, 0)),
            )
            y = jax.block_until_ready(fn(jnp.zeros((8, 128), jnp.float32)))
            _SINGLE_BUFFER_OK = bool(jnp.allclose(y, 1.0))
        except Exception:
            _SINGLE_BUFFER_OK = False       # graceful fallback: double-buffered
    return _SINGLE_BUFFER_OK


def _const_spec(shape, single_buffer):
    index_map = lambda i: (0,) * len(shape)
    if single_buffer:
        return pl.BlockSpec(shape, index_map, pipeline_mode=pl.Buffered(1))
    return pl.BlockSpec(shape, index_map)


# ----------------------------------------------------------------------------
# Host-side wrappers.
# ----------------------------------------------------------------------------
def _choose_batch_tiling(batch):
    """Pick (batch_tile, padded_batch): tiles <= 512 rows, aligned to 16, and
    >= 2 grid steps whenever the batch allows it (v7x has 2 TensorCores)."""
    b_al = _round_up(max(batch, 1), BATCH_ALIGN)
    if b_al <= BATCH_ALIGN:
        return b_al, b_al                       # tiny batch: single small tile
    n_tiles = max(2, _cdiv(b_al, MAX_TB))
    tb = _round_up(_cdiv(b_al, n_tiles), BATCH_ALIGN)
    return tb, tb * n_tiles


def _fused_forward(x_pad, w_pads, b_pads, tb):
    b_total = x_pad.shape[0]
    grid = (b_total // tb,)
    single_buf = _single_buffered_const_specs_supported()

    in_specs = [pl.BlockSpec((tb, IN_DIM), lambda i: (i, 0))]
    # Weights / biases: constant index_map -> resident in VMEM across the grid.
    for w in w_pads:
        in_specs.append(_const_spec(w.shape, single_buf))
    for b in b_pads:
        in_specs.append(_const_spec(b.shape, single_buf))

    out_shape = tuple(
        [jax.ShapeDtypeStruct((b_total, HID_PAD), jnp.bfloat16)] * 6
        + [jax.ShapeDtypeStruct((b_total, OUT_PAD), jnp.float32)]
    )
    out_specs = tuple(
        [pl.BlockSpec((tb, HID_PAD), lambda i: (i, 0))] * 6
        + [pl.BlockSpec((tb, OUT_PAD), lambda i: (i, 0))]
    )

    flops = 2 * b_total * sum(DIMS_PAD[i] * DIMS_PAD[i + 1]
                              for i in range(NUM_LAYERS))
    bytes_accessed = (
        int(x_pad.size) * 2
        + sum(int(w.size) * 2 for w in w_pads)
        + sum(int(b.size) * 4 for b in b_pads)
        + b_total * (6 * HID_PAD * 2 + OUT_PAD * 4)
    )
    cost = pl.CostEstimate(
        flops=flops,
        transcendentals=b_total * OUT_PAD,
        bytes_accessed=bytes_accessed,
    )

    kernel = functools.partial(_fused_mlp_kernel, num_classes=NUM_CLASSES)
    outs = pl.pallas_call(
        kernel,
        out_shape=out_shape,
        grid=grid,
        in_specs=in_specs,
        out_specs=out_specs,
        compiler_params=pltpu.CompilerParams(
            dimension_semantics=("parallel",),
            vmem_limit_bytes=VMEM_LIMIT_BYTES,
        ),
        cost_estimate=cost,
    )(x_pad, *w_pads, *b_pads)

    return outs[6], outs[:6]


def init_params(key):
    """Deterministic PyTorch-Linear-style uniform fan-in init (unpadded f32)."""
    params = []
    for i in range(NUM_LAYERS):
        key, kw, kb = jax.random.split(key, 3)
        fan_in, fan_out = DIMS[i], DIMS[i + 1]
        bound = 1.0 / (fan_in ** 0.5)
        w = jax.random.uniform(kw, (fan_in, fan_out), jnp.float32, -bound, bound)
        b = jax.random.uniform(kb, (fan_out,), jnp.float32, -bound, bound)
        params.append((w, b))
    return params


def prepare_params(params):
    """Pad to lane-aligned shapes and cast weights to bf16 once (not per call)."""
    w_pads, b_pads = [], []
    for i, (w, b) in enumerate(params):
        din, dout = DIMS[i], DIMS[i + 1]
        din_p, dout_p = DIMS_PAD[i], DIMS_PAD[i + 1]
        w_pad = (
            jnp.zeros((din_p, dout_p), jnp.float32)
            .at[:din, :dout].set(w)
            .astype(jnp.bfloat16)
        )
        b_pad = jnp.zeros((1, dout_p), jnp.float32).at[0, :dout].set(b)
        w_pads.append(w_pad)
        b_pads.append(b_pad)
    # Run the single-buffer capability probe eagerly (outside any jit trace).
    _single_buffered_const_specs_supported()
    return tuple(w_pads), tuple(b_pads)


def deep_mlp_forward(x, prepared_params):
    """Mirrors DeepMLP.forward: returns (out, extract_embedding)."""
    w_pads, b_pads = prepared_params
    x_flat = x.reshape(-1, IN_DIM).astype(jnp.float32)      # x.view(-1, 28*28)
    B = x_flat.shape[0]
    tb, b_total = _choose_batch_tiling(B)
    # Only the batch dim is padded (no feature pad); bf16 cast fuses under jit
    # and matches the cast the kernel applied to x anyway.
    x_in = jnp.pad(x_flat, ((0, b_total - B), (0, 0))).astype(jnp.bfloat16)

    out_pad, hs = _fused_forward(x_in, w_pads, b_pads, tb)

    extract_embedding = [x_flat]
    for h in hs:
        # Strip padding and restore f32 for the module's return contract.
        extract_embedding.append(h[:B, :DIMS[1]].astype(jnp.float32))
    out = out_pad[:B, :NUM_CLASSES]
    extract_embedding.append(out)
    return out, extract_embedding


def reference_forward(x, params):
    """Pure-JAX reference mirroring the kernel's numerics (bf16 matmul inputs)."""
    x_flat = x.reshape(-1, IN_DIM).astype(jnp.float32)
    embs = [x_flat]
    h = x_flat
    for i in range(NUM_LAYERS - 1):
        w, b = params[i]
        y = jnp.dot(h.astype(jnp.bfloat16), w.astype(jnp.bfloat16),
                    preferred_element_type=jnp.float32) + b
        h = jnp.maximum(y, 0.0)
        embs.append(h)
    w, b = params[-1]
    logits = jnp.dot(h.astype(jnp.bfloat16), w.astype(jnp.bfloat16),
                     preferred_element_type=jnp.float32) + b
    out = jax.nn.softmax(logits, axis=-1)
    embs.append(out)
    return out, embs


if __name__ == "__main__":
    key = jax.random.PRNGKey(0)
    key, kx = jax.random.split(key)
    # MNIST-like NCHW input; small batch.
    x = jax.random.normal(kx, (2, 1, 28, 28), dtype=jnp.float32)
    params = init_params(key)
    prepared = prepare_params(params)

    fwd = jax.jit(deep_mlp_forward)
    out, embeddings = fwd(x, prepared)
    out = jax.block_until_ready(out)
    embeddings = [jax.block_until_ready(e) for e in embeddings]

    # Shape checks (match PyTorch module semantics).
    assert out.shape == (2, 10)
    assert len(embeddings) == 8
    assert embeddings[0].shape == (2, 784)
    assert all(e.shape == (2, 278) for e in embeddings[1:7])
    assert embeddings[7].shape == (2, 10)

    # Softmax rows normalize exactly (exact division in the epilogue).
    assert jnp.allclose(jnp.sum(out, axis=-1), 1.0, atol=1e-5)

    # Numerical check against a pure-JAX reference with matching bf16 numerics.
    ref_out, ref_embs = reference_forward(x, params)
    assert jnp.allclose(out, ref_out, rtol=2e-2, atol=2e-3)
    for e, re in zip(embeddings[1:7], ref_embs[1:7]):
        assert jnp.allclose(e, re, rtol=2e-2, atol=2e-2)

    # Second run with a batch large enough to exercise the multi-tile grid
    # (>=2 "parallel" batch tiles -> both TensorCores active on v7x).
    key, kx2 = jax.random.split(key)
    x2 = jax.random.normal(kx2, (300, 1, 28, 28), dtype=jnp.float32)
    out2, embs2 = fwd(x2, prepared)
    out2 = jax.block_until_ready(out2)
    assert out2.shape == (300, 10)
    assert all(e.shape[0] == 300 for e in embs2)
    assert jnp.allclose(jnp.sum(out2, axis=-1), 1.0, atol=1e-5)
    ref_out2, _ = reference_forward(x2, params)
    assert jnp.allclose(out2, ref_out2, rtol=2e-2, atol=2e-3)

    print("KERNEL_OK")
</pallas_src>

<mosaic_0001>
module attributes {stable_mosaic.version = 11 : i64} {
  func.func @_probe_kernel(%arg0: i32, %arg1: memref<8x128xf32, #tpu.memory_space<vmem>>, %arg2: memref<8x128xf32, #tpu.memory_space<vmem>>) attributes {dimension_semantics = [#tpu.dimension_semantics<arbitrary>], iteration_bounds = array<i64: 2>, scalar_prefetch = 0 : i64, scratch_operands = 0 : i64, tpu.core_type = #tpu.core_type<tc>, window_params = [{pipeline_mode = #tpu.pipeline_mode<synchronous>, transform_indices = @transform_0, window_bounds = array<i64: 8, 128>}, {pipeline_mode = #tpu.pipeline_mode<synchronous>, transform_indices = @transform_1, window_bounds = array<i64: 8, 128>}]} {
    %c0 = arith.constant 0 : index
    %c0_0 = arith.constant 0 : index
    %0 = vector.load %arg1[%c0, %c0_0] : memref<8x128xf32, #tpu.memory_space<vmem>>, vector<8x128xf32>
    %cst = arith.constant 1.000000e+00 : f32
    %1 = vector.broadcast %cst : f32 to vector<8x128xf32>
    %2 = arith.addf %0, %1 : vector<8x128xf32>
    %c0_1 = arith.constant 0 : index
    %c0_2 = arith.constant 0 : index
    %3 = vector.load %arg2[%c0_1, %c0_2] : memref<8x128xf32, #tpu.memory_space<vmem>>, vector<8x128xf32>
    tpu.vector_store %arg2[%c0_1, %c0_2], %2 {strides = array<i32>} : memref<8x128xf32, #tpu.memory_space<vmem>>, vector<8x128xf32>,
    return
  }
  func.func @transform_0(%arg0: i32) -> (i32, i32) {
    %c0_i32 = arith.constant 0 : i32
    %c0_i32_0 = arith.constant 0 : i32
    %c0_i32_1 = arith.constant 0 : i32
    return %c0_i32, %c0_i32_0 : i32, i32
  }
  func.func @transform_1(%arg0: i32) -> (i32, i32) {
    %c0_i32 = arith.constant 0 : i32
    %c0_i32_0 = arith.constant 0 : i32
    %c0_i32_1 = arith.constant 0 : i32
    return %c0_i32, %c0_i32_0 : i32, i32
  }
}

module attributes {stable_mosaic.version = 11 : i64} {
  func.func @_fused_mlp_kernel(%arg0: i32, %arg1: memref<16x784xbf16, #tpu.memory_space<vmem>>, %arg2: memref<784x384xbf16, #tpu.memory_space<vmem>>, %arg3: memref<384x384xbf16, #tpu.memory_space<vmem>>, %arg4: memref<384x384xbf16, #tpu.memory_space<vmem>>, %arg5: memref<384x384xbf16, #tpu.memory_space<vmem>>, %arg6: memref<384x384xbf16, #tpu.memory_space<vmem>>, %arg7: memref<384x384xbf16, #tpu.memory_space<vmem>>, %arg8: memref<384x128xbf16, #tpu.memory_space<vmem>>, %arg9: memref<1x384xf32, #tpu.memory_space<vmem>>, %arg10: memref<1x384xf32, #tpu.memory_space<vmem>>, %arg11: memref<1x384xf32, #tpu.memory_space<vmem>>, %arg12: memref<1x384xf32, #tpu.memory_space<vmem>>, %arg13: memref<1x384xf32, #tpu.memory_space<vmem>>, %arg14: memref<1x384xf32, #tpu.memory_space<vmem>>, %arg15: memref<1x128xf32, #tpu.memory_space<vmem>>, %arg16: memref<16x384xbf16, #tpu.memory_space<vmem>>, %arg17: memref<16x384xbf16, #tpu.memory_space<vmem>>, %arg18: memref<16x384xbf16, #tpu.memory_space<vmem>>, %arg19: memref<16x384xbf16, #tpu.memory_space<vmem>>, %arg20: memref<16x384xbf16, #tpu.memory_space<vmem>>, %arg21: memref<16x384xbf16, #tpu.memory_space<vmem>>, %arg22: memref<16x128xf32, #tpu.memory_space<vmem>>) attributes {dimension_semantics = [#tpu.dimension_semantics<parallel>], iteration_bounds = array<i64: 1>, scalar_prefetch = 0 : i64, scratch_operands = 0 : i64, tpu.core_type = #tpu.core_type<tc>, window_params = [{transform_indices = @transform_0, window_bounds = array<i64: 16, 784>}, {pipeline_mode = #tpu.pipeline_mode<synchronous>, transform_indices = @transform_1, window_bounds = array<i64: 784, 384>}, {pipeline_mode = #tpu.pipeline_mode<synchronous>, transform_indices = @transform_2, window_bounds = array<i64: 384, 384>}, {pipeline_mode = #tpu.pipeline_mode<synchronous>, transform_indices = @transform_3, window_bounds = array<i64: 384, 384>}, {pipeline_mode = #tpu.pipeline_mode<synchronous>, transform_indices = @transform_4, window_bounds = array<i64: 384, 384>}, {pipeline_mode = #tpu.pipeline_mode<synchronous>, transform_indices = @transform_5, window_bounds = array<i64: 384, 384>}, {pipeline_mode = #tpu.pipeline_mode<synchronous>, transform_indices = @transform_6, window_bounds = array<i64: 384, 384>}, {pipeline_mode = #tpu.pipeline_mode<synchronous>, transform_indices = @transform_7, window_bounds = array<i64: 384, 128>}, {pipeline_mode = #tpu.pipeline_mode<synchronous>, transform_indices = @transform_8, window_bounds = array<i64: 1, 384>}, {pipeline_mode = #tpu.pipeline_mode<synchronous>, transform_indices = @transform_9, window_bounds = array<i64: 1, 384>}, {pipeline_mode = #tpu.pipeline_mode<synchronous>, transform_indices = @transform_10, window_bounds = array<i64: 1, 384>}, {pipeline_mode = #tpu.pipeline_mode<synchronous>, transform_indices = @transform_11, window_bounds = array<i64: 1, 384>}, {pipeline_mode = #tpu.pipeline_mode<synchronous>, transform_indices = @transform_12, window_bounds = array<i64: 1, 384>}, {pipeline_mode = #tpu.pipeline_mode<synchronous>, transform_indices = @transform_13, window_bounds = array<i64: 1, 384>}, {pipeline_mode = #tpu.pipeline_mode<synchronous>, transform_indices = @transform_14, window_bounds = array<i64: 1, 128>}, {transform_indices = @transform_15, window_bounds = array<i64: 16, 384>}, {transform_indices = @transform_16, window_bounds = array<i64: 16, 384>}, {transform_indices = @transform_17, window_bounds = array<i64: 16, 384>}, {transform_indices = @transform_18, window_bounds = array<i64: 16, 384>}, {transform_indices = @transform_19, window_bounds = array<i64: 16, 384>}, {transform_indices = @transform_20, window_bounds = array<i64: 16, 384>}, {transform_indices = @transform_21, window_bounds = array<i64: 16, 128>}]} {
    %c0 = arith.constant 0 : index
    %c0_0 = arith.constant 0 : index
    %0 = vector.load %arg1[%c0, %c0_0] : memref<16x784xbf16, #tpu.memory_space<vmem>>, vector<16x784xbf16>
    %c0_1 = arith.constant 0 : index
    %c0_2 = arith.constant 0 : index
    %1 = vector.load %arg2[%c0_1, %c0_2] : memref<784x384xbf16, #tpu.memory_space<vmem>>, vector<784x384xbf16>
    %cst = arith.constant dense<0.000000e+00> : vector<16x384xf32>
    %2 = tpu.matmul %0, %1, %cst {dimension_numbers = #tpu.dot_dimension_numbers<[1], [0], [0], [1], [0, 0, 1, 1], [], []>} : vector<16x784xbf16>, vector<784x384xbf16>, vector<16x384xf32> -> vector<16x384xf32>
    %c0_3 = arith.constant 0 : index
    %c0_4 = arith.constant 0 : index
    %3 = vector.load %arg9[%c0_3, %c0_4] : memref<1x384xf32, #tpu.memory_space<vmem>>, vector<1x384xf32>
    %4 = vector.broadcast %3 : vector<1x384xf32> to vector<16x384xf32>
    %5 = arith.addf %2, %4 : vector<16x384xf32>
    %cst_5 = arith.constant 0.000000e+00 : f32
    %6 = vector.broadcast %cst_5 : f32 to vector<16x384xf32>
    %7 = arith.maximumf %5, %6 : vector<16x384xf32>
    %8 = arith.truncf %7 : vector<16x384xf32> to vector<16x384xbf16>
    %c0_6 = arith.constant 0 : index
    %c0_7 = arith.constant 0 : index
    %9 = vector.load %arg16[%c0_6, %c0_7] : memref<16x384xbf16, #tpu.memory_space<vmem>>, vector<16x384xbf16>
    tpu.vector_store %arg16[%c0_6, %c0_7], %8 {strides = array<i32>} : memref<16x384xbf16, #tpu.memory_space<vmem>>, vector<16x384xbf16>,
    %c0_8 = arith.constant 0 : index
    %c0_9 = arith.constant 0 : index
    %10 = vector.load %arg3[%c0_8, %c0_9] : memref<384x384xbf16, #tpu.memory_space<vmem>>, vector<384x384xbf16>
    %cst_10 = arith.constant dense<0.000000e+00> : vector<16x384xf32>
    %11 = tpu.matmul %8, %10, %cst_10 {dimension_numbers = #tpu.dot_dimension_numbers<[1], [0], [0], [1], [0, 0, 1, 1], [], []>} : vector<16x384xbf16>, vector<384x384xbf16>, vector<16x384xf32> -> vector<16x384xf32>
    %c0_11 = arith.constant 0 : index
    %c0_12 = arith.constant 0 : index
    %12 = vector.load %arg10[%c0_11, %c0_12] : memref<1x384xf32, #tpu.memory_space<vmem>>, vector<1x384xf32>
    %13 = vector.broadcast %12 : vector<1x384xf32> to vector<16x384xf32>
    %14 = arith.addf %11, %13 : vector<16x384xf32>
    %cst_13 = arith.constant 0.000000e+00 : f32
    %15 = vector.broadcast %cst_13 : f32 to vector<16x384xf32>
    %16 = arith.maximumf %14, %15 : vector<16x384xf32>
    %17 = arith.truncf %16 : vector<16x384xf32> to vector<16x384xbf16>
    %c0_14 = arith.constant 0 : index
    %c0_15 = arith.constant 0 : index
    %18 = vector.load %arg17[%c0_14, %c0_15] : memref<16x384xbf16, #tpu.memory_space<vmem>>, vector<16x384xbf16>
    tpu.vector_store %arg17[%c0_14, %c0_15], %17 {strides = array<i32>} : memref<16x384xbf16, #tpu.memory_space<vmem>>, vector<16x384xbf16>,
    %c0_16 = arith.constant 0 : index
    %c0_17 = arith.constant 0 : index
    %19 = vector.load %arg4[%c0_16, %c0_17] : memref<384x384xbf16, #tpu.memory_space<vmem>>, vector<384x384xbf16>
    %cst_18 = arith.constant dense<0.000000e+00> : vector<16x384xf32>
    %20 = tpu.matmul %17, %19, %cst_18 {dimension_numbers = #tpu.dot_dimension_numbers<[1], [0], [0], [1], [0, 0, 1, 1], [], []>} : vector<16x384xbf16>, vector<384x384xbf16>, vector<16x384xf32> -> vector<16x384xf32>
    %c0_19 = arith.constant 0 : index
    %c0_20 = arith.constant 0 : index
    %21 = vector.load %arg11[%c0_19, %c0_20] : memref<1x384xf32, #tpu.memory_space<vmem>>, vector<1x384xf32>
    %22 = vector.broadcast %21 : vector<1x384xf32> to vector<16x384xf32>
    %23 = arith.addf %20, %22 : vector<16x384xf32>
    %cst_21 = arith.constant 0.000000e+00 : f32
    %24 = vector.broadcast %cst_21 : f32 to vector<16x384xf32>
    %25 = arith.maximumf %23, %24 : vector<16x384xf32>
    %26 = arith.truncf %25 : vector<16x384xf32> to vector<16x384xbf16>
    %c0_22 = arith.constant 0 : index
    %c0_23 = arith.constant 0 : index
    %27 = vector.load %arg18[%c0_22, %c0_23] : memref<16x384xbf16, #tpu.memory_space<vmem>>, vector<16x384xbf16>
    tpu.vector_store %arg18[%c0_22, %c0_23], %26 {strides = array<i32>} : memref<16x384xbf16, #tpu.memory_space<vmem>>, vector<16x384xbf16>,
    %c0_24 = arith.constant 0 : index
    %c0_25 = arith.constant 0 : index
    %28 = vector.load %arg5[%c0_24, %c0_25] : memref<384x384xbf16, #tpu.memory_space<vmem>>, vector<384x384xbf16>
    %cst_26 = arith.constant dense<0.000000e+00> : vector<16x384xf32>
    %29 = tpu.matmul %26, %28, %cst_26 {dimension_numbers = #tpu.dot_dimension_numbers<[1], [0], [0], [1], [0, 0, 1, 1], [], []>} : vector<16x384xbf16>, vector<384x384xbf16>, vector<16x384xf32> -> vector<16x384xf32>
    %c0_27 = arith.constant 0 : index
    %c0_28 = arith.constant 0 : index
    %30 = vector.load %arg12[%c0_27, %c0_28] : memref<1x384xf32, #tpu.memory_space<vmem>>, vector<1x384xf32>
    %31 = vector.broadcast %30 : vector<1x384xf32> to vector<16x384xf32>
    %32 = arith.addf %29, %31 : vector<16x384xf32>
    %cst_29 = arith.constant 0.000000e+00 : f32
    %33 = vector.broadcast %cst_29 : f32 to vector<16x384xf32>
    %34 = arith.maximumf %32, %33 : vector<16x384xf32>
    %35 = arith.truncf %34 : vector<16x384xf32> to vector<16x384xbf16>
    %c0_30 = arith.constant 0 : index
    %c0_31 = arith.constant 0 : index
    %36 = vector.load %arg19[%c0_30, %c0_31] : memref<16x384xbf16, #tpu.memory_space<vmem>>, vector<16x384xbf16>
    tpu.vector_store %arg19[%c0_30, %c0_31], %35 {strides = array<i32>} : memref<16x384xbf16, #tpu.memory_space<vmem>>, vector<16x384xbf16>,
    %c0_32 = arith.constant 0 : index
    %c0_33 = arith.constant 0 : index
    %37 = vector.load %arg6[%c0_32, %c0_33] : memref<384x384xbf16, #tpu.memory_space<vmem>>, vector<384x384xbf16>
    %cst_34 = arith.constant dense<0.000000e+00> : vector<16x384xf32>
    %38 = tpu.matmul %35, %37, %cst_34 {dimension_numbers = #tpu.dot_dimension_numbers<[1], [0], [0], [1], [0, 0, 1, 1], [], []>} : vector<16x384xbf16>, vector<384x384xbf16>, vector<16x384xf32> -> vector<16x384xf32>
    %c0_35 = arith.constant 0 : index
    %c0_36 = arith.constant 0 : index
    %39 = vector.load %arg13[%c0_35, %c0_36] : memref<1x384xf32, #tpu.memory_space<vmem>>, vector<1x384xf32>
    %40 = vector.broadcast %39 : vector<1x384xf32> to vector<16x384xf32>
    %41 = arith.addf %38, %40 : vector<16x384xf32>
    %cst_37 = arith.constant 0.000000e+00 : f32
    %42 = vector.broadcast %cst_37 : f32 to vector<16x384xf32>
    %43 = arith.maximumf %41, %42 : vector<16x384xf32>
    %44 = arith.truncf %43 : vector<16x384xf32> to vector<16x384xbf16>
    %c0_38 = arith.constant 0 : index
    %c0_39 = arith.constant 0 : index
    %45 = vector.load %arg20[%c0_38, %c0_39] : memref<16x384xbf16, #tpu.memory_space<vmem>>, vector<16x384xbf16>
    tpu.vector_store %arg20[%c0_38, %c0_39], %44 {strides = array<i32>} : memref<16x384xbf16, #tpu.memory_space<vmem>>, vector<16x384xbf16>,
    %c0_40 = arith.constant 0 : index
    %c0_41 = arith.constant 0 : index
    %46 = vector.load %arg7[%c0_40, %c0_41] : memref<384x384xbf16, #tpu.memory_space<vmem>>, vector<384x384xbf16>
    %cst_42 = arith.constant dense<0.000000e+00> : vector<16x384xf32>
    %47 = tpu.matmul %44, %46, %cst_42 {dimension_numbers = #tpu.dot_dimension_numbers<[1], [0], [0], [1], [0, 0, 1, 1], [], []>} : vector<16x384xbf16>, vector<384x384xbf16>, vector<16x384xf32> -> vector<16x384xf32>
    %c0_43 = arith.constant 0 : index
    %c0_44 = arith.constant 0 : index
    %48 = vector.load %arg14[%c0_43, %c0_44] : memref<1x384xf32, #tpu.memory_space<vmem>>, vector<1x384xf32>
    %49 = vector.broadcast %48 : vector<1x384xf32> to vector<16x384xf32>
    %50 = arith.addf %47, %49 : vector<16x384xf32>
    %cst_45 = arith.constant 0.000000e+00 : f32
    %51 = vector.broadcast %cst_45 : f32 to vector<16x384xf32>
    %52 = arith.maximumf %50, %51 : vector<16x384xf32>
    %53 = arith.truncf %52 : vector<16x384xf32> to vector<16x384xbf16>
    %c0_46 = arith.constant 0 : index
    %c0_47 = arith.constant 0 : index
    %54 = vector.load %arg21[%c0_46, %c0_47] : memref<16x384xbf16, #tpu.memory_space<vmem>>, vector<16x384xbf16>
    tpu.vector_store %arg21[%c0_46, %c0_47], %53 {strides = array<i32>} : memref<16x384xbf16, #tpu.memory_space<vmem>>, vector<16x384xbf16>,
    %c0_48 = arith.constant 0 : index
    %c0_49 = arith.constant 0 : index
    %55 = vector.load %arg8[%c0_48, %c0_49] : memref<384x128xbf16, #tpu.memory_space<vmem>>, vector<384x128xbf16>
    %cst_50 = arith.constant dense<0.000000e+00> : vector<16x128xf32>
    %56 = tpu.matmul %53, %55, %cst_50 {dimension_numbers = #tpu.dot_dimension_numbers<[1], [0], [0], [1], [0, 0, 1, 1], [], []>} : vector<16x384xbf16>, vector<384x128xbf16>, vector<16x128xf32> -> vector<16x128xf32>
    %c0_51 = arith.constant 0 : index
    %c0_52 = arith.constant 0 : index
    %57 = vector.load %arg15[%c0_51, %c0_52] : memref<1x128xf32, #tpu.memory_space<vmem>>, vector<1x128xf32>
    %58 = vector.broadcast %57 : vector<1x128xf32> to vector<16x128xf32>
    %59 = arith.addf %56, %58 : vector<16x128xf32>
    %60 = tpu.iota {dimensions = array<i32: 1>} : vector<16x128xi32>
    %c10_i32 = arith.constant 10 : i32
    %61 = vector.broadcast %c10_i32 : i32 to vector<16x128xi32>
    %62 = arith.cmpi slt, %60, %61 : vector<16x128xi32>
    %cst_53 = arith.constant -1.000000e+30 : f32
    %63 = vector.broadcast %cst_53 : f32 to vector<16x128xf32>
    %64 = arith.select %62, %59, %63 : vector<16x128xi1>, vector<16x128xf32>
    %cst_54 = arith.constant dense<0xFF800000> : vector<16xf32>
    %65 = vector.multi_reduction <maximumf>, %64, %cst_54 [1] : vector<16x128xf32> to vector<16xf32>
    %66 = vector.shape_cast %65 : vector<16xf32> to vector<16x1xf32>
    %67 = vector.broadcast %66 : vector<16x1xf32> to vector<16x128xf32>
    %68 = arith.subf %64, %67 : vector<16x128xf32>
    %69 = math.exp %68 : vector<16x128xf32>
    %cst_55 = arith.constant dense<0.000000e+00> : vector<16xf32>
    %70 = vector.multi_reduction <add>, %69, %cst_55 [1] : vector<16x128xf32> to vector<16xf32>
    %71 = vector.shape_cast %70 : vector<16xf32> to vector<16x1xf32>
    %72 = vector.broadcast %71 : vector<16x1xf32> to vector<16x128xf32>
    %73 = arith.divf %69, %72 : vector<16x128xf32>
    %c0_56 = arith.constant 0 : index
    %c0_57 = arith.constant 0 : index
    %74 = vector.load %arg22[%c0_56, %c0_57] : memref<16x128xf32, #tpu.memory_space<vmem>>, vector<16x128xf32>
    tpu.vector_store %arg22[%c0_56, %c0_57], %73 {strides = array<i32>} : memref<16x128xf32, #tpu.memory_space<vmem>>, vector<16x128xf32>,
    return
  }
  func.func @transform_0(%arg0: i32) -> (i32, i32) {
    %c0_i32 = arith.constant 0 : i32
    %c0_i32_0 = arith.constant 0 : i32
    return %arg0, %c0_i32 : i32, i32
  }
  func.func @transform_1(%arg0: i32) -> (i32, i32) {
    %c0_i32 = arith.constant 0 : i32
    %c0_i32_0 = arith.constant 0 : i32
    %c0_i32_1 = arith.constant 0 : i32
    return %c0_i32, %c0_i32_0 : i32, i32
  }
  func.func @transform_2(%arg0: i32) -> (i32, i32) {
    %c0_i32 = arith.constant 0 : i32
    %c0_i32_0 = arith.constant 0 : i32
    %c0_i32_1 = arith.constant 0 : i32
    return %c0_i32, %c0_i32_0 : i32, i32
  }
  func.func @transform_3(%arg0: i32) -> (i32, i32) {
    %c0_i32 = arith.constant 0 : i32
    %c0_i32_0 = arith.constant 0 : i32
    %c0_i32_1 = arith.constant 0 : i32
    return %c0_i32, %c0_i32_0 : i32, i32
  }
  func.func @transform_4(%arg0: i32) -> (i32, i32) {
    %c0_i32 = arith.constant 0 : i32
    %c0_i32_0 = arith.constant 0 : i32
    %c0_i32_1 = arith.constant 0 : i32
    return %c0_i32, %c0_i32_0 : i32, i32
  }
  func.func @transform_5(%arg0: i32) -> (i32, i32) {
    %c0_i32 = arith.constant 0 : i32
    %c0_i32_0 = arith.constant 0 : i32
    %c0_i32_1 = arith.constant 0 : i32
    return %c0_i32, %c0_i32_0 : i32, i32
  }
  func.func @transform_6(%arg0: i32) -> (i32, i32) {
    %c0_i32 = arith.constant 0 : i32
    %c0_i32_0 = arith.constant 0 : i32
    %c0_i32_1 = arith.constant 0 : i32
    return %c0_i32, %c0_i32_0 : i32, i32
  }
  func.func @transform_7(%arg0: i32) -> (i32, i32) {
    %c0_i32 = arith.constant 0 : i32
    %c0_i32_0 = arith.constant 0 : i32
    %c0_i32_1 = arith.constant 0 : i32
    return %c0_i32, %c0_i32_0 : i32, i32
  }
  func.func @transform_8(%arg0: i32) -> (i32, i32) {
    %c0_i32 = arith.constant 0 : i32
    %c0_i32_0 = arith.constant 0 : i32
    %c0_i32_1 = arith.constant 0 : i32
    return %c0_i32, %c0_i32_0 : i32, i32
  }
  func.func @transform_9(%arg0: i32) -> (i32, i32) {
    %c0_i32 = arith.constant 0 : i32
    %c0_i32_0 = arith.constant 0 : i32
    %c0_i32_1 = arith.constant 0 : i32
    return %c0_i32, %c0_i32_0 : i32, i32
  }
  func.func @transform_10(%arg0: i32) -> (i32, i32) {
    %c0_i32 = arith.constant 0 : i32
    %c0_i32_0 = arith.constant 0 : i32
    %c0_i32_1 = arith.constant 0 : i32
    return %c0_i32, %c0_i32_0 : i32, i32
  }
  func.func @transform_11(%arg0: i32) -> (i32, i32) {
    %c0_i32 = arith.constant 0 : i32
    %c0_i32_0 = arith.constant 0 : i32
    %c0_i32_1 = arith.constant 0 : i32
    return %c0_i32, %c0_i32_0 : i32, i32
  }
  func.func @transform_12(%arg0: i32) -> (i32, i32) {
    %c0_i32 = arith.constant 0 : i32
    %c0_i32_0 = arith.constant 0 : i32
    %c0_i32_1 = arith.constant 0 : i32
    return %c0_i32, %c0_i32_0 : i32, i32
  }
  func.func @transform_13(%arg0: i32) -> (i32, i32) {
    %c0_i32 = arith.constant 0 : i32
    %c0_i32_0 = arith.constant 0 : i32
    %c0_i32_1 = arith.constant 0 : i32
    return %c0_i32, %c0_i32_0 : i32, i32
  }
  func.func @transform_14(%arg0: i32) -> (i32, i32) {
    %c0_i32 = arith.constant 0 : i32
    %c0_i32_0 = arith.constant 0 : i32
    %c0_i32_1 = arith.constant 0 : i32
    return %c0_i32, %c0_i32_0 : i32, i32
  }
  func.func @transform_15(%arg0: i32) -> (i32, i32) {
    %c0_i32 = arith.constant 0 : i32
    %c0_i32_0 = arith.constant 0 : i32
    return %arg0, %c0_i32 : i32, i32
  }
  func.func @transform_16(%arg0: i32) -> (i32, i32) {
    %c0_i32 = arith.constant 0 : i32
    %c0_i32_0 = arith.constant 0 : i32
    return %arg0, %c0_i32 : i32, i32
  }
  func.func @transform_17(%arg0: i32) -> (i32, i32) {
    %c0_i32 = arith.constant 0 : i32
    %c0_i32_0 = arith.constant 0 : i32
    return %arg0, %c0_i32 : i32, i32
  }
  func.func @transform_18(%arg0: i32) -> (i32, i32) {
    %c0_i32 = arith.constant 0 : i32
    %c0_i32_0 = arith.constant 0 : i32
    return %arg0, %c0_i32 : i32, i32
  }
  func.func @transform_19(%arg0: i32) -> (i32, i32) {
    %c0_i32 = arith.constant 0 : i32
    %c0_i32_0 = arith.constant 0 : i32
    return %arg0, %c0_i32 : i32, i32
  }
  func.func @transform_20(%arg0: i32) -> (i32, i32) {
    %c0_i32 = arith.constant 0 : i32
    %c0_i32_0 = arith.constant 0 : i32
    return %arg0, %c0_i32 : i32, i32
  }
  func.func @transform_21(%arg0: i32) -> (i32, i32) {
    %c0_i32 = arith.constant 0 : i32
    %c0_i32_0 = arith.constant 0 : i32
    return %arg0, %c0_i32 : i32, i32
  }
}

</mosaic_0001>

<llo_original>
// kernel: tpu_custom_call.1
$region0: #{tpu_custom_call.1}
  #allocation0 [shape = 'u32[]', space=smem, size = 0x4, offset = 0x4, fixed_abs, tag = 'smem constant byte address 0x4 - core index']
  #allocation1 [shape = 'u32[144,128]{1,0:T(1,128)}', space=vmem, size = 0x12000, scoped, tag = 'internal scratch']
  %s0 = inlined_call_operand.hbm [shape: f32[8,128], index: 0, kind: input, shape index: {}]
  %s1 = inlined_call_operand.hbm [shape: f32[8,128], index: 1, kind: output, shape index: {}]
  %s2 = sld [smem:[#allocation0]]
  $region41: #{tpu_custom_call.1} parent=0
    _
  %s4 = ssub.s32 1, %s2
  %s5 = scalar_select 0, %s4, %s2
  $region1: #{tpu_custom_call.1} parent=0
    #allocation2 [shape = 'u8[4096]{0}', space=vmem, size = 0x1000, scoped, tag = 'input window, operand 0, single buffered']
    #allocation3 [shape = 's32[2]{0}', space=sflag, size = 0x8, scoped, tag = 'scoped memory for tpu_custom_call.1']
    #allocation4 [shape = 's32[2]{0}', space=sflag, size = 0x8, scoped, tag = 'scoped memory for tpu_custom_call.1']
    #allocation5 [shape = 'u8[4096]{0}', space=vmem, size = 0x1000, scoped, tag = 'output window, operand 0, single buffered']
    %6 = vsyncpa [#allocation3], 0
    %7 = vsyncpa [#allocation4], 0
    loop: start=0, step=1, limit=4
    $region2: #{tpu_custom_call.1} parent=1 // loop_pre_header
      _
    $region3: #{tpu_custom_call.1} parent=1 // loop_header
      %s9 = sphi 0, %s13
      %p10 = scmp.ge.s32.totalorder %s9, 4
      %s17 = sphi 0, %s17
      %s19 = sphi 0, %s17
      %s20 = sphi 0, %s19
      %s34 = sphi 0, %s20
      %s38 = sphi 0, %s38
      %s40 = sphi 0, %s38
      %s41 = sphi 0, %s40
      %s55 = sphi 0, %s41
    $region4: #{tpu_custom_call.1} parent=1 // loop_header_branch
      %12 = sbr.rel (%p10) target = $region8
    $region5: #{tpu_custom_call.1} parent=1 // loop_body
      %s14 = ssub.s32 %s9, 1
      %s15 = ssub.s32 %s9, 2
      %s16 = sadd.s32 %s9, 1
      %s18 = sadd.s32 %s17, 1
      %p21 = scmp.eq.s32.totalorder %s9, 1
      %p22 = scmp.ne.s32.totalorder %s17, %s19
      %p23 = scmp.eq.s32.totalorder %s9, 0
      %p24 = por %p22, %p23
      %p25 = scmp.ne.s32.totalorder %s17, %s19
      %p26 = scmp.eq.s32.totalorder %s14, 1
      %p27 = por %p25, %p26
      %p28 = scmp.ne.s32.totalorder %s19, %s20
      %p29 = scmp.eq.s32.totalorder %s14, 0
      %p30 = por %p28, %p29
      %p31 = scmp.ne.s32.totalorder %s19, %s20
      %p32 = scmp.eq.s32.totalorder %s15, 1
      %p33 = por %p31, %p32
      %p35 = scmp.ne.s32.totalorder %s20, %s34
      %p36 = scmp.eq.s32.totalorder %s15, 0
      %p37 = por %p35, %p36
      %s39 = sadd.s32 %s38, 1
      %p42 = scmp.eq.s32.totalorder %s9, 1
      %p43 = scmp.ne.s32.totalorder %s38, %s40
      %p44 = scmp.eq.s32.totalorder %s9, 0
      %p45 = por %p43, %p44
      %p46 = scmp.ne.s32.totalorder %s38, %s40
      %p47 = scmp.eq.s32.totalorder %s14, 1
      %p48 = por %p46, %p47
      %p49 = scmp.ne.s32.totalorder %s40, %s41
      %p50 = scmp.eq.s32.totalorder %s14, 0
      %p51 = por %p49, %p50
      %p52 = scmp.ne.s32.totalorder %s40, %s41
      %p53 = scmp.eq.s32.totalorder %s15, 1
      %p54 = por %p52, %p53
      %p56 = scmp.ne.s32.totalorder %s41, %s55
      %p57 = scmp.eq.s32.totalorder %s15, 0
      %p58 = por %p56, %p57
      %p59 = scmp.le.s32.totalorder 1, %s9
      %p60 = scmp.lt.s32.totalorder %s9, 3
      %p61 = pnand %p59, %p60
      %p62 = pneg %p61
      // Predicated region
      $region9: #{tpu_custom_call.1} parent=5 // pred_check
        _
      $region10: #{tpu_custom_call.1} parent=5 // pred_check_branch
        %64 = sbr.rel (%p61) target = $region12
      $region11: #{tpu_custom_call.1} parent=5 // pred_region
        %s65 = ssub.s32 %s9, 1
        // Predicated region
        $region13: #{tpu_custom_call.1} parent=11 // pred_check
          %p66 = pneg %p30
        $region14: #{tpu_custom_call.1} parent=11 // pred_check_branch
          %68 = sbr.rel (%p66) target = $region16
        $region15: #{tpu_custom_call.1} parent=11 // pred_region
          %s70 = ssub.s32 128, 128
          %71 = vsyncadd [#allocation3], %s70
          %s73 = sshll.u32 [#allocation2], 4
          %s74 = int_to_ptr.vmem [resolvable:$true] %s73
          %76 = dma.hbm_to_vmem [thread:$0]  %s0, 128, %s74, [#allocation3]
        $region16: #{tpu_custom_call.1} parent=11 // pred_fallthru
          _
      $region12: #{tpu_custom_call.1} parent=5 // pred_fallthru
        _
      %p77 = scmp.lt.s32.totalorder %s9, 2
      // Predicated region
      $region17: #{tpu_custom_call.1} parent=5 // pred_check
        %p78 = pneg %p77
      $region18: #{tpu_custom_call.1} parent=5 // pred_check_branch
        %80 = sbr.rel (%p78) target = $region20
      $region19: #{tpu_custom_call.1} parent=5 // pred_region
        _
      $region20: #{tpu_custom_call.1} parent=5 // pred_fallthru
        _
      %p81 = scmp.le.s32.totalorder 1, %s9
      %p82 = scmp.lt.s32.totalorder %s9, 3
      %p83 = pnand %p81, %p82
      %p84 = pneg %p83
      // Predicated region
      $region21: #{tpu_custom_call.1} parent=5 // pred_check
        _
      $region22: #{tpu_custom_call.1} parent=5 // pred_check_branch
        %86 = sbr.rel (%p83) target = $region24
      $region23: #{tpu_custom_call.1} parent=5 // pred_region
        %s87 = ssub.s32 %s9, 1
        // Predicated region
        $region25: #{tpu_custom_call.1} parent=23 // pred_check
          %p88 = pneg %p30
        $region26: #{tpu_custom_call.1} parent=23 // pred_check_branch
          %90 = sbr.rel (%p88) target = $region28
        $region27: #{tpu_custom_call.1} parent=23 // pred_region
          %91 = dma.done [#allocation3], 128
        $region28: #{tpu_custom_call.1} parent=23 // pred_fallthru
          _
        %p92 = pneg %p30
        %p93 = pneg %p27
        %p94 = pneg %p51
        %p95 = pneg %p48
        %v96 = vld [vmem:[#allocation2] sm:$0xff]
        %v97 = vadd.f32 %v96, 1.0
        %98 = vst [vmem:[#allocation5] sm:$0xff] %v97
        // Predicated region
        $region29: #{tpu_custom_call.1} parent=23 // pred_check
          %p99 = pneg %p48
        $region30: #{tpu_custom_call.1} parent=23 // pred_check_branch
          %101 = sbr.rel (%p99) target = $region32
        $region31: #{tpu_custom_call.1} parent=23 // pred_region
          %s103 = ssub.s32 128, 128
          %104 = vsyncadd [#allocation4], %s103
          %s106 = sshll.u32 [#allocation5], 4
          %s107 = int_to_ptr.vmem [resolvable:$true] %s106
          %109 = dma.vmem_to_hbm [thread:$0]  %s107, 128, %s1, [#allocation4]
        $region32: #{tpu_custom_call.1} parent=23 // pred_fallthru
          _
        // Predicated region
        $region33: #{tpu_custom_call.1} parent=23 // pred_check
          %p110 = pneg %p48
        $region34: #{tpu_custom_call.1} parent=23 // pred_check_branch
          %112 = sbr.rel (%p110) target = $region36
        $region35: #{tpu_custom_call.1} parent=23 // pred_region
          %113 = dma.done [#allocation4], 128
        $region36: #{tpu_custom_call.1} parent=23 // pred_fallthru
          _
      $region24: #{tpu_custom_call.1} parent=5 // pred_fallthru
        _
      %p114 = scmp.le.s32.totalorder 2, %s9
      // Predicated region
      $region37: #{tpu_custom_call.1} parent=5 // pred_check
        %p115 = pneg %p114
      $region38: #{tpu_custom_call.1} parent=5 // pred_check_branch
        %117 = sbr.rel (%p115) target = $region40
      $region39: #{tpu_custom_call.1} parent=5 // pred_region
        %s118 = ssub.s32 %s9, 2
      $region40: #{tpu_custom_call.1} parent=5 // pred_fallthru
        _
    $region6: #{tpu_custom_call.1} parent=1 // loop_footer
      %s13 = sadd.s32 1, %s9
    $region7: #{tpu_custom_call.1} parent=1 // loop_footer_branch
      %8 = sbr.rel target = $region3
    $region8: #{tpu_custom_call.1} parent=1 // loop_exit
      _
    %119 = vsyncpa [#allocation3], 1
    %s120 = scalar_lea.sflag [#allocation3], 1
    %121 = vsyncpa %s120, 1
    %122 = vsyncpa [#allocation4], 1
    %s123 = scalar_lea.sflag [#allocation4], 1
    %124 = vsyncpa %s123, 1

// kernel: deep_mlp_forward.1
$region0: #{deep_mlp_forward.1}
  #allocation0 [shape = 'u32[]', space=smem, size = 0x4, offset = 0x4, fixed_abs, tag = 'smem constant byte address 0x4 - core index']
  #allocation1 [shape = 'u32[144,128]{1,0:T(1,128)}', space=vmem, size = 0x12000, scoped, tag = 'internal scratch']
  %s0 = inlined_call_operand.vmem [shape: bf16[16,784], index: 0, kind: input, shape index: {}]
  %s1 = inlined_call_operand.hbm [shape: bf16[784,384], index: 1, kind: input, shape index: {}]
  %s2 = inlined_call_operand.hbm [shape: bf16[384,384], index: 2, kind: input, shape index: {}]
  %s3 = inlined_call_operand.hbm [shape: bf16[384,384], index: 3, kind: input, shape index: {}]
  %s4 = inlined_call_operand.hbm [shape: bf16[384,384], index: 4, kind: input, shape index: {}]
  %s5 = inlined_call_operand.hbm [shape: bf16[384,384], index: 5, kind: input, shape index: {}]
  %s6 = inlined_call_operand.hbm [shape: bf16[384,384], index: 6, kind: input, shape index: {}]
  %s7 = inlined_call_operand.vmem [shape: bf16[384,128], index: 7, kind: input, shape index: {}]
  %s8 = inlined_call_operand.vmem [shape: f32[1,384], index: 8, kind: input, shape index: {}]
  %s9 = inlined_call_operand.vmem [shape: f32[1,384], index: 9, kind: input, shape index: {}]
  %s10 = inlined_call_operand.vmem [shape: f32[1,384], index: 10, kind: input, shape index: {}]
  %s11 = inlined_call_operand.vmem [shape: f32[1,384], index: 11, kind: input, shape index: {}]
  %s12 = inlined_call_operand.vmem [shape: f32[1,384], index: 12, kind: input, shape index: {}]
  %s13 = inlined_call_operand.vmem [shape: f32[1,384], index: 13, kind: input, shape index: {}]
  %s14 = inlined_call_operand.vmem [shape: f32[1,128], index: 14, kind: input, shape index: {}]
  %s15 = inlined_call_operand.vmem [shape: bf16[16,384], index: 15, kind: output, shape index: {0}]
  %s16 = inlined_call_operand.vmem [shape: bf16[16,384], index: 16, kind: output, shape index: {1}]
  %s17 = inlined_call_operand.vmem [shape: bf16[16,384], index: 17, kind: output, shape index: {2}]
  %s18 = inlined_call_operand.vmem [shape: bf16[16,384], index: 18, kind: output, shape index: {3}]
  %s19 = inlined_call_operand.vmem [shape: bf16[16,384], index: 19, kind: output, shape index: {4}]
  %s20 = inlined_call_operand.vmem [shape: bf16[16,384], index: 20, kind: output, shape index: {5}]
  %s21 = inlined_call_operand.vmem [shape: f32[16,128], index: 21, kind: output, shape index: {6}]
  %22 = xla_tuple %s15, %s16, %s17, %s18, %s19, %s20, %s21
  %s23 = sld [smem:[#allocation0]]
  $region142: #{deep_mlp_forward.1} parent=0
    _
  %s25 = ssub.s32 1, %s23
  %s26 = scalar_select 0, %s25, %s23
  $region1: #{deep_mlp_forward.1} parent=0
    #allocation2 [shape = 'u8[602112]{0}', space=vmem, size = 0x93000, scoped, tag = 'input window, operand 1, single buffered']
    #allocation3 [shape = 's32[1]{0}', space=sflag, size = 0x4, scoped, tag = 'scoped memory for deep_mlp_forward.1']
    #allocation4 [shape = 'u8[294912]{0}', space=vmem, size = 0x48000, scoped, tag = 'input window, operand 2, single buffered']
    #allocation5 [shape = 's32[1]{0}', space=sflag, size = 0x4, scoped, tag = 'scoped memory for deep_mlp_forward.1']
    #allocation6 [shape = 'u8[294912]{0}', space=vmem, size = 0x48000, scoped, tag = 'input window, operand 3, single buffered']
    #allocation7 [shape = 'u8[294912]{0}', space=vmem, size = 0x48000, scoped, tag = 'input window, operand 4, single buffered']
    #allocation8 [shape = 's32[1]{0}', space=sflag, size = 0x4, scoped, tag = 'scoped memory for deep_mlp_forward.1']
    #allocation9 [shape = 'u8[294912]{0}', space=vmem, size = 0x48000, scoped, tag = 'input window, operand 5, single buffered']
    #allocation10 [shape = 'u8[294912]{0}', space=vmem, size = 0x48000, scoped, tag = 'input window, operand 6, single buffered']
    #allocation11 [shape = 's32[1]{0}', space=sflag, size = 0x4, scoped, tag = 'scoped memory for deep_mlp_forward.1']
    %27 = vsyncpa [#allocation3], 0
    %28 = vsyncpa [#allocation5], 0
    %29 = vsyncpa [#allocation8], 0
    %30 = vsyncpa [#allocation11], 0
    // Predicated region
    $region2: #{deep_mlp_forward.1} parent=1 // pred_check
      _
    $region3: #{deep_mlp_forward.1} parent=1 // pred_check_branch
      %32 = sbr.rel (0) target = $region5
    $region4: #{deep_mlp_forward.1} parent=1 // pred_region
      _
    $region5: #{deep_mlp_forward.1} parent=1 // pred_fallthru
      _
    // Predicated region
    $region6: #{deep_mlp_forward.1} parent=1 // pred_check
      _
    $region7: #{deep_mlp_forward.1} parent=1 // pred_check_branch
      %34 = sbr.rel (0) target = $region9
    $region8: #{deep_mlp_forward.1} parent=1 // pred_region
      %s36 = ssub.s32 18816, 18816
      %37 = vsyncadd [#allocation3], %s36
      %s38 = sshll.u32 [#allocation2], 4
      %s39 = int_to_ptr.vmem [resolvable:$true] %s38
      %44 = dma.hbm_to_vmem [thread:$0]  %s1, 18816, %s39, [#allocation3], 192, 192, 12
    $region9: #{deep_mlp_forward.1} parent=1 // pred_fallthru
      _
    // Predicated region
    $region10: #{deep_mlp_forward.1} parent=1 // pred_check
      _
    $region11: #{deep_mlp_forward.1} parent=1 // pred_check_branch
      %46 = sbr.rel (0) target = $region13
    $region12: #{deep_mlp_forward.1} parent=1 // pred_region
      %s48 = ssub.s32 9216, 9216
      %49 = vsyncadd [#allocation5], %s48
      %s50 = sshll.u32 [#allocation4], 4
      %s51 = int_to_ptr.vmem [resolvable:$true] %s50
      %56 = dma.hbm_to_vmem [thread:$0]  %s2, 9216, %s51, [#allocation5], 192, 192, 12
    $region13: #{deep_mlp_forward.1} parent=1 // pred_fallthru
      _
    // Predicated region
    $region14: #{deep_mlp_forward.1} parent=1 // pred_check
      _
    $region15: #{deep_mlp_forward.1} parent=1 // pred_check_branch
      %58 = sbr.rel (0) target = $region17
    $region16: #{deep_mlp_forward.1} parent=1 // pred_region
      %s60 = ssub.s32 9216, 9216
      %61 = vsyncadd [#allocation5], %s60
      %s62 = sshll.u32 [#allocation6], 4
      %s63 = int_to_ptr.vmem [resolvable:$true] %s62
      %68 = dma.hbm_to_vmem [thread:$0]  %s3, 9216, %s63, [#allocation5], 192, 192, 12
    $region17: #{deep_mlp_forward.1} parent=1 // pred_fallthru
      _
    // Predicated region
    $region18: #{deep_mlp_forward.1} parent=1 // pred_check
      _
    $region19: #{deep_mlp_forward.1} parent=1 // pred_check_branch
      %70 = sbr.rel (0) target = $region21
    $region20: #{deep_mlp_forward.1} parent=1 // pred_region
      %s72 = ssub.s32 9216, 9216
      %73 = vsyncadd [#allocation8], %s72
      %s74 = sshll.u32 [#allocation7], 4
      %s75 = int_to_ptr.vmem [resolvable:$true] %s74
      %80 = dma.hbm_to_vmem [thread:$0]  %s4, 9216, %s75, [#allocation8], 192, 192, 12
    $region21: #{deep_mlp_forward.1} parent=1 // pred_fallthru
      _
    // Predicated region
    $region22: #{deep_mlp_forward.1} parent=1 // pred_check
      _
    $region23: #{deep_mlp_forward.1} parent=1 // pred_check_branch
      %82 = sbr.rel (0) target = $region25
    $region24: #{deep_mlp_forward.1} parent=1 // pred_region
      %s84 = ssub.s32 9216, 9216
      %85 = vsyncadd [#allocation8], %s84
      %s86 = sshll.u32 [#allocation9], 4
      %s87 = int_to_ptr.vmem [resolvable:$true] %s86
      %92 = dma.hbm_to_vmem [thread:$0]  %s5, 9216, %s87, [#allocation8], 192, 192, 12
    $region25: #{deep_mlp_forward.1} parent=1 // pred_fallthru
      _
    // Predicated region
    $region26: #{deep_mlp_forward.1} parent=1 // pred_check
      _
    $region27: #{deep_mlp_forward.1} parent=1 // pred_check_branch
      %94 = sbr.rel (0) target = $region29
    $region28: #{deep_mlp_forward.1} parent=1 // pred_region
      %s96 = ssub.s32 9216, 9216
      %97 = vsyncadd [#allocation11], %s96
      %s98 = sshll.u32 [#allocation10], 4
      %s99 = int_to_ptr.vmem [resolvable:$true] %s98
      %104 = dma.hbm_to_vmem [thread:$0]  %s6, 9216, %s99, [#allocation11], 192, 192, 12
    $region29: #{deep_mlp_forward.1} parent=1 // pred_fallthru
      _
    // Predicated region
    $region30: #{deep_mlp_forward.1} parent=1 // pred_check
      _
    $region31: #{deep_mlp_forward.1} parent=1 // pred_check_branch
      %106 = sbr.rel (0) target = $region33
    $region32: #{deep_mlp_forward.1} parent=1 // pred_region
      _
    $region33: #{deep_mlp_forward.1} parent=1 // pred_fallthru
      _
    // Predicated region
    $region34: #{deep_mlp_forward.1} parent=1 // pred_check
      _
    $region35: #{deep_mlp_forward.1} parent=1 // pred_check_branch
      %108 = sbr.rel (0) target = $region37
    $region36: #{deep_mlp_forward.1} parent=1 // pred_region
      _
    $region37: #{deep_mlp_forward.1} parent=1 // pred_fallthru
      _
    // Predicated region
    $region38: #{deep_mlp_forward.1} parent=1 // pred_check
      _
    $region39: #{deep_mlp_forward.1} parent=1 // pred_check_branch
      %110 = sbr.rel (0) target = $region41
    $region40: #{deep_mlp_forward.1} parent=1 // pred_region
      _
    $region41: #{deep_mlp_forward.1} parent=1 // pred_fallthru
      _
    // Predicated region
    $region42: #{deep_mlp_forward.1} parent=1 // pred_check
      _
    $region43: #{deep_mlp_forward.1} parent=1 // pred_check_branch
      %112 = sbr.rel (0) target = $region45
    $region44: #{deep_mlp_forward.1} parent=1 // pred_region
      _
    $region45: #{deep_mlp_forward.1} parent=1 // pred_fallthru
      _
    // Predicated region
    $region46: #{deep_mlp_forward.1} parent=1 // pred_check
      _
    $region47: #{deep_mlp_forward.1} parent=1 // pred_check_branch
      %114 = sbr.rel (0) target = $region49
    $region48: #{deep_mlp_forward.1} parent=1 // pred_region
      _
    $region49: #{deep_mlp_forward.1} parent=1 // pred_fallthru
      _
    // Predicated region
    $region50: #{deep_mlp_forward.1} parent=1 // pred_check
      _
    $region51: #{deep_mlp_forward.1} parent=1 // pred_check_branch
      %116 = sbr.rel (0) target = $region53
    $region52: #{deep_mlp_forward.1} parent=1 // pred_region
      _
    $region53: #{deep_mlp_forward.1} parent=1 // pred_fallthru
      _
    // Predicated region
    $region54: #{deep_mlp_forward.1} parent=1 // pred_check
      _
    $region55: #{deep_mlp_forward.1} parent=1 // pred_check_branch
      %118 = sbr.rel (0) target = $region57
    $region56: #{deep_mlp_forward.1} parent=1 // pred_region
      _
    $region57: #{deep_mlp_forward.1} parent=1 // pred_fallthru
      _
    // Predicated region
    $region58: #{deep_mlp_forward.1} parent=1 // pred_check
      _
    $region59: #{deep_mlp_forward.1} parent=1 // pred_check_branch
      %120 = sbr.rel (0) target = $region61
    $region60: #{deep_mlp_forward.1} parent=1 // pred_region
      _
    $region61: #{deep_mlp_forward.1} parent=1 // pred_fallthru
      _
    // Predicated region
    $region62: #{deep_mlp_forward.1} parent=1 // pred_check
      _
    $region63: #{deep_mlp_forward.1} parent=1 // pred_check_branch
      %122 = sbr.rel (0) target = $region65
    $region64: #{deep_mlp_forward.1} parent=1 // pred_region
      %123 = dma.done [#allocation3], 18816
    $region65: #{deep_mlp_forward.1} parent=1 // pred_fallthru
      _
    // Predicated region
    $region66: #{deep_mlp_forward.1} parent=1 // pred_check
      _
    $region67: #{deep_mlp_forward.1} parent=1 // pred_check_branch
      %125 = sbr.rel (0) target = $region69
    $region68: #{deep_mlp_forward.1} parent=1 // pred_region
      %126 = dma.done [#allocation5], 9216
    $region69: #{deep_mlp_forward.1} parent=1 // pred_fallthru
      _
    // Predicated region
    $region70: #{deep_mlp_forward.1} parent=1 // pred_check
      _
    $region71: #{deep_mlp_forward.1} parent=1 // pred_check_branch
      %128 = sbr.rel (0) target = $region73
    $region72: #{deep_mlp_forward.1} parent=1 // pred_region
      %129 = dma.done [#allocation5], 9216
    $region73: #{deep_mlp_forward.1} parent=1 // pred_fallthru
      _
    // Predicated region
    $region74: #{deep_mlp_forward.1} parent=1 // pred_check
      _
    $region75: #{deep_mlp_forward.1} parent=1 // pred_check_branch
      %131 = sbr.rel (0) target = $region77
    $region76: #{deep_mlp_forward.1} parent=1 // pred_region
      %132 = dma.done [#allocation8], 9216
    $region77: #{deep_mlp_forward.1} parent=1 // pred_fallthru
      _
    // Predicated region
    $region78: #{deep_mlp_forward.1} parent=1 // pred_check
      _
    $region79: #{deep_mlp_forward.1} parent=1 // pred_check_branch
      %134 = sbr.rel (0) target = $region81
    $region80: #{deep_mlp_forward.1} parent=1 // pred_region
      %135 = dma.done [#allocation8], 9216
    $region81: #{deep_mlp_forward.1} parent=1 // pred_fallthru
      _
    // Predicated region
    $region82: #{deep_mlp_forward.1} parent=1 // pred_check
      _
    $region83: #{deep_mlp_forward.1} parent=1 // pred_check_branch
      %137 = sbr.rel (0) target = $region85
    $region84: #{deep_mlp_forward.1} parent=1 // pred_region
      %138 = dma.done [#allocation11], 9216
    $region85: #{deep_mlp_forward.1} parent=1 // pred_fallthru
      _
    %v140 = vld [vmem:[%s0] sm:$0xff]
    %v141 = vld [vmem:[%s0 + $0x8] sm:$0xff]
    %v142 = vld [vmem:[%s0 + $0x10] sm:$0xff]
    %v143 = vld [vmem:[%s0 + $0x18] sm:$0xf]
    %v144 = vld [vmem:[%s0 + $0x1c] sm:$0xff]
    %v145 = vld [vmem:[%s0 + $0x24] sm:$0xff]
    %v146 = vld [vmem:[%s0 + $0x2c] sm:$0xff]
    %v147 = vld [vmem:[%s0 + $0x34] sm:$0xf]
    %v148 = vld [vmem:[#allocation2] sm:$0xff]
    %v149 = vld [vmem:[#allocation2 + $0x8] sm:$0xf]
    %v150 = vld [vmem:[#allocation2 + $0xc] sm:$0xff]
    %v151 = vld [vmem:[#allocation2 + $0x14] sm:$0xf]
    %v152 = vld [vmem:[#allocation2 + $0x18] sm:$0xff]
    %v153 = vld [vmem:[#allocation2 + $0x20] sm:$0xf]
    %v154 = vld [vmem:[#allocation2 + $0x24] sm:$0xff]
    %v155 = vld [vmem:[#allocation2 + $0x2c] sm:$0xf]
    %v156 = vld [vmem:[#allocation2 + $0x30] sm:$0xff]
    %v157 = vld [vmem:[#allocation2 + $0x38] sm:$0xf]
    %v158 = vld [vmem:[#allocation2 + $0x3c] sm:$0xff]
    %v159 = vld [vmem:[#allocation2 + $0x44] sm:$0xf]
    %v160 = vld [vmem:[#allocation2 + $0x48] sm:$0xff]
    %v161 = vld [vmem:[#allocation2 + $0x50] sm:$0xf]
    %v162 = vld [vmem:[#allocation2 + $0x54] sm:$0xff]
    %v163 = vld [vmem:[#allocation2 + $0x5c] sm:$0xf]
    %v164 = vld [vmem:[#allocation2 + $0x60] sm:$0xff]
    %v165 = vld [vmem:[#allocation2 + $0x68] sm:$0xf]
    %v166 = vld [vmem:[#allocation2 + $0x6c] sm:$0xff]
    %v167 = vld [vmem:[#allocation2 + $0x74] sm:$0xf]
    %v168 = vld [vmem:[#allocation2 + $0x78] sm:$0xff]
    %v169 = vld [vmem:[#allocation2 + $0x80] sm:$0xf]
    %v170 = vld [vmem:[#allocation2 + $0x84] sm:$0xff]
    %v171 = vld [vmem:[#allocation2 + $0x8c] sm:$0xf]
    %v172 = vld [vmem:[#allocation2 + $0x90] sm:$0xff]
    %v173 = vld [vmem:[#allocation2 + $0x98] sm:$0xf]
    %v174 = vld [vmem:[#allocation2 + $0x9c] sm:$0xff]
    %v175 = vld [vmem:[#allocation2 + $0xa4] sm:$0xf]
    %v176 = vld [vmem:[#allocation2 + $0xa8] sm:$0xff]
    %v177 = vld [vmem:[#allocation2 + $0xb0] sm:$0xf]
    %v178 = vld [vmem:[#allocation2 + $0xb4] sm:$0xff]
    %v179 = vld [vmem:[#allocation2 + $0xbc] sm:$0xf]
    %v180 = vld [vmem:[#allocation2 + $0xc0] sm:$0xff]
    %v181 = vld [vmem:[#allocation2 + $0xc8] sm:$0xf]
    %v182 = vld [vmem:[#allocation2 + $0xcc] sm:$0xff]
    %v183 = vld [vmem:[#allocation2 + $0xd4] sm:$0xf]
    %v184 = vld [vmem:[#allocation2 + $0xd8] sm:$0xff]
    %v185 = vld [vmem:[#allocation2 + $0xe0] sm:$0xf]
    %v186 = vld [vmem:[#allocation2 + $0xe4] sm:$0xff]
    %v187 = vld [vmem:[#allocation2 + $0xec] sm:$0xf]
    %v188 = vld [vmem:[#allocation2 + $0xf0] sm:$0xff]
    %v189 = vld [vmem:[#allocation2 + $0xf8] sm:$0xf]
    %v190 = vld [vmem:[#allocation2 + $0xfc] sm:$0xff]
    %v191 = vld [vmem:[#allocation2 + $0x104] sm:$0xf]
    %v192 = vld [vmem:[#allocation2 + $0x108] sm:$0xff]
    %v193 = vld [vmem:[#allocation2 + $0x110] sm:$0xf]
    %v194 = vld [vmem:[#allocation2 + $0x114] sm:$0xff]
    %v195 = vld [vmem:[#allocation2 + $0x11c] sm:$0xf]
    %v196 = vld [vmem:[#allocation2 + $0x120] sm:$0xff]
    %v197 = vld [vmem:[#allocation2 + $0x128] sm:$0xf]
    %v198 = vld [vmem:[#allocation2 + $0x12c] sm:$0xff]
    %v199 = vld [vmem:[#allocation2 + $0x134] sm:$0xf]
    %v200 = vld [vmem:[#allocation2 + $0x138] sm:$0xff]
    %v201 = vld [vmem:[#allocation2 + $0x140] sm:$0xf]
    %v202 = vld [vmem:[#allocation2 + $0x144] sm:$0xff]
    %v203 = vld [vmem:[#allocation2 + $0x14c] sm:$0xf]
    %v204 = vld [vmem:[#allocation2 + $0x150] sm:$0xff]
    %v205 = vld [vmem:[#allocation2 + $0x158] sm:$0xf]
    %v206 = vld [vmem:[#allocation2 + $0x15c] sm:$0xff]
    %v207 = vld [vmem:[#allocation2 + $0x164] sm:$0xf]
    %v208 = vld [vmem:[#allocation2 + $0x168] sm:$0xff]
    %v209 = vld [vmem:[#allocation2 + $0x170] sm:$0xf]
    %v210 = vld [vmem:[#allocation2 + $0x174] sm:$0xff]
    %v211 = vld [vmem:[#allocation2 + $0x17c] sm:$0xf]
    %v212 = vld [vmem:[#allocation2 + $0x180] sm:$0xff]
    %v213 = vld [vmem:[#allocation2 + $0x188] sm:$0xf]
    %v214 = vld [vmem:[#allocation2 + $0x18c] sm:$0xff]
    %v215 = vld [vmem:[#allocation2 + $0x194] sm:$0xf]
    %v216 = vld [vmem:[#allocation2 + $0x198] sm:$0xff]
    %v217 = vld [vmem:[#allocation2 + $0x1a0] sm:$0xf]
    %v218 = vld [vmem:[#allocation2 + $0x1a4] sm:$0xff]
    %v219 = vld [vmem:[#allocation2 + $0x1ac] sm:$0xf]
    %v220 = vld [vmem:[#allocation2 + $0x1b0] sm:$0xff]
    %v221 = vld [vmem:[#allocation2 + $0x1b8] sm:$0xf]
    %v222 = vld [vmem:[#allocation2 + $0x1bc] sm:$0xff]
    %v223 = vld [vmem:[#allocation2 + $0x1c4] sm:$0xf]
    %v224 = vld [vmem:[#allocation2 + $0x1c8] sm:$0xff]
    %v225 = vld [vmem:[#allocation2 + $0x1d0] sm:$0xf]
    %v226 = vld [vmem:[#allocation2 + $0x1d4] sm:$0xff]
    %v227 = vld [vmem:[#allocation2 + $0x1dc] sm:$0xf]
    %v228 = vld [vmem:[#allocation2 + $0x1e0] sm:$0xff]
    %v229 = vld [vmem:[#allocation2 + $0x1e8] sm:$0xf]
    %v230 = vld [vmem:[#allocation2 + $0x1ec] sm:$0xff]
    %v231 = vld [vmem:[#allocation2 + $0x1f4] sm:$0xf]
    %v232 = vld [vmem:[#allocation2 + $0x1f8] sm:$0xff]
    %v233 = vld [vmem:[#allocation2 + $0x200] sm:$0xf]
    %v234 = vld [vmem:[#allocation2 + $0x204] sm:$0xff]
    %v235 = vld [vmem:[#allocation2 + $0x20c] sm:$0xf]
    %v236 = vld [vmem:[#allocation2 + $0x210] sm:$0xff]
    %v237 = vld [vmem:[#allocation2 + $0x218] sm:$0xf]
    %v238 = vld [vmem:[#allocation2 + $0x21c] sm:$0xff]
    %v239 = vld [vmem:[#allocation2 + $0x224] sm:$0xf]
    %v240 = vld [vmem:[#allocation2 + $0x228] sm:$0xff]
    %v241 = vld [vmem:[#allocation2 + $0x230] sm:$0xf]
    %v242 = vld [vmem:[#allocation2 + $0x234] sm:$0xff]
    %v243 = vld [vmem:[#allocation2 + $0x23c] sm:$0xf]
    %v244 = vld [vmem:[#allocation2 + $0x240] sm:$0xff]
    %v245 = vld [vmem:[#allocation2 + $0x248] sm:$0xf]
    %v246 = vld [vmem:[#allocation2 + $0x24c] sm:$0xff]
    %v247 = vld [vmem:[#allocation2 + $0x254] sm:$0xf]
    %v248 = vld [vmem:[#allocation2 + $0x258] sm:$0xff]
    %v249 = vld [vmem:[#allocation2 + $0x260] sm:$0xf]
    %v250 = vld [vmem:[#allocation2 + $0x264] sm:$0xff]
    %v251 = vld [vmem:[#allocation2 + $0x26c] sm:$0xf]
    %v252 = vld [vmem:[#allocation2 + $0x270] sm:$0xff]
    %v253 = vld [vmem:[#allocation2 + $0x278] sm:$0xf]
    %v254 = vld [vmem:[#allocation2 + $0x27c] sm:$0xff]
    %v255 = vld [vmem:[#allocation2 + $0x284] sm:$0xf]
    %v256 = vld [vmem:[#allocation2 + $0x288] sm:$0xff]
    %v257 = vld [vmem:[#allocation2 + $0x290] sm:$0xf]
    %v258 = vld [vmem:[#allocation2 + $0x294] sm:$0xff]
    %v259 = vld [vmem:[#allocation2 + $0x29c] sm:$0xf]
    %v260 = vld [vmem:[#allocation2 + $0x2a0] sm:$0xff]
    %v261 = vld [vmem:[#allocation2 + $0x2a8] sm:$0xf]
    %v262 = vld [vmem:[#allocation2 + $0x2ac] sm:$0xff]
    %v263 = vld [vmem:[#allocation2 + $0x2b4] sm:$0xf]
    %v264 = vld [vmem:[#allocation2 + $0x2b8] sm:$0xff]
    %v265 = vld [vmem:[#allocation2 + $0x2c0] sm:$0xf]
    %v266 = vld [vmem:[#allocation2 + $0x2c4] sm:$0xff]
    %v267 = vld [vmem:[#allocation2 + $0x2cc] sm:$0xf]
    %v268 = vld [vmem:[#allocation2 + $0x2d0] sm:$0xff]
    %v269 = vld [vmem:[#allocation2 + $0x2d8] sm:$0xf]
    %v270 = vld [vmem:[#allocation2 + $0x2dc] sm:$0xff]
    %v271 = vld [vmem:[#allocation2 + $0x2e4] sm:$0xf]
    %v272 = vld [vmem:[#allocation2 + $0x2e8] sm:$0xff]
    %v273 = vld [vmem:[#allocation2 + $0x2f0] sm:$0xf]
    %v274 = vld [vmem:[#allocation2 + $0x2f4] sm:$0xff]
    %v275 = vld [vmem:[#allocation2 + $0x2fc] sm:$0xf]
    %v276 = vld [vmem:[#allocation2 + $0x300] sm:$0xff]
    %v277 = vld [vmem:[#allocation2 + $0x308] sm:$0xf]
    %v278 = vld [vmem:[#allocation2 + $0x30c] sm:$0xff]
    %v279 = vld [vmem:[#allocation2 + $0x314] sm:$0xf]
    %v280 = vld [vmem:[#allocation2 + $0x318] sm:$0xff]
    %v281 = vld [vmem:[#allocation2 + $0x320] sm:$0xf]
    %v282 = vld [vmem:[#allocation2 + $0x324] sm:$0xff]
    %v283 = vld [vmem:[#allocation2 + $0x32c] sm:$0xf]
    %v284 = vld [vmem:[#allocation2 + $0x330] sm:$0xff]
    %v285 = vld [vmem:[#allocation2 + $0x338] sm:$0xf]
    %v286 = vld [vmem:[#allocation2 + $0x33c] sm:$0xff]
    %v287 = vld [vmem:[#allocation2 + $0x344] sm:$0xf]
    %v288 = vld [vmem:[#allocation2 + $0x348] sm:$0xff]
    %v289 = vld [vmem:[#allocation2 + $0x350] sm:$0xf]
    %v290 = vld [vmem:[#allocation2 + $0x354] sm:$0xff]
    %v291 = vld [vmem:[#allocation2 + $0x35c] sm:$0xf]
    %v292 = vld [vmem:[#allocation2 + $0x360] sm:$0xff]
    %v293 = vld [vmem:[#allocation2 + $0x368] sm:$0xf]
    %v294 = vld [vmem:[#allocation2 + $0x36c] sm:$0xff]
    %v295 = vld [vmem:[#allocation2 + $0x374] sm:$0xf]
    %v296 = vld [vmem:[#allocation2 + $0x378] sm:$0xff]
    %v297 = vld [vmem:[#allocation2 + $0x380] sm:$0xf]
    %v298 = vld [vmem:[#allocation2 + $0x384] sm:$0xff]
    %v299 = vld [vmem:[#allocation2 + $0x38c] sm:$0xf]
    %v300 = vld [vmem:[#allocation2 + $0x390] sm:$0xff]
    %v301 = vld [vmem:[#allocation2 + $0x398] sm:$0xf]
    %v302 = vld [vmem:[#allocation2 + $0x39c] sm:$0xff]
    %v303 = vld [vmem:[#allocation2 + $0x3a4] sm:$0xf]
    %v304 = vld [vmem:[#allocation2 + $0x3a8] sm:$0xff]
    %v305 = vld [vmem:[#allocation2 + $0x3b0] sm:$0xf]
    %v306 = vld [vmem:[#allocation2 + $0x3b4] sm:$0xff]
    %v307 = vld [vmem:[#allocation2 + $0x3bc] sm:$0xf]
    %v308 = vld [vmem:[#allocation2 + $0x3c0] sm:$0xff]
    %v309 = vld [vmem:[#allocation2 + $0x3c8] sm:$0xf]
    %v310 = vld [vmem:[#allocation2 + $0x3cc] sm:$0xff]
    %v311 = vld [vmem:[#allocation2 + $0x3d4] sm:$0xf]
    %v312 = vld [vmem:[#allocation2 + $0x3d8] sm:$0xff]
    %v313 = vld [vmem:[#allocation2 + $0x3e0] sm:$0xf]
    %v314 = vld [vmem:[#allocation2 + $0x3e4] sm:$0xff]
    %v315 = vld [vmem:[#allocation2 + $0x3ec] sm:$0xf]
    %v316 = vld [vmem:[#allocation2 + $0x3f0] sm:$0xff]
    %v317 = vld [vmem:[#allocation2 + $0x3f8] sm:$0xf]
    %v318 = vld [vmem:[#allocation2 + $0x3fc] sm:$0xff]
    %v319 = vld [vmem:[#allocation2 + $0x404] sm:$0xf]
    %v320 = vld [vmem:[#allocation2 + $0x408] sm:$0xff]
    %v321 = vld [vmem:[#allocation2 + $0x410] sm:$0xf]
    %v322 = vld [vmem:[#allocation2 + $0x414] sm:$0xff]
    %v323 = vld [vmem:[#allocation2 + $0x41c] sm:$0xf]
    %v324 = vld [vmem:[#allocation2 + $0x420] sm:$0xff]
    %v325 = vld [vmem:[#allocation2 + $0x428] sm:$0xf]
    %v326 = vld [vmem:[#allocation2 + $0x42c] sm:$0xff]
    %v327 = vld [vmem:[#allocation2 + $0x434] sm:$0xf]
    %v328 = vld [vmem:[#allocation2 + $0x438] sm:$0xff]
    %v329 = vld [vmem:[#allocation2 + $0x440] sm:$0xf]
    %v330 = vld [vmem:[#allocation2 + $0x444] sm:$0xff]
    %v331 = vld [vmem:[#allocation2 + $0x44c] sm:$0xf]
    %v332 = vld [vmem:[#allocation2 + $0x450] sm:$0xff]
    %v333 = vld [vmem:[#allocation2 + $0x458] sm:$0xf]
    %v334 = vld [vmem:[#allocation2 + $0x45c] sm:$0xff]
    %v335 = vld [vmem:[#allocation2 + $0x464] sm:$0xf]
    %v336 = vld [vmem:[#allocation2 + $0x468] sm:$0xff]
    %v337 = vld [vmem:[#allocation2 + $0x470] sm:$0xf]
    %v338 = vld [vmem:[#allocation2 + $0x474] sm:$0xff]
    %v339 = vld [vmem:[#allocation2 + $0x47c] sm:$0xf]
    %v340 = vld [vmem:[#allocation2 + $0x480] sm:$0xff]
    %v341 = vld [vmem:[#allocation2 + $0x488] sm:$0xf]
    %v342 = vld [vmem:[#allocation2 + $0x48c] sm:$0xff]
    %v343 = vld [vmem:[#allocation2 + $0x494] sm:$0xf]
    %v344 = vld [vmem:[%s8] sm:$0x7]
    %v346 = vlaneseq
    %v347 = vshrl.u32 %v346, 7
    %v348 = vsub.s32 0, %v347
    %v349 = vrot.slane %v344, %v348
    %v350 = vlaneseq
    %v351 = vshrl.u32 %v350, 7
    %v352 = vsub.s32 1, %v351
    %v353 = vrot.slane %v344, %v352
    %v354 = vlaneseq
    %v355 = vshrl.u32 %v354, 7
    %v356 = vsub.s32 2, %v355
    %v357 = vrot.slane %v344, %v356
    %v369 = vunpack.c.l.b16 %v140
    %v370 = vunpack.c.h.b16 %v140
    %v371 = vunpack.c.l.b16 %v141
    %v372 = vunpack.c.h.b16 %v141
    %v373 = vunpack.c.l.b16 %v142
    %v374 = vunpack.c.h.b16 %v142
    %v375 = vunpack.c.l.b16 %v143
    %v376 = vunpack.c.l.b16 %v144
    %v377 = vunpack.c.h.b16 %v144
    %v378 = vunpack.c.l.b16 %v145
    %v379 = vunpack.c.h.b16 %v145
    %v380 = vunpack.c.l.b16 %v146
    %v381 = vunpack.c.h.b16 %v146
    %v382 = vunpack.c.l.b16 %v147
    %v383 = vpack.c.b16 %v376, %v369
    %v384 = vpack.c.b16 %v377, %v370
    %v385 = vpack.c.b16 %v378, %v371
    %v386 = vpack.c.b16 %v379, %v372
    %v387 = vpack.c.b16 %v380, %v373
    %v388 = vpack.c.b16 %v381, %v374
    %v389 = vpack.c.b16 %v382, %v375
    %v592 = vunpack.c.l.b16 %v148
    %v593 = vunpack.c.h.b16 %v148
    %v594 = vunpack.c.l.b16 %v149
    %v595 = vunpack.c.l.b16 %v150
    %v596 = vunpack.c.h.b16 %v150
    %v597 = vunpack.c.l.b16 %v151
    %v598 = vunpack.c.l.b16 %v152
    %v599 = vunpack.c.h.b16 %v152
    %v600 = vunpack.c.l.b16 %v153
    %v601 = vunpack.c.l.b16 %v154
    %v602 = vunpack.c.h.b16 %v154
    %v603 = vunpack.c.l.b16 %v155
    %v604 = vunpack.c.l.b16 %v156
    %v605 = vunpack.c.h.b16 %v156
    %v606 = vunpack.c.l.b16 %v157
    %v607 = vunpack.c.l.b16 %v158
    %v608 = vunpack.c.h.b16 %v158
    %v609 = vunpack.c.l.b16 %v159
    %v610 = vunpack.c.l.b16 %v160
    %v611 = vunpack.c.h.b16 %v160
    %v612 = vunpack.c.l.b16 %v161
    %v613 = vunpack.c.l.b16 %v162
    %v614 = vunpack.c.h.b16 %v162
    %v615 = vunpack.c.l.b16 %v163
    %v616 = vunpack.c.l.b16 %v164
    %v617 = vunpack.c.h.b16 %v164
    %v618 = vunpack.c.l.b16 %v165
    %v619 = vunpack.c.l.b16 %v166
    %v620 = vunpack.c.h.b16 %v166
    %v621 = vunpack.c.l.b16 %v167
    %v622 = vunpack.c.l.b16 %v168
    %v623 = vunpack.c.h.b16 %v168
    %v624 = vunpack.c.l.b16 %v169
    %v625 = vunpack.c.l.b16 %v170
    %v626 = vunpack.c.h.b16 %v170
    %v627 = vunpack.c.l.b16 %v171
    %v628 = vunpack.c.l.b16 %v172
    %v629 = vunpack.c.h.b16 %v172
    %v630 = vunpack.c.l.b16 %v173
    %v631 = vunpack.c.l.b16 %v174
    %v632 = vunpack.c.h.b16 %v174
    %v633 = vunpack.c.l.b16 %v175
    %v634 = vunpack.c.l.b16 %v176
    %v635 = vunpack.c.h.b16 %v176
    %v636 = vunpack.c.l.b16 %v177
    %v637 = vunpack.c.l.b16 %v178
    %v638 = vunpack.c.h.b16 %v178
    %v639 = vunpack.c.l.b16 %v179
    %v640 = vunpack.c.l.b16 %v180
    %v641 = vunpack.c.h.b16 %v180
    %v642 = vunpack.c.l.b16 %v181
    %v643 = vunpack.c.l.b16 %v182
    %v644 = vunpack.c.h.b16 %v182
    %v645 = vunpack.c.l.b16 %v183
    %v646 = vunpack.c.l.b16 %v184
    %v647 = vunpack.c.h.b16 %v184
    %v648 = vunpack.c.l.b16 %v185
    %v649 = vunpack.c.l.b16 %v186
    %v650 = vunpack.c.h.b16 %v186
    %v651 = vunpack.c.l.b16 %v187
    %v652 = vunpack.c.l.b16 %v188
    %v653 = vunpack.c.h.b16 %v188
    %v654 = vunpack.c.l.b16 %v189
    %v655 = vunpack.c.l.b16 %v190
    %v656 = vunpack.c.h.b16 %v190
    %v657 = vunpack.c.l.b16 %v191
    %v658 = vunpack.c.l.b16 %v192
    %v659 = vunpack.c.h.b16 %v192
    %v660 = vunpack.c.l.b16 %v193
    %v661 = vunpack.c.l.b16 %v194
    %v662 = vunpack.c.h.b16 %v194
    %v663 = vunpack.c.l.b16 %v195
    %v664 = vunpack.c.l.b16 %v196
    %v665 = vunpack.c.h.b16 %v196
    %v666 = vunpack.c.l.b16 %v197
    %v667 = vunpack.c.l.b16 %v198
    %v668 = vunpack.c.h.b16 %v198
    %v669 = vunpack.c.l.b16 %v199
    %v670 = vunpack.c.l.b16 %v200
    %v671 = vunpack.c.h.b16 %v200
    %v672 = vunpack.c.l.b16 %v201
    %v673 = vunpack.c.l.b16 %v202
    %v674 = vunpack.c.h.b16 %v202
    %v675 = vunpack.c.l.b16 %v203
    %v676 = vunpack.c.l.b16 %v204
    %v677 = vunpack.c.h.b16 %v204
    %v678 = vunpack.c.l.b16 %v205
    %v679 = vunpack.c.l.b16 %v206
    %v680 = vunpack.c.h.b16 %v206
    %v681 = vunpack.c.l.b16 %v207
    %v682 = vunpack.c.l.b16 %v208
    %v683 = vunpack.c.h.b16 %v208
    %v684 = vunpack.c.l.b16 %v209
    %v685 = vunpack.c.l.b16 %v210
    %v686 = vunpack.c.h.b16 %v210
    %v687 = vunpack.c.l.b16 %v211
    %v688 = vunpack.c.l.b16 %v212
    %v689 = vunpack.c.h.b16 %v212
    %v690 = vunpack.c.l.b16 %v213
    %v691 = vunpack.c.l.b16 %v214
    %v692 = vunpack.c.h.b16 %v214
    %v693 = vunpack.c.l.b16 %v215
    %v694 = vunpack.c.l.b16 %v216
    %v695 = vunpack.c.h.b16 %v216
    %v696 = vunpack.c.l.b16 %v217
    %v697 = vunpack.c.l.b16 %v218
    %v698 = vunpack.c.h.b16 %v218
    %v699 = vunpack.c.l.b16 %v219
    %v700 = vunpack.c.l.b16 %v220
    %v701 = vunpack.c.h.b16 %v220
    %v702 = vunpack.c.l.b16 %v221
    %v703 = vunpack.c.l.b16 %v222
    %v704 = vunpack.c.h.b16 %v222
    %v705 = vunpack.c.l.b16 %v223
    %v706 = vunpack.c.l.b16 %v224
    %v707 = vunpack.c.h.b16 %v224
    %v708 = vunpack.c.l.b16 %v225
    %v709 = vunpack.c.l.b16 %v226
    %v710 = vunpack.c.h.b16 %v226
    %v711 = vunpack.c.l.b16 %v227
    %v712 = vunpack.c.l.b16 %v228
    %v713 = vunpack.c.h.b16 %v228
    %v714 = vunpack.c.l.b16 %v229
    %v715 = vunpack.c.l.b16 %v230
    %v716 = vunpack.c.h.b16 %v230
    %v717 = vunpack.c.l.b16 %v231
    %v718 = vunpack.c.l.b16 %v232
    %v719 = vunpack.c.h.b16 %v232
    %v720 = vunpack.c.l.b16 %v233
    %v721 = vunpack.c.l.b16 %v234
    %v722 = vunpack.c.h.b16 %v234
    %v723 = vunpack.c.l.b16 %v235
    %v724 = vunpack.c.l.b16 %v236
    %v725 = vunpack.c.h.b16 %v236
    %v726 = vunpack.c.l.b16 %v237
    %v727 = vunpack.c.l.b16 %v238
    %v728 = vunpack.c.h.b16 %v238
    %v729 = vunpack.c.l.b16 %v239
    %v730 = vunpack.c.l.b16 %v240
    %v731 = vunpack.c.h.b16 %v240
    %v732 = vunpack.c.l.b16 %v241
    %v733 = vunpack.c.l.b16 %v242
    %v734 = vunpack.c.h.b16 %v242
    %v735 = vunpack.c.l.b16 %v243
    %v736 = vunpack.c.l.b16 %v244
    %v737 = vunpack.c.h.b16 %v244
    %v738 = vunpack.c.l.b16 %v245
    %v739 = vunpack.c.l.b16 %v246
    %v740 = vunpack.c.h.b16 %v246
    %v741 = vunpack.c.l.b16 %v247
    %v742 = vunpack.c.l.b16 %v248
    %v743 = vunpack.c.h.b16 %v248
    %v744 = vunpack.c.l.b16 %v249
    %v745 = vunpack.c.l.b16 %v250
    %v746 = vunpack.c.h.b16 %v250
    %v747 = vunpack.c.l.b16 %v251
    %v748 = vunpack.c.l.b16 %v252
    %v749 = vunpack.c.h.b16 %v252
    %v750 = vunpack.c.l.b16 %v253
    %v751 = vunpack.c.l.b16 %v254
    %v752 = vunpack.c.h.b16 %v254
    %v753 = vunpack.c.l.b16 %v255
    %v754 = vunpack.c.l.b16 %v256
    %v755 = vunpack.c.h.b16 %v256
    %v756 = vunpack.c.l.b16 %v257
    %v757 = vunpack.c.l.b16 %v258
    %v758 = vunpack.c.h.b16 %v258
    %v759 = vunpack.c.l.b16 %v259
    %v760 = vunpack.c.l.b16 %v260
    %v761 = vunpack.c.h.b16 %v260
    %v762 = vunpack.c.l.b16 %v261
    %v763 = vunpack.c.l.b16 %v262
    %v764 = vunpack.c.h.b16 %v262
    %v765 = vunpack.c.l.b16 %v263
    %v766 = vunpack.c.l.b16 %v264
    %v767 = vunpack.c.h.b16 %v264
    %v768 = vunpack.c.l.b16 %v265
    %v769 = vunpack.c.l.b16 %v266
    %v770 = vunpack.c.h.b16 %v266
    %v771 = vunpack.c.l.b16 %v267
    %v772 = vunpack.c.l.b16 %v268
    %v773 = vunpack.c.h.b16 %v268
    %v774 = vunpack.c.l.b16 %v269
    %v775 = vunpack.c.l.b16 %v270
    %v776 = vunpack.c.h.b16 %v270
    %v777 = vunpack.c.l.b16 %v271
    %v778 = vunpack.c.l.b16 %v272
    %v779 = vunpack.c.h.b16 %v272
    %v780 = vunpack.c.l.b16 %v273
    %v781 = vunpack.c.l.b16 %v274
    %v782 = vunpack.c.h.b16 %v274
    %v783 = vunpack.c.l.b16 %v275
    %v784 = vunpack.c.l.b16 %v276
    %v785 = vunpack.c.h.b16 %v276
    %v786 = vunpack.c.l.b16 %v277
    %v787 = vunpack.c.l.b16 %v278
    %v788 = vunpack.c.h.b16 %v278
    %v789 = vunpack.c.l.b16 %v279
    %v790 = vunpack.c.l.b16 %v280
    %v791 = vunpack.c.h.b16 %v280
    %v792 = vunpack.c.l.b16 %v281
    %v793 = vunpack.c.l.b16 %v282
    %v794 = vunpack.c.h.b16 %v282
    %v795 = vunpack.c.l.b16 %v283
    %v796 = vunpack.c.l.b16 %v284
    %v797 = vunpack.c.h.b16 %v284
    %v798 = vunpack.c.l.b16 %v285
    %v799 = vunpack.c.l.b16 %v286
    %v800 = vunpack.c.h.b16 %v286
    %v801 = vunpack.c.l.b16 %v287
    %v802 = vunpack.c.l.b16 %v288
    %v803 = vunpack.c.h.b16 %v288
    %v804 = vunpack.c.l.b16 %v289
    %v805 = vunpack.c.l.b16 %v290
    %v806 = vunpack.c.h.b16 %v290
    %v807 = vunpack.c.l.b16 %v291
    %v808 = vunpack.c.l.b16 %v292
    %v809 = vunpack.c.h.b16 %v292
    %v810 = vunpack.c.l.b16 %v293
    %v811 = vunpack.c.l.b16 %v294
    %v812 = vunpack.c.h.b16 %v294
    %v813 = vunpack.c.l.b16 %v295
    %v814 = vunpack.c.l.b16 %v296
    %v815 = vunpack.c.h.b16 %v296
    %v816 = vunpack.c.l.b16 %v297
    %v817 = vunpack.c.l.b16 %v298
    %v818 = vunpack.c.h.b16 %v298
    %v819 = vunpack.c.l.b16 %v299
    %v820 = vunpack.c.l.b16 %v300
    %v821 = vunpack.c.h.b16 %v300
    %v822 = vunpack.c.l.b16 %v301
    %v823 = vunpack.c.l.b16 %v302
    %v824 = vunpack.c.h.b16 %v302
    %v825 = vunpack.c.l.b16 %v303
    %v826 = vunpack.c.l.b16 %v304
    %v827 = vunpack.c.h.b16 %v304
    %v828 = vunpack.c.l.b16 %v305
    %v829 = vunpack.c.l.b16 %v306
    %v830 = vunpack.c.h.b16 %v306
    %v831 = vunpack.c.l.b16 %v307
    %v832 = vunpack.c.l.b16 %v308
    %v833 = vunpack.c.h.b16 %v308
    %v834 = vunpack.c.l.b16 %v309
    %v835 = vunpack.c.l.b16 %v310
    %v836 = vunpack.c.h.b16 %v310
    %v837 = vunpack.c.l.b16 %v311
    %v838 = vunpack.c.l.b16 %v312
    %v839 = vunpack.c.h.b16 %v312
    %v840 = vunpack.c.l.b16 %v313
    %v841 = vunpack.c.l.b16 %v314
    %v842 = vunpack.c.h.b16 %v314
    %v843 = vunpack.c.l.b16 %v315
    %v844 = vunpack.c.l.b16 %v316
    %v845 = vunpack.c.h.b16 %v316
    %v846 = vunpack.c.l.b16 %v317
    %v847 = vunpack.c.l.b16 %v318
    %v848 = vunpack.c.h.b16 %v318
    %v849 = vunpack.c.l.b16 %v319
    %v850 = vunpack.c.l.b16 %v320
    %v851 = vunpack.c.h.b16 %v320
    %v852 = vunpack.c.l.b16 %v321
    %v853 = vunpack.c.l.b16 %v322
    %v854 = vunpack.c.h.b16 %v322
    %v855 = vunpack.c.l.b16 %v323
    %v856 = vunpack.c.l.b16 %v324
    %v857 = vunpack.c.h.b16 %v324
    %v858 = vunpack.c.l.b16 %v325
    %v859 = vunpack.c.l.b16 %v326
    %v860 = vunpack.c.h.b16 %v326
    %v861 = vunpack.c.l.b16 %v327
    %v862 = vunpack.c.l.b16 %v328
    %v863 = vunpack.c.h.b16 %v328
    %v864 = vunpack.c.l.b16 %v329
    %v865 = vunpack.c.l.b16 %v330
    %v866 = vunpack.c.h.b16 %v330
    %v867 = vunpack.c.l.b16 %v331
    %v868 = vunpack.c.l.b16 %v332
    %v869 = vunpack.c.h.b16 %v332
    %v870 = vunpack.c.l.b16 %v333
    %v871 = vunpack.c.l.b16 %v334
    %v872 = vunpack.c.h.b16 %v334
    %v873 = vunpack.c.l.b16 %v335
    %v874 = vunpack.c.l.b16 %v336
    %v875 = vunpack.c.h.b16 %v336
    %v876 = vunpack.c.l.b16 %v337
    %v877 = vunpack.c.l.b16 %v338
    %v878 = vunpack.c.h.b16 %v338
    %v879 = vunpack.c.l.b16 %v339
    %v880 = vunpack.c.l.b16 %v340
    %v881 = vunpack.c.h.b16 %v340
    %v882 = vunpack.c.l.b16 %v341
    %v883 = vunpack.c.l.b16 %v342
    %v884 = vunpack.c.h.b16 %v342
    %v885 = vunpack.c.l.b16 %v343
    %v886 = vpack.c.b16 %v595, %v592
    %v887 = vpack.c.b16 %v596, %v593
    %v888 = vpack.c.b16 %v597, %v594
    %v889 = vpack.c.b16 %v601, %v598
    %v890 = vpack.c.b16 %v602, %v599
    %v891 = vpack.c.b16 %v603, %v600
    %v892 = vpack.c.b16 %v607, %v604
    %v893 = vpack.c.b16 %v608, %v605
    %v894 = vpack.c.b16 %v609, %v606
    %v895 = vpack.c.b16 %v613, %v610
    %v896 = vpack.c.b16 %v614, %v611
    %v897 = vpack.c.b16 %v615, %v612
    %v898 = vpack.c.b16 %v619, %v616
    %v899 = vpack.c.b16 %v620, %v617
    %v900 = vpack.c.b16 %v621, %v618
    %v901 = vpack.c.b16 %v625, %v622
    %v902 = vpack.c.b16 %v626, %v623
    %v903 = vpack.c.b16 %v627, %v624
    %v904 = vpack.c.b16 %v631, %v628
    %v905 = vpack.c.b16 %v632, %v629
    %v906 = vpack.c.b16 %v633, %v630
    %v907 = vpack.c.b16 %v637, %v634
    %v908 = vpack.c.b16 %v638, %v635
    %v909 = vpack.c.b16 %v639, %v636
    %v910 = vpack.c.b16 %v643, %v640
    %v911 = vpack.c.b16 %v644, %v641
    %v912 = vpack.c.b16 %v645, %v642
    %v913 = vpack.c.b16 %v649, %v646
    %v914 = vpack.c.b16 %v650, %v647
    %v915 = vpack.c.b16 %v651, %v648
    %v916 = vpack.c.b16 %v655, %v652
    %v917 = vpack.c.b16 %v656, %v653
    %v918 = vpack.c.b16 %v657, %v654
    %v919 = vpack.c.b16 %v661, %v658
    %v920 = vpack.c.b16 %v662, %v659
    %v921 = vpack.c.b16 %v663, %v660
    %v922 = vpack.c.b16 %v667, %v664
    %v923 = vpack.c.b16 %v668, %v665
    %v924 = vpack.c.b16 %v669, %v666
    %v925 = vpack.c.b16 %v673, %v670
    %v926 = vpack.c.b16 %v674, %v671
    %v927 = vpack.c.b16 %v675, %v672
    %v928 = vpack.c.b16 %v679, %v676
    %v929 = vpack.c.b16 %v680, %v677
    %v930 = vpack.c.b16 %v681, %v678
    %v931 = vpack.c.b16 %v685, %v682
    %v932 = vpack.c.b16 %v686, %v683
    %v933 = vpack.c.b16 %v687, %v684
    %v934 = vpack.c.b16 %v691, %v688
    %v935 = vpack.c.b16 %v692, %v689
    %v936 = vpack.c.b16 %v693, %v690
    %v937 = vpack.c.b16 %v697, %v694
    %v938 = vpack.c.b16 %v698, %v695
    %v939 = vpack.c.b16 %v699, %v696
    %v940 = vpack.c.b16 %v703, %v700
    %v941 = vpack.c.b16 %v704, %v701
    %v942 = vpack.c.b16 %v705, %v702
    %v943 = vpack.c.b16 %v709, %v706
    %v944 = vpack.c.b16 %v710, %v707
    %v945 = vpack.c.b16 %v711, %v708
    %v946 = vpack.c.b16 %v715, %v712
    %v947 = vpack.c.b16 %v716, %v713
    %v948 = vpack.c.b16 %v717, %v714
    %v949 = vpack.c.b16 %v721, %v718
    %v950 = vpack.c.b16 %v722, %v719
    %v951 = vpack.c.b16 %v723, %v720
    %v952 = vpack.c.b16 %v727, %v724
    %v953 = vpack.c.b16 %v728, %v725
    %v954 = vpack.c.b16 %v729, %v726
    %v955 = vpack.c.b16 %v733, %v730
    %v956 = vpack.c.b16 %v734, %v731
    %v957 = vpack.c.b16 %v735, %v732
    %v958 = vpack.c.b16 %v739, %v736
    %v959 = vpack.c.b16 %v740, %v737
    %v960 = vpack.c.b16 %v741, %v738
    %v961 = vpack.c.b16 %v745, %v742
    %v962 = vpack.c.b16 %v746, %v743
    %v963 = vpack.c.b16 %v747, %v744
    %v964 = vpack.c.b16 %v751, %v748
    %v965 = vpack.c.b16 %v752, %v749
    %v966 = vpack.c.b16 %v753, %v750
    %v967 = vpack.c.b16 %v757, %v754
    %v968 = vpack.c.b16 %v758, %v755
    %v969 = vpack.c.b16 %v759, %v756
    %v970 = vpack.c.b16 %v763, %v760
    %v971 = vpack.c.b16 %v764, %v761
    %v972 = vpack.c.b16 %v765, %v762
    %v973 = vpack.c.b16 %v769, %v766
    %v974 = vpack.c.b16 %v770, %v767
    %v975 = vpack.c.b16 %v771, %v768
    %v976 = vpack.c.b16 %v775, %v772
    %v977 = vpack.c.b16 %v776, %v773
    %v978 = vpack.c.b16 %v777, %v774
    %v979 = vpack.c.b16 %v781, %v778
    %v980 = vpack.c.b16 %v782, %v779
    %v981 = vpack.c.b16 %v783, %v780
    %v982 = vpack.c.b16 %v787, %v784
    %v983 = vpack.c.b16 %v788, %v785
    %v984 = vpack.c.b16 %v789, %v786
    %v985 = vpack.c.b16 %v793, %v790
    %v986 = vpack.c.b16 %v794, %v791
    %v987 = vpack.c.b16 %v795, %v792
    %v988 = vpack.c.b16 %v799, %v796
    %v989 = vpack.c.b16 %v800, %v797
    %v990 = vpack.c.b16 %v801, %v798
    %v991 = vpack.c.b16 %v805, %v802
    %v992 = vpack.c.b16 %v806, %v803
    %v993 = vpack.c.b16 %v807, %v804
    %v994 = vpack.c.b16 %v811, %v808
    %v995 = vpack.c.b16 %v812, %v809
    %v996 = vpack.c.b16 %v813, %v810
    %v997 = vpack.c.b16 %v817, %v814
    %v998 = vpack.c.b16 %v818, %v815
    %v999 = vpack.c.b16 %v819, %v816
    %v1000 = vpack.c.b16 %v823, %v820
    %v1001 = vpack.c.b16 %v824, %v821
    %v1002 = vpack.c.b16 %v825, %v822
    %v1003 = vpack.c.b16 %v829, %v826
    %v1004 = vpack.c.b16 %v830, %v827
    %v1005 = vpack.c.b16 %v831, %v828
    %v1006 = vpack.c.b16 %v835, %v832
    %v1007 = vpack.c.b16 %v836, %v833
    %v1008 = vpack.c.b16 %v837, %v834
    %v1009 = vpack.c.b16 %v841, %v838
    %v1010 = vpack.c.b16 %v842, %v839
    %v1011 = vpack.c.b16 %v843, %v840
    %v1012 = vpack.c.b16 %v847, %v844
    %v1013 = vpack.c.b16 %v848, %v845
    %v1014 = vpack.c.b16 %v849, %v846
    %v1015 = vpack.c.b16 %v853, %v850
    %v1016 = vpack.c.b16 %v854, %v851
    %v1017 = vpack.c.b16 %v855, %v852
    %v1018 = vpack.c.b16 %v859, %v856
    %v1019 = vpack.c.b16 %v860, %v857
    %v1020 = vpack.c.b16 %v861, %v858
    %v1021 = vpack.c.b16 %v865, %v862
    %v1022 = vpack.c.b16 %v866, %v863
    %v1023 = vpack.c.b16 %v867, %v864
    %v1024 = vpack.c.b16 %v871, %v868
    %v1025 = vpack.c.b16 %v872, %v869
    %v1026 = vpack.c.b16 %v873, %v870
    %v1027 = vpack.c.b16 %v877, %v874
    %v1028 = vpack.c.b16 %v878, %v875
    %v1029 = vpack.c.b16 %v879, %v876
    %v1030 = vpack.c.b16 %v883, %v880
    %v1031 = vpack.c.b16 %v884, %v881
    %v1032 = vpack.c.b16 %v885, %v882
    %vm1180 = vcmask 130048
    %v1182 = vsel %vm1180, %v389, 0
    %1184 = vmatprep.subr.bf16.mxu0 %v887
    %1185 = vmatpush1.bf16.msra.mxu0 %v886
    %1186 = vmatprep.subr.bf16.mxu0 %v890
    %1187 = vmatpush1.bf16.msra.mxu0 %v889
    %1188 = vmatprep.subr.bf16.mxu0 %v893
    %1189 = vmatpush1.bf16.msra.mxu0 %v892
    %1190 = vmatprep.subr.bf16.mxu0 %v896
    %1191 = vmatpush1.bf16.msra.mxu0 %v895
    %1192 = vmatprep.subr.bf16.mxu0 %v899
    %1193 = vmatpush1.bf16.msra.mxu0 %v898
    %1194 = vmatprep.subr.bf16.mxu0 %v902
    %1195 = vmatpush1.bf16.msra.mxu0 %v901
    %1196 = vmatprep.subr.bf16.mxu0 %v905
    %1197 = vmatpush1.bf16.msra.mxu0 %v904
    %1198 = vmatprep.subr.bf16.mxu0 %v908
    %1199 = vmatpush1.bf16.msra.mxu0 %v907
    %1200 = vmatprep.subr.bf16.mxu0 %v911
    %1201 = vmatpush1.bf16.msra.mxu0 %v910
    %1202 = vmatprep.subr.bf16.mxu0 %v914
    %1203 = vmatpush1.bf16.msra.mxu0 %v913
    %1204 = vmatprep.subr.bf16.mxu0 %v917
    %1205 = vmatpush1.bf16.msra.mxu0 %v916
    %1206 = vmatprep.subr.bf16.mxu0 %v920
    %1207 = vmatpush1.bf16.msra.mxu0 %v919
    %1208 = vmatprep.subr.bf16.mxu0 %v923
    %1209 = vmatpush1.bf16.msra.mxu0 %v922
    %1210 = vmatprep.subr.bf16.mxu0 %v926
    %1211 = vmatpush1.bf16.msra.mxu0 %v925
    %1212 = vmatprep.subr.bf16.mxu0 %v929
    %1213 = vmatpush1.bf16.msra.mxu0 %v928
    %1214 = vmatprep.subr.bf16.mxu0 %v932
    %1215 = vmatpush1.bf16.msra.mxu0 %v931
    %1216 = vmatprep.mubr.bf16.mxu0 %v384
    %1217 = vmatmul.mubr.bf16.gmra.mrb[0].mxu0 %v383
    %v1218 = vpop.f32.mrb[0].mxu0
    %v1219 = vadd.f32 %v349, %v1218
    %v1220 = vpop.f32.mrb[0].mxu0
    %v1221 = vadd.f32 %v353, %v1220
    %v1222 = vpop.f32.mrb[0].mxu0
    %v1223 = vadd.f32 %v349, %v1222
    %v1224 = vpop.f32.mrb[0].mxu0
    %v1225 = vadd.f32 %v353, %v1224
    %1226 = vdwg.mxu0
    %1227 = vmatprep.subr.bf16.mxu0 %v935
    %1228 = vmatpush1.bf16.msra.mxu0 %v934
    %1229 = vmatprep.subr.bf16.mxu0 %v938
    %1230 = vmatpush1.bf16.msra.mxu0 %v937
    %1231 = vmatprep.subr.bf16.mxu0 %v941
    %1232 = vmatpush1.bf16.msra.mxu0 %v940
    %1233 = vmatprep.subr.bf16.mxu0 %v944
    %1234 = vmatpush1.bf16.msra.mxu0 %v943
    %1235 = vmatprep.subr.bf16.mxu0 %v947
    %1236 = vmatpush1.bf16.msra.mxu0 %v946
    %1237 = vmatprep.subr.bf16.mxu0 %v950
    %1238 = vmatpush1.bf16.msra.mxu0 %v949
    %1239 = vmatprep.subr.bf16.mxu0 %v953
    %1240 = vmatpush1.bf16.msra.mxu0 %v952
    %1241 = vmatprep.subr.bf16.mxu0 %v956
    %1242 = vmatpush1.bf16.msra.mxu0 %v955
    %1243 = vmatprep.subr.bf16.mxu0 %v959
    %1244 = vmatpush1.bf16.msra.mxu0 %v958
    %1245 = vmatprep.subr.bf16.mxu0 %v962
    %1246 = vmatpush1.bf16.msra.mxu0 %v961
    %1247 = vmatprep.subr.bf16.mxu0 %v965
    %1248 = vmatpush1.bf16.msra.mxu0 %v964
    %1249 = vmatprep.subr.bf16.mxu0 %v968
    %1250 = vmatpush1.bf16.msra.mxu0 %v967
    %1251 = vmatprep.subr.bf16.mxu0 %v971
    %1252 = vmatpush1.bf16.msra.mxu0 %v970
    %1253 = vmatprep.subr.bf16.mxu0 %v974
    %1254 = vmatpush1.bf16.msra.mxu0 %v973
    %1255 = vmatprep.subr.bf16.mxu0 %v977
    %1256 = vmatpush1.bf16.msra.mxu0 %v976
    %1257 = vmatprep.subr.bf16.mxu0 %v980
    %1258 = vmatpush1.bf16.msra.mxu0 %v979
    %1259 = vmatprep.mubr.bf16.mxu0 %v386
    %1260 = vmatmul.mubr.bf16.gmra.mrb[0].mxu0 %v385
    %v1261 = vpop.f32.mrb[0].mxu0
    %v1262 = vadd.f32 %v1219, %v1261
    %v1263 = vpop.f32.mrb[0].mxu0
    %v1264 = vadd.f32 %v1221, %v1263
    %v1265 = vpop.f32.mrb[0].mxu0
    %v1266 = vadd.f32 %v1223, %v1265
    %v1267 = vpop.f32.mrb[0].mxu0
    %v1268 = vadd.f32 %v1225, %v1267
    %1269 = vdwg.mxu0
    %1270 = vmatprep.subr.bf16.mxu0 %v983
    %1271 = vmatpush1.bf16.msra.mxu0 %v982
    %1272 = vmatprep.subr.bf16.mxu0 %v986
    %1273 = vmatpush1.bf16.msra.mxu0 %v985
    %1274 = vmatprep.subr.bf16.mxu0 %v989
    %1275 = vmatpush1.bf16.msra.mxu0 %v988
    %1276 = vmatprep.subr.bf16.mxu0 %v992
    %1277 = vmatpush1.bf16.msra.mxu0 %v991
    %1278 = vmatprep.subr.bf16.mxu0 %v995
    %1279 = vmatpush1.bf16.msra.mxu0 %v994
    %1280 = vmatprep.subr.bf16.mxu0 %v998
    %1281 = vmatpush1.bf16.msra.mxu0 %v997
    %1282 = vmatprep.subr.bf16.mxu0 %v1001
    %1283 = vmatpush1.bf16.msra.mxu0 %v1000
    %1284 = vmatprep.subr.bf16.mxu0 %v1004
    %1285 = vmatpush1.bf16.msra.mxu0 %v1003
    %1286 = vmatprep.subr.bf16.mxu0 %v1007
    %1287 = vmatpush1.bf16.msra.mxu0 %v1006
    %1288 = vmatprep.subr.bf16.mxu0 %v1010
    %1289 = vmatpush1.bf16.msra.mxu0 %v1009
    %1290 = vmatprep.subr.bf16.mxu0 %v1013
    %1291 = vmatpush1.bf16.msra.mxu0 %v1012
    %1292 = vmatprep.subr.bf16.mxu0 %v1016
    %1293 = vmatpush1.bf16.msra.mxu0 %v1015
    %1294 = vmatprep.subr.bf16.mxu0 %v1019
    %1295 = vmatpush1.bf16.msra.mxu0 %v1018
    %1296 = vmatprep.subr.bf16.mxu0 %v1022
    %1297 = vmatpush1.bf16.msra.mxu0 %v1021
    %1298 = vmatprep.subr.bf16.mxu0 %v1025
    %1299 = vmatpush1.bf16.msra.mxu0 %v1024
    %1300 = vmatprep.subr.bf16.mxu0 %v1028
    %1301 = vmatpush1.bf16.msra.mxu0 %v1027
    %1302 = vmatprep.mubr.bf16.mxu0 %v388
    %1303 = vmatmul.mubr.bf16.gmra.mrb[0].mxu0 %v387
    %v1304 = vpop.f32.mrb[0].mxu0
    %v1305 = vadd.f32 %v1262, %v1304
    %v1306 = vpop.f32.mrb[0].mxu0
    %v1307 = vadd.f32 %v1264, %v1306
    %v1308 = vpop.f32.mrb[0].mxu0
    %v1309 = vadd.f32 %v1266, %v1308
    %v1310 = vpop.f32.mrb[0].mxu0
    %v1311 = vadd.f32 %v1268, %v1310
    %1312 = vdwg.mxu0
    %1313 = vmatprep.subr.bf16.mxu0 %v1031
    %1314 = vmatpush1.bf16.msra.mxu0 %v1030
    %1315 = vmatprep.subr.bf16.mxu0 0
    %1316 = vmatpush1.bf16.msra.mxu0 0
    %1317 = vmatprep.subr.bf16.mxu0 0
    %1318 = vmatpush1.bf16.msra.mxu0 0
    %1319 = vmatprep.subr.bf16.mxu0 0
    %1320 = vmatpush1.bf16.msra.mxu0 0
    %1321 = vmatprep.subr.bf16.mxu0 0
    %1322 = vmatpush1.bf16.msra.mxu0 0
    %1323 = vmatprep.subr.bf16.mxu0 0
    %1324 = vmatpush1.bf16.msra.mxu0 0
    %1325 = vmatprep.subr.bf16.mxu0 0
    %1326 = vmatpush1.bf16.msra.mxu0 0
    %1327 = vmatprep.subr.bf16.mxu0 0
    %1328 = vmatpush1.bf16.msra.mxu0 0
    %1329 = vmatprep.subr.bf16.mxu0 0
    %1330 = vmatpush1.bf16.msra.mxu0 0
    %1331 = vmatprep.subr.bf16.mxu0 0
    %1332 = vmatpush1.bf16.msra.mxu0 0
    %1333 = vmatprep.subr.bf16.mxu0 0
    %1334 = vmatpush1.bf16.msra.mxu0 0
    %1335 = vmatprep.subr.bf16.mxu0 0
    %1336 = vmatpush1.bf16.msra.mxu0 0
    %1337 = vmatprep.subr.bf16.mxu0 0
    %1338 = vmatpush1.bf16.msra.mxu0 0
    %1339 = vmatprep.subr.bf16.mxu0 0
    %1340 = vmatpush1.bf16.msra.mxu0 0
    %1341 = vmatprep.subr.bf16.mxu0 0
    %1342 = vmatpush1.bf16.msra.mxu0 0
    %1343 = vmatprep.subr.bf16.mxu0 0
    %1344 = vmatpush1.bf16.msra.mxu0 0
    %1345 = vmatprep.mubr.bf16.mxu0 0
    %1346 = vmatmul.mubr.bf16.gmra.mrb[0].mxu0 %v1182
    %v1347 = vpop.f32.mrb[0].mxu0
    %v1348 = vadd.f32 %v1305, %v1347
    %v1349 = vpop.f32.mrb[0].mxu0
    %v1350 = vadd.f32 %v1307, %v1349
    %v1351 = vpop.f32.mrb[0].mxu0
    %v1352 = vadd.f32 %v1309, %v1351
    %v1353 = vpop.f32.mrb[0].mxu0
    %v1354 = vadd.f32 %v1311, %v1353
    %1355 = vdwg.mxu0
    %1356 = vmatprep.subr.bf16.mxu0 0
    %1357 = vmatpush1.bf16.msra.mxu0 %v888
    %1358 = vmatprep.subr.bf16.mxu0 0
    %1359 = vmatpush1.bf16.msra.mxu0 %v891
    %1360 = vmatprep.subr.bf16.mxu0 0
    %1361 = vmatpush1.bf16.msra.mxu0 %v894
    %1362 = vmatprep.subr.bf16.mxu0 0
    %1363 = vmatpush1.bf16.msra.mxu0 %v897
    %1364 = vmatprep.subr.bf16.mxu0 0
    %1365 = vmatpush1.bf16.msra.mxu0 %v900
    %1366 = vmatprep.subr.bf16.mxu0 0
    %1367 = vmatpush1.bf16.msra.mxu0 %v903
    %1368 = vmatprep.subr.bf16.mxu0 0
    %1369 = vmatpush1.bf16.msra.mxu0 %v906
    %1370 = vmatprep.subr.bf16.mxu0 0
    %1371 = vmatpush1.bf16.msra.mxu0 %v909
    %1372 = vmatprep.subr.bf16.mxu0 0
    %1373 = vmatpush1.bf16.msra.mxu0 %v912
    %1374 = vmatprep.subr.bf16.mxu0 0
    %1375 = vmatpush1.bf16.msra.mxu0 %v915
    %1376 = vmatprep.subr.bf16.mxu0 0
    %1377 = vmatpush1.bf16.msra.mxu0 %v918
    %1378 = vmatprep.subr.bf16.mxu0 0
    %1379 = vmatpush1.bf16.msra.mxu0 %v921
    %1380 = vmatprep.subr.bf16.mxu0 0
    %1381 = vmatpush1.bf16.msra.mxu0 %v924
    %1382 = vmatprep.subr.bf16.mxu0 0
    %1383 = vmatpush1.bf16.msra.mxu0 %v927
    %1384 = vmatprep.subr.bf16.mxu0 0
    %1385 = vmatpush1.bf16.msra.mxu0 %v930
    %1386 = vmatprep.subr.bf16.mxu0 0
    %1387 = vmatpush1.bf16.msra.mxu0 %v933
    %1388 = vmatprep.mubr.bf16.mxu0 %v384
    %1389 = vmatmul.mubr.bf16.gmra.mrb[0].mxu0 %v383
    %v1390 = vpop.f32.mrb[0].mxu0
    %v1391 = vadd.f32 %v357, %v1390
    %v1392 = vpop.f32.mrb[0].mxu0
    %v1393 = vpop.f32.mrb[0].mxu0
    %v1394 = vadd.f32 %v357, %v1393
    %v1395 = vpop.f32.mrb[0].mxu0
    %1396 = vdwg.mxu0
    %1397 = vmatprep.subr.bf16.mxu0 0
    %1398 = vmatpush1.bf16.msra.mxu0 %v936
    %1399 = vmatprep.subr.bf16.mxu0 0
    %1400 = vmatpush1.bf16.msra.mxu0 %v939
    %1401 = vmatprep.subr.bf16.mxu0 0
    %1402 = vmatpush1.bf16.msra.mxu0 %v942
    %1403 = vmatprep.subr.bf16.mxu0 0
    %1404 = vmatpush1.bf16.msra.mxu0 %v945
    %1405 = vmatprep.subr.bf16.mxu0 0
    %1406 = vmatpush1.bf16.msra.mxu0 %v948
    %1407 = vmatprep.subr.bf16.mxu0 0
    %1408 = vmatpush1.bf16.msra.mxu0 %v951
    %1409 = vmatprep.subr.bf16.mxu0 0
    %1410 = vmatpush1.bf16.msra.mxu0 %v954
    %1411 = vmatprep.subr.bf16.mxu0 0
    %1412 = vmatpush1.bf16.msra.mxu0 %v957
    %1413 = vmatprep.subr.bf16.mxu0 0
    %1414 = vmatpush1.bf16.msra.mxu0 %v960
    %1415 = vmatprep.subr.bf16.mxu0 0
    %1416 = vmatpush1.bf16.msra.mxu0 %v963
    %1417 = vmatprep.subr.bf16.mxu0 0
    %1418 = vmatpush1.bf16.msra.mxu0 %v966
    %1419 = vmatprep.subr.bf16.mxu0 0
    %1420 = vmatpush1.bf16.msra.mxu0 %v969
    %1421 = vmatprep.subr.bf16.mxu0 0
    %1422 = vmatpush1.bf16.msra.mxu0 %v972
    %1423 = vmatprep.subr.bf16.mxu0 0
    %1424 = vmatpush1.bf16.msra.mxu0 %v975
    %1425 = vmatprep.subr.bf16.mxu0 0
    %1426 = vmatpush1.bf16.msra.mxu0 %v978
    %1427 = vmatprep.subr.bf16.mxu0 0
    %1428 = vmatpush1.bf16.msra.mxu0 %v981
    %1429 = vmatprep.mubr.bf16.mxu0 %v386
    %1430 = vmatmul.mubr.bf16.gmra.mrb[0].mxu0 %v385
    %v1431 = vpop.f32.mrb[0].mxu0
    %v1432 = vadd.f32 %v1391, %v1431
    %v1433 = vpop.f32.mrb[0].mxu0
    %v1434 = vpop.f32.mrb[0].mxu0
    %v1435 = vadd.f32 %v1394, %v1434
    %v1436 = vpop.f32.mrb[0].mxu0
    %1437 = vdwg.mxu0
    %1438 = vmatprep.subr.bf16.mxu0 0
    %1439 = vmatpush1.bf16.msra.mxu0 %v984
    %1440 = vmatprep.subr.bf16.mxu0 0
    %1441 = vmatpush1.bf16.msra.mxu0 %v987
    %1442 = vmatprep.subr.bf16.mxu0 0
    %1443 = vmatpush1.bf16.msra.mxu0 %v990
    %1444 = vmatprep.subr.bf16.mxu0 0
    %1445 = vmatpush1.bf16.msra.mxu0 %v993
    %1446 = vmatprep.subr.bf16.mxu0 0
    %1447 = vmatpush1.bf16.msra.mxu0 %v996
    %1448 = vmatprep.subr.bf16.mxu0 0
    %1449 = vmatpush1.bf16.msra.mxu0 %v999
    %1450 = vmatprep.subr.bf16.mxu0 0
    %1451 = vmatpush1.bf16.msra.mxu0 %v1002
    %1452 = vmatprep.subr.bf16.mxu0 0
    %1453 = vmatpush1.bf16.msra.mxu0 %v1005
    %1454 = vmatprep.subr.bf16.mxu0 0
    %1455 = vmatpush1.bf16.msra.mxu0 %v1008
    %1456 = vmatprep.subr.bf16.mxu0 0
    %1457 = vmatpush1.bf16.msra.mxu0 %v1011
    %1458 = vmatprep.subr.bf16.mxu0 0
    %1459 = vmatpush1.bf16.msra.mxu0 %v1014
    %1460 = vmatprep.subr.bf16.mxu0 0
    %1461 = vmatpush1.bf16.msra.mxu0 %v1017
    %1462 = vmatprep.subr.bf16.mxu0 0
    %1463 = vmatpush1.bf16.msra.mxu0 %v1020
    %1464 = vmatprep.subr.bf16.mxu0 0
    %1465 = vmatpush1.bf16.msra.mxu0 %v1023
    %1466 = vmatprep.subr.bf16.mxu0 0
    %1467 = vmatpush1.bf16.msra.mxu0 %v1026
    %1468 = vmatprep.subr.bf16.mxu0 0
    %1469 = vmatpush1.bf16.msra.mxu0 %v1029
    %1470 = vmatprep.mubr.bf16.mxu0 %v388
    %1471 = vmatmul.mubr.bf16.gmra.mrb[0].mxu0 %v387
    %v1472 = vpop.f32.mrb[0].mxu0
    %v1473 = vadd.f32 %v1432, %v1472
    %v1474 = vpop.f32.mrb[0].mxu0
    %v1475 = vpop.f32.mrb[0].mxu0
    %v1476 = vadd.f32 %v1435, %v1475
    %v1477 = vpop.f32.mrb[0].mxu0
    %1478 = vdwg.mxu0
    %1479 = vmatprep.subr.bf16.mxu0 0
    %1480 = vmatpush1.bf16.msra.mxu0 %v1032
    %1481 = vmatprep.subr.bf16.mxu0 0
    %1482 = vmatpush1.bf16.msra.mxu0 0
    %1483 = vmatprep.subr.bf16.mxu0 0
    %1484 = vmatpush1.bf16.msra.mxu0 0
    %1485 = vmatprep.subr.bf16.mxu0 0
    %1486 = vmatpush1.bf16.msra.mxu0 0
    %1487 = vmatprep.subr.bf16.mxu0 0
    %1488 = vmatpush1.bf16.msra.mxu0 0
    %1489 = vmatprep.subr.bf16.mxu0 0
    %1490 = vmatpush1.bf16.msra.mxu0 0
    %1491 = vmatprep.subr.bf16.mxu0 0
    %1492 = vmatpush1.bf16.msra.mxu0 0
    %1493 = vmatprep.subr.bf16.mxu0 0
    %1494 = vmatpush1.bf16.msra.mxu0 0
    %1495 = vmatprep.subr.bf16.mxu0 0
    %1496 = vmatpush1.bf16.msra.mxu0 0
    %1497 = vmatprep.subr.bf16.mxu0 0
    %1498 = vmatpush1.bf16.msra.mxu0 0
    %1499 = vmatprep.subr.bf16.mxu0 0
    %1500 = vmatpush1.bf16.msra.mxu0 0
    %1501 = vmatprep.subr.bf16.mxu0 0
    %1502 = vmatpush1.bf16.msra.mxu0 0
    %1503 = vmatprep.subr.bf16.mxu0 0
    %1504 = vmatpush1.bf16.msra.mxu0 0
    %1505 = vmatprep.subr.bf16.mxu0 0
    %1506 = vmatpush1.bf16.msra.mxu0 0
    %1507 = vmatprep.subr.bf16.mxu0 0
    %1508 = vmatpush1.bf16.msra.mxu0 0
    %1509 = vmatprep.subr.bf16.mxu0 0
    %1510 = vmatpush1.bf16.msra.mxu0 0
    %1511 = vmatprep.mubr.bf16.mxu0 0
    %1512 = vmatmul.mubr.bf16.gmra.mrb[0].mxu0 %v1182
    %v1513 = vpop.f32.mrb[0].mxu0
    %v1514 = vadd.f32 %v1473, %v1513
    %v1515 = vpop.f32.mrb[0].mxu0
    %v1516 = vpop.f32.mrb[0].mxu0
    %v1517 = vadd.f32 %v1476, %v1516
    %v1518 = vpop.f32.mrb[0].mxu0
    %1519 = vdwg.mxu0
    %v1520 = vmax.f32 %v1348, 0.0
    %v1521 = vmax.f32 %v1350, 0.0
    %v1522 = vmax.f32 %v1514, 0.0
    %v1523 = vmax.f32 %v1352, 0.0
    %v1524 = vmax.f32 %v1354, 0.0
    %v1525 = vmax.f32 %v1517, 0.0
    %v1526 = vpack.c.bf16 %v1523, %v1520
    %v1527 = vpack.c.bf16 %v1524, %v1521
    %v1528 = vpack.c.bf16 %v1525, %v1522
    %v1532 = vunpack.c.l.b16 %v1526
    %v1533 = vunpack.c.l.b16 %v1527
    %v1534 = vunpack.c.l.b16 %v1528
    %v1535 = vunpack.c.h.b16 %v1526
    %v1536 = vunpack.c.h.b16 %v1527
    %v1537 = vunpack.c.h.b16 %v1528
    %v1538 = vpack.c.b16 %v1533, %v1532
    %v1539 = vpack.c.b16 %v1534, %v1534
    %v1540 = vpack.c.b16 %v1536, %v1535
    %v1541 = vpack.c.b16 %v1537, %v1537
    %1546 = vst [vmem:[%s15] sm:$0xff] %v1538
    %1547 = vst [vmem:[%s15 + $0x8] sm:$0xf] %v1539
    %1548 = vst [vmem:[%s15 + $0xc] sm:$0xff] %v1540
    %1549 = vst [vmem:[%s15 + $0x14] sm:$0xf] %v1541
    %v1550 = vld [vmem:[#allocation4] sm:$0xff]
    %v1551 = vld [vmem:[#allocation4 + $0x8] sm:$0xf]
    %v1552 = vld [vmem:[#allocation4 + $0xc] sm:$0xff]
    %v1553 = vld [vmem:[#allocation4 + $0x14] sm:$0xf]
    %v1554 = vld [vmem:[#allocation4 + $0x18] sm:$0xff]
    %v1555 = vld [vmem:[#allocation4 + $0x20] sm:$0xf]
    %v1556 = vld [vmem:[#allocation4 + $0x24] sm:$0xff]
    %v1557 = vld [vmem:[#allocation4 + $0x2c] sm:$0xf]
    %v1558 = vld [vmem:[#allocation4 + $0x30] sm:$0xff]
    %v1559 = vld [vmem:[#allocation4 + $0x38] sm:$0xf]
    %v1560 = vld [vmem:[#allocation4 + $0x3c] sm:$0xff]
    %v1561 = vld [vmem:[#allocation4 + $0x44] sm:$0xf]
    %v1562 = vld [vmem:[#allocation4 + $0x48] sm:$0xff]
    %v1563 = vld [vmem:[#allocation4 + $0x50] sm:$0xf]
    %v1564 = vld [vmem:[#allocation4 + $0x54] sm:$0xff]
    %v1565 = vld [vmem:[#allocation4 + $0x5c] sm:$0xf]
    %v1566 = vld [vmem:[#allocation4 + $0x60] sm:$0xff]
    %v1567 = vld [vmem:[#allocation4 + $0x68] sm:$0xf]
    %v1568 = vld [vmem:[#allocation4 + $0x6c] sm:$0xff]
    %v1569 = vld [vmem:[#allocation4 + $0x74] sm:$0xf]
    %v1570 = vld [vmem:[#allocation4 + $0x78] sm:$0xff]
    %v1571 = vld [vmem:[#allocation4 + $0x80] sm:$0xf]
    %v1572 = vld [vmem:[#allocation4 + $0x84] sm:$0xff]
    %v1573 = vld [vmem:[#allocation4 + $0x8c] sm:$0xf]
    %v1574 = vld [vmem:[#allocation4 + $0x90] sm:$0xff]
    %v1575 = vld [vmem:[#allocation4 + $0x98] sm:$0xf]
    %v1576 = vld [vmem:[#allocation4 + $0x9c] sm:$0xff]
    %v1577 = vld [vmem:[#allocation4 + $0xa4] sm:$0xf]
    %v1578 = vld [vmem:[#allocation4 + $0xa8] sm:$0xff]
    %v1579 = vld [vmem:[#allocation4 + $0xb0] sm:$0xf]
    %v1580 = vld [vmem:[#allocation4 + $0xb4] sm:$0xff]
    %v1581 = vld [vmem:[#allocation4 + $0xbc] sm:$0xf]
    %v1582 = vld [vmem:[#allocation4 + $0xc0] sm:$0xff]
    %v1583 = vld [vmem:[#allocation4 + $0xc8] sm:$0xf]
    %v1584 = vld [vmem:[#allocation4 + $0xcc] sm:$0xff]
    %v1585 = vld [vmem:[#allocation4 + $0xd4] sm:$0xf]
    %v1586 = vld [vmem:[#allocation4 + $0xd8] sm:$0xff]
    %v1587 = vld [vmem:[#allocation4 + $0xe0] sm:$0xf]
    %v1588 = vld [vmem:[#allocation4 + $0xe4] sm:$0xff]
    %v1589 = vld [vmem:[#allocation4 + $0xec] sm:$0xf]
    %v1590 = vld [vmem:[#allocation4 + $0xf0] sm:$0xff]
    %v1591 = vld [vmem:[#allocation4 + $0xf8] sm:$0xf]
    %v1592 = vld [vmem:[#allocation4 + $0xfc] sm:$0xff]
    %v1593 = vld [vmem:[#allocation4 + $0x104] sm:$0xf]
    %v1594 = vld [vmem:[#allocation4 + $0x108] sm:$0xff]
    %v1595 = vld [vmem:[#allocation4 + $0x110] sm:$0xf]
    %v1596 = vld [vmem:[#allocation4 + $0x114] sm:$0xff]
    %v1597 = vld [vmem:[#allocation4 + $0x11c] sm:$0xf]
    %v1598 = vld [vmem:[#allocation4 + $0x120] sm:$0xff]
    %v1599 = vld [vmem:[#allocation4 + $0x128] sm:$0xf]
    %v1600 = vld [vmem:[#allocation4 + $0x12c] sm:$0xff]
    %v1601 = vld [vmem:[#allocation4 + $0x134] sm:$0xf]
    %v1602 = vld [vmem:[#allocation4 + $0x138] sm:$0xff]
    %v1603 = vld [vmem:[#allocation4 + $0x140] sm:$0xf]
    %v1604 = vld [vmem:[#allocation4 + $0x144] sm:$0xff]
    %v1605 = vld [vmem:[#allocation4 + $0x14c] sm:$0xf]
    %v1606 = vld [vmem:[#allocation4 + $0x150] sm:$0xff]
    %v1607 = vld [vmem:[#allocation4 + $0x158] sm:$0xf]
    %v1608 = vld [vmem:[#allocation4 + $0x15c] sm:$0xff]
    %v1609 = vld [vmem:[#allocation4 + $0x164] sm:$0xf]
    %v1610 = vld [vmem:[#allocation4 + $0x168] sm:$0xff]
    %v1611 = vld [vmem:[#allocation4 + $0x170] sm:$0xf]
    %v1612 = vld [vmem:[#allocation4 + $0x174] sm:$0xff]
    %v1613 = vld [vmem:[#allocation4 + $0x17c] sm:$0xf]
    %v1614 = vld [vmem:[#allocation4 + $0x180] sm:$0xff]
    %v1615 = vld [vmem:[#allocation4 + $0x188] sm:$0xf]
    %v1616 = vld [vmem:[#allocation4 + $0x18c] sm:$0xff]
    %v1617 = vld [vmem:[#allocation4 + $0x194] sm:$0xf]
    %v1618 = vld [vmem:[#allocation4 + $0x198] sm:$0xff]
    %v1619 = vld [vmem:[#allocation4 + $0x1a0] sm:$0xf]
    %v1620 = vld [vmem:[#allocation4 + $0x1a4] sm:$0xff]
    %v1621 = vld [vmem:[#allocation4 + $0x1ac] sm:$0xf]
    %v1622 = vld [vmem:[#allocation4 + $0x1b0] sm:$0xff]
    %v1623 = vld [vmem:[#allocation4 + $0x1b8] sm:$0xf]
    %v1624 = vld [vmem:[#allocation4 + $0x1bc] sm:$0xff]
    %v1625 = vld [vmem:[#allocation4 + $0x1c4] sm:$0xf]
    %v1626 = vld [vmem:[#allocation4 + $0x1c8] sm:$0xff]
    %v1627 = vld [vmem:[#allocation4 + $0x1d0] sm:$0xf]
    %v1628 = vld [vmem:[#allocation4 + $0x1d4] sm:$0xff]
    %v1629 = vld [vmem:[#allocation4 + $0x1dc] sm:$0xf]
    %v1630 = vld [vmem:[#allocation4 + $0x1e0] sm:$0xff]
    %v1631 = vld [vmem:[#allocation4 + $0x1e8] sm:$0xf]
    %v1632 = vld [vmem:[#allocation4 + $0x1ec] sm:$0xff]
    %v1633 = vld [vmem:[#allocation4 + $0x1f4] sm:$0xf]
    %v1634 = vld [vmem:[#allocation4 + $0x1f8] sm:$0xff]
    %v1635 = vld [vmem:[#allocation4 + $0x200] sm:$0xf]
    %v1636 = vld [vmem:[#allocation4 + $0x204] sm:$0xff]
    %v1637 = vld [vmem:[#allocation4 + $0x20c] sm:$0xf]
    %v1638 = vld [vmem:[#allocation4 + $0x210] sm:$0xff]
    %v1639 = vld [vmem:[#allocation4 + $0x218] sm:$0xf]
    %v1640 = vld [vmem:[#allocation4 + $0x21c] sm:$0xff]
    %v1641 = vld [vmem:[#allocation4 + $0x224] sm:$0xf]
    %v1642 = vld [vmem:[#allocation4 + $0x228] sm:$0xff]
    %v1643 = vld [vmem:[#allocation4 + $0x230] sm:$0xf]
    %v1644 = vld [vmem:[#allocation4 + $0x234] sm:$0xff]
    %v1645 = vld [vmem:[#allocation4 + $0x23c] sm:$0xf]
    %v1646 = vld [vmem:[%s9] sm:$0x7]
    %v1648 = vlaneseq
    %v1649 = vshrl.u32 %v1648, 7
    %v1650 = vsub.s32 0, %v1649
    %v1651 = vrot.slane %v1646, %v1650
    %v1652 = vlaneseq
    %v1653 = vshrl.u32 %v1652, 7
    %v1654 = vsub.s32 1, %v1653
    %v1655 = vrot.slane %v1646, %v1654
    %v1656 = vlaneseq
    %v1657 = vshrl.u32 %v1656, 7
    %v1658 = vsub.s32 2, %v1657
    %v1659 = vrot.slane %v1646, %v1658
    %v1759 = vunpack.c.l.b16 %v1550
    %v1760 = vunpack.c.h.b16 %v1550
    %v1761 = vunpack.c.l.b16 %v1551
    %v1762 = vunpack.c.l.b16 %v1552
    %v1763 = vunpack.c.h.b16 %v1552
    %v1764 = vunpack.c.l.b16 %v1553
    %v1765 = vunpack.c.l.b16 %v1554
    %v1766 = vunpack.c.h.b16 %v1554
    %v1767 = vunpack.c.l.b16 %v1555
    %v1768 = vunpack.c.l.b16 %v1556
    %v1769 = vunpack.c.h.b16 %v1556
    %v1770 = vunpack.c.l.b16 %v1557
    %v1771 = vunpack.c.l.b16 %v1558
    %v1772 = vunpack.c.h.b16 %v1558
    %v1773 = vunpack.c.l.b16 %v1559
    %v1774 = vunpack.c.l.b16 %v1560
    %v1775 = vunpack.c.h.b16 %v1560
    %v1776 = vunpack.c.l.b16 %v1561
    %v1777 = vunpack.c.l.b16 %v1562
    %v1778 = vunpack.c.h.b16 %v1562
    %v1779 = vunpack.c.l.b16 %v1563
    %v1780 = vunpack.c.l.b16 %v1564
    %v1781 = vunpack.c.h.b16 %v1564
    %v1782 = vunpack.c.l.b16 %v1565
    %v1783 = vunpack.c.l.b16 %v1566
    %v1784 = vunpack.c.h.b16 %v1566
    %v1785 = vunpack.c.l.b16 %v1567
    %v1786 = vunpack.c.l.b16 %v1568
    %v1787 = vunpack.c.h.b16 %v1568
    %v1788 = vunpack.c.l.b16 %v1569
    %v1789 = vunpack.c.l.b16 %v1570
    %v1790 = vunpack.c.h.b16 %v1570
    %v1791 = vunpack.c.l.b16 %v1571
    %v1792 = vunpack.c.l.b16 %v1572
    %v1793 = vunpack.c.h.b16 %v1572
    %v1794 = vunpack.c.l.b16 %v1573
    %v1795 = vunpack.c.l.b16 %v1574
    %v1796 = vunpack.c.h.b16 %v1574
    %v1797 = vunpack.c.l.b16 %v1575
    %v1798 = vunpack.c.l.b16 %v1576
    %v1799 = vunpack.c.h.b16 %v1576
    %v1800 = vunpack.c.l.b16 %v1577
    %v1801 = vunpack.c.l.b16 %v1578
    %v1802 = vunpack.c.h.b16 %v1578
    %v1803 = vunpack.c.l.b16 %v1579
    %v1804 = vunpack.c.l.b16 %v1580
    %v1805 = vunpack.c.h.b16 %v1580
    %v1806 = vunpack.c.l.b16 %v1581
    %v1807 = vunpack.c.l.b16 %v1582
    %v1808 = vunpack.c.h.b16 %v1582
    %v1809 = vunpack.c.l.b16 %v1583
    %v1810 = vunpack.c.l.b16 %v1584
    %v1811 = vunpack.c.h.b16 %v1584
    %v1812 = vunpack.c.l.b16 %v1585
    %v1813 = vunpack.c.l.b16 %v1586
    %v1814 = vunpack.c.h.b16 %v1586
    %v1815 = vunpack.c.l.b16 %v1587
    %v1816 = vunpack.c.l.b16 %v1588
    %v1817 = vunpack.c.h.b16 %v1588
    %v1818 = vunpack.c.l.b16 %v1589
    %v1819 = vunpack.c.l.b16 %v1590
    %v1820 = vunpack.c.h.b16 %v1590
    %v1821 = vunpack.c.l.b16 %v1591
    %v1822 = vunpack.c.l.b16 %v1592
    %v1823 = vunpack.c.h.b16 %v1592
    %v1824 = vunpack.c.l.b16 %v1593
    %v1825 = vunpack.c.l.b16 %v1594
    %v1826 = vunpack.c.h.b16 %v1594
    %v1827 = vunpack.c.l.b16 %v1595
    %v1828 = vunpack.c.l.b16 %v1596
    %v1829 = vunpack.c.h.b16 %v1596
    %v1830 = vunpack.c.l.b16 %v1597
    %v1831 = vunpack.c.l.b16 %v1598
    %v1832 = vunpack.c.h.b16 %v1598
    %v1833 = vunpack.c.l.b16 %v1599
    %v1834 = vunpack.c.l.b16 %v1600
    %v1835 = vunpack.c.h.b16 %v1600
    %v1836 = vunpack.c.l.b16 %v1601
    %v1837 = vunpack.c.l.b16 %v1602
    %v1838 = vunpack.c.h.b16 %v1602
    %v1839 = vunpack.c.l.b16 %v1603
    %v1840 = vunpack.c.l.b16 %v1604
    %v1841 = vunpack.c.h.b16 %v1604
    %v1842 = vunpack.c.l.b16 %v1605
    %v1843 = vunpack.c.l.b16 %v1606
    %v1844 = vunpack.c.h.b16 %v1606
    %v1845 = vunpack.c.l.b16 %v1607
    %v1846 = vunpack.c.l.b16 %v1608
    %v1847 = vunpack.c.h.b16 %v1608
    %v1848 = vunpack.c.l.b16 %v1609
    %v1849 = vunpack.c.l.b16 %v1610
    %v1850 = vunpack.c.h.b16 %v1610
    %v1851 = vunpack.c.l.b16 %v1611
    %v1852 = vunpack.c.l.b16 %v1612
    %v1853 = vunpack.c.h.b16 %v1612
    %v1854 = vunpack.c.l.b16 %v1613
    %v1855 = vunpack.c.l.b16 %v1614
    %v1856 = vunpack.c.h.b16 %v1614
    %v1857 = vunpack.c.l.b16 %v1615
    %v1858 = vunpack.c.l.b16 %v1616
    %v1859 = vunpack.c.h.b16 %v1616
    %v1860 = vunpack.c.l.b16 %v1617
    %v1861 = vunpack.c.l.b16 %v1618
    %v1862 = vunpack.c.h.b16 %v1618
    %v1863 = vunpack.c.l.b16 %v1619
    %v1864 = vunpack.c.l.b16 %v1620
    %v1865 = vunpack.c.h.b16 %v1620
    %v1866 = vunpack.c.l.b16 %v1621
    %v1867 = vunpack.c.l.b16 %v1622
    %v1868 = vunpack.c.h.b16 %v1622
    %v1869 = vunpack.c.l.b16 %v1623
    %v1870 = vunpack.c.l.b16 %v1624
    %v1871 = vunpack.c.h.b16 %v1624
    %v1872 = vunpack.c.l.b16 %v1625
    %v1873 = vunpack.c.l.b16 %v1626
    %v1874 = vunpack.c.h.b16 %v1626
    %v1875 = vunpack.c.l.b16 %v1627
    %v1876 = vunpack.c.l.b16 %v1628
    %v1877 = vunpack.c.h.b16 %v1628
    %v1878 = vunpack.c.l.b16 %v1629
    %v1879 = vunpack.c.l.b16 %v1630
    %v1880 = vunpack.c.h.b16 %v1630
    %v1881 = vunpack.c.l.b16 %v1631
    %v1882 = vunpack.c.l.b16 %v1632
    %v1883 = vunpack.c.h.b16 %v1632
    %v1884 = vunpack.c.l.b16 %v1633
    %v1885 = vunpack.c.l.b16 %v1634
    %v1886 = vunpack.c.h.b16 %v1634
    %v1887 = vunpack.c.l.b16 %v1635
    %v1888 = vunpack.c.l.b16 %v1636
    %v1889 = vunpack.c.h.b16 %v1636
    %v1890 = vunpack.c.l.b16 %v1637
    %v1891 = vunpack.c.l.b16 %v1638
    %v1892 = vunpack.c.h.b16 %v1638
    %v1893 = vunpack.c.l.b16 %v1639
    %v1894 = vunpack.c.l.b16 %v1640
    %v1895 = vunpack.c.h.b16 %v1640
    %v1896 = vunpack.c.l.b16 %v1641
    %v1897 = vunpack.c.l.b16 %v1642
    %v1898 = vunpack.c.h.b16 %v1642
    %v1899 = vunpack.c.l.b16 %v1643
    %v1900 = vunpack.c.l.b16 %v1644
    %v1901 = vunpack.c.h.b16 %v1644
    %v1902 = vunpack.c.l.b16 %v1645
    %v1903 = vpack.c.b16 %v1762, %v1759
    %v1904 = vpack.c.b16 %v1763, %v1760
    %v1905 = vpack.c.b16 %v1764, %v1761
    %v1906 = vpack.c.b16 %v1768, %v1765
    %v1907 = vpack.c.b16 %v1769, %v1766
    %v1908 = vpack.c.b16 %v1770, %v1767
    %v1909 = vpack.c.b16 %v1774, %v1771
    %v1910 = vpack.c.b16 %v1775, %v1772
    %v1911 = vpack.c.b16 %v1776, %v1773
    %v1912 = vpack.c.b16 %v1780, %v1777
    %v1913 = vpack.c.b16 %v1781, %v1778
    %v1914 = vpack.c.b16 %v1782, %v1779
    %v1915 = vpack.c.b16 %v1786, %v1783
    %v1916 = vpack.c.b16 %v1787, %v1784
    %v1917 = vpack.c.b16 %v1788, %v1785
    %v1918 = vpack.c.b16 %v1792, %v1789
    %v1919 = vpack.c.b16 %v1793, %v1790
    %v1920 = vpack.c.b16 %v1794, %v1791
    %v1921 = vpack.c.b16 %v1798, %v1795
    %v1922 = vpack.c.b16 %v1799, %v1796
    %v1923 = vpack.c.b16 %v1800, %v1797
    %v1924 = vpack.c.b16 %v1804, %v1801
    %v1925 = vpack.c.b16 %v1805, %v1802
    %v1926 = vpack.c.b16 %v1806, %v1803
    %v1927 = vpack.c.b16 %v1810, %v1807
    %v1928 = vpack.c.b16 %v1811, %v1808
    %v1929 = vpack.c.b16 %v1812, %v1809
    %v1930 = vpack.c.b16 %v1816, %v1813
    %v1931 = vpack.c.b16 %v1817, %v1814
    %v1932 = vpack.c.b16 %v1818, %v1815
    %v1933 = vpack.c.b16 %v1822, %v1819
    %v1934 = vpack.c.b16 %v1823, %v1820
    %v1935 = vpack.c.b16 %v1824, %v1821
    %v1936 = vpack.c.b16 %v1828, %v1825
    %v1937 = vpack.c.b16 %v1829, %v1826
    %v1938 = vpack.c.b16 %v1830, %v1827
    %v1939 = vpack.c.b16 %v1834, %v1831
    %v1940 = vpack.c.b16 %v1835, %v1832
    %v1941 = vpack.c.b16 %v1836, %v1833
    %v1942 = vpack.c.b16 %v1840, %v1837
    %v1943 = vpack.c.b16 %v1841, %v1838
    %v1944 = vpack.c.b16 %v1842, %v1839
    %v1945 = vpack.c.b16 %v1846, %v1843
    %v1946 = vpack.c.b16 %v1847, %v1844
    %v1947 = vpack.c.b16 %v1848, %v1845
    %v1948 = vpack.c.b16 %v1852, %v1849
    %v1949 = vpack.c.b16 %v1853, %v1850
    %v1950 = vpack.c.b16 %v1854, %v1851
    %v1951 = vpack.c.b16 %v1858, %v1855
    %v1952 = vpack.c.b16 %v1859, %v1856
    %v1953 = vpack.c.b16 %v1860, %v1857
    %v1954 = vpack.c.b16 %v1864, %v1861
    %v1955 = vpack.c.b16 %v1865, %v1862
    %v1956 = vpack.c.b16 %v1866, %v1863
    %v1957 = vpack.c.b16 %v1870, %v1867
    %v1958 = vpack.c.b16 %v1871, %v1868
    %v1959 = vpack.c.b16 %v1872, %v1869
    %v1960 = vpack.c.b16 %v1876, %v1873
    %v1961 = vpack.c.b16 %v1877, %v1874
    %v1962 = vpack.c.b16 %v1878, %v1875
    %v1963 = vpack.c.b16 %v1882, %v1879
    %v1964 = vpack.c.b16 %v1883, %v1880
    %v1965 = vpack.c.b16 %v1884, %v1881
    %v1966 = vpack.c.b16 %v1888, %v1885
    %v1967 = vpack.c.b16 %v1889, %v1886
    %v1968 = vpack.c.b16 %v1890, %v1887
    %v1969 = vpack.c.b16 %v1894, %v1891
    %v1970 = vpack.c.b16 %v1895, %v1892
    %v1971 = vpack.c.b16 %v1896, %v1893
    %v1972 = vpack.c.b16 %v1900, %v1897
    %v1973 = vpack.c.b16 %v1901, %v1898
    %v1974 = vpack.c.b16 %v1902, %v1899
    %2047 = vmatprep.subr.bf16.mxu0 %v1904
    %2048 = vmatpush1.bf16.msra.mxu0 %v1903
    %2049 = vmatprep.subr.bf16.mxu0 %v1907
    %2050 = vmatpush1.bf16.msra.mxu0 %v1906
    %2051 = vmatprep.subr.bf16.mxu0 %v1910
    %2052 = vmatpush1.bf16.msra.mxu0 %v1909
    %2053 = vmatprep.subr.bf16.mxu0 %v1913
    %2054 = vmatpush1.bf16.msra.mxu0 %v1912
    %2055 = vmatprep.subr.bf16.mxu0 %v1916
    %2056 = vmatpush1.bf16.msra.mxu0 %v1915
    %2057 = vmatprep.subr.bf16.mxu0 %v1919
    %2058 = vmatpush1.bf16.msra.mxu0 %v1918
    %2059 = vmatprep.subr.bf16.mxu0 %v1922
    %2060 = vmatpush1.bf16.msra.mxu0 %v1921
    %2061 = vmatprep.subr.bf16.mxu0 %v1925
    %2062 = vmatpush1.bf16.msra.mxu0 %v1924
    %2063 = vmatprep.subr.bf16.mxu0 %v1928
    %2064 = vmatpush1.bf16.msra.mxu0 %v1927
    %2065 = vmatprep.subr.bf16.mxu0 %v1931
    %2066 = vmatpush1.bf16.msra.mxu0 %v1930
    %2067 = vmatprep.subr.bf16.mxu0 %v1934
    %2068 = vmatpush1.bf16.msra.mxu0 %v1933
    %2069 = vmatprep.subr.bf16.mxu0 %v1937
    %2070 = vmatpush1.bf16.msra.mxu0 %v1936
    %2071 = vmatprep.subr.bf16.mxu0 %v1940
    %2072 = vmatpush1.bf16.msra.mxu0 %v1939
    %2073 = vmatprep.subr.bf16.mxu0 %v1943
    %2074 = vmatpush1.bf16.msra.mxu0 %v1942
    %2075 = vmatprep.subr.bf16.mxu0 %v1946
    %2076 = vmatpush1.bf16.msra.mxu0 %v1945
    %2077 = vmatprep.subr.bf16.mxu0 %v1949
    %2078 = vmatpush1.bf16.msra.mxu0 %v1948
    %2079 = vmatprep.mubr.bf16.mxu0 %v1527
    %2080 = vmatmul.mubr.bf16.gmra.mrb[0].mxu0 %v1526
    %v2081 = vpop.f32.mrb[0].mxu0
    %v2082 = vadd.f32 %v1651, %v2081
    %v2083 = vpop.f32.mrb[0].mxu0
    %v2084 = vadd.f32 %v1655, %v2083
    %v2085 = vpop.f32.mrb[0].mxu0
    %v2086 = vadd.f32 %v1651, %v2085
    %v2087 = vpop.f32.mrb[0].mxu0
    %v2088 = vadd.f32 %v1655, %v2087
    %2089 = vdwg.mxu0
    %2090 = vmatprep.subr.bf16.mxu0 %v1952
    %2091 = vmatpush1.bf16.msra.mxu0 %v1951
    %2092 = vmatprep.subr.bf16.mxu0 %v1955
    %2093 = vmatpush1.bf16.msra.mxu0 %v1954
    %2094 = vmatprep.subr.bf16.mxu0 %v1958
    %2095 = vmatpush1.bf16.msra.mxu0 %v1957
    %2096 = vmatprep.subr.bf16.mxu0 %v1961
    %2097 = vmatpush1.bf16.msra.mxu0 %v1960
    %2098 = vmatprep.subr.bf16.mxu0 %v1964
    %2099 = vmatpush1.bf16.msra.mxu0 %v1963
    %2100 = vmatprep.subr.bf16.mxu0 %v1967
    %2101 = vmatpush1.bf16.msra.mxu0 %v1966
    %2102 = vmatprep.subr.bf16.mxu0 %v1970
    %2103 = vmatpush1.bf16.msra.mxu0 %v1969
    %2104 = vmatprep.subr.bf16.mxu0 %v1973
    %2105 = vmatpush1.bf16.msra.mxu0 %v1972
    %2106 = vmatprep.subr.bf16.mxu0 0
    %2107 = vmatpush1.bf16.msra.mxu0 0
    %2108 = vmatprep.subr.bf16.mxu0 0
    %2109 = vmatpush1.bf16.msra.mxu0 0
    %2110 = vmatprep.subr.bf16.mxu0 0
    %2111 = vmatpush1.bf16.msra.mxu0 0
    %2112 = vmatprep.subr.bf16.mxu0 0
    %2113 = vmatpush1.bf16.msra.mxu0 0
    %2114 = vmatprep.subr.bf16.mxu0 0
    %2115 = vmatpush1.bf16.msra.mxu0 0
    %2116 = vmatprep.subr.bf16.mxu0 0
    %2117 = vmatpush1.bf16.msra.mxu0 0
    %2118 = vmatprep.subr.bf16.mxu0 0
    %2119 = vmatpush1.bf16.msra.mxu0 0
    %2120 = vmatprep.subr.bf16.mxu0 0
    %2121 = vmatpush1.bf16.msra.mxu0 0
    %2122 = vmatprep.mubr.bf16.mxu0 0
    %2123 = vmatmul.mubr.bf16.gmra.mrb[0].mxu0 %v1528
    %v2124 = vpop.f32.mrb[0].mxu0
    %v2125 = vadd.f32 %v2082, %v2124
    %v2126 = vpop.f32.mrb[0].mxu0
    %v2127 = vadd.f32 %v2084, %v2126
    %v2128 = vpop.f32.mrb[0].mxu0
    %v2129 = vadd.f32 %v2086, %v2128
    %v2130 = vpop.f32.mrb[0].mxu0
    %v2131 = vadd.f32 %v2088, %v2130
    %2132 = vdwg.mxu0
    %2133 = vmatprep.subr.bf16.mxu0 0
    %2134 = vmatpush1.bf16.msra.mxu0 %v1905
    %2135 = vmatprep.subr.bf16.mxu0 0
    %2136 = vmatpush1.bf16.msra.mxu0 %v1908
    %2137 = vmatprep.subr.bf16.mxu0 0
    %2138 = vmatpush1.bf16.msra.mxu0 %v1911
    %2139 = vmatprep.subr.bf16.mxu0 0
    %2140 = vmatpush1.bf16.msra.mxu0 %v1914
    %2141 = vmatprep.subr.bf16.mxu0 0
    %2142 = vmatpush1.bf16.msra.mxu0 %v1917
    %2143 = vmatprep.subr.bf16.mxu0 0
    %2144 = vmatpush1.bf16.msra.mxu0 %v1920
    %2145 = vmatprep.subr.bf16.mxu0 0
    %2146 = vmatpush1.bf16.msra.mxu0 %v1923
    %2147 = vmatprep.subr.bf16.mxu0 0
    %2148 = vmatpush1.bf16.msra.mxu0 %v1926
    %2149 = vmatprep.subr.bf16.mxu0 0
    %2150 = vmatpush1.bf16.msra.mxu0 %v1929
    %2151 = vmatprep.subr.bf16.mxu0 0
    %2152 = vmatpush1.bf16.msra.mxu0 %v1932
    %2153 = vmatprep.subr.bf16.mxu0 0
    %2154 = vmatpush1.bf16.msra.mxu0 %v1935
    %2155 = vmatprep.subr.bf16.mxu0 0
    %2156 = vmatpush1.bf16.msra.mxu0 %v1938
    %2157 = vmatprep.subr.bf16.mxu0 0
    %2158 = vmatpush1.bf16.msra.mxu0 %v1941
    %2159 = vmatprep.subr.bf16.mxu0 0
    %2160 = vmatpush1.bf16.msra.mxu0 %v1944
    %2161 = vmatprep.subr.bf16.mxu0 0
    %2162 = vmatpush1.bf16.msra.mxu0 %v1947
    %2163 = vmatprep.subr.bf16.mxu0 0
    %2164 = vmatpush1.bf16.msra.mxu0 %v1950
    %2165 = vmatprep.mubr.bf16.mxu0 %v1527
    %2166 = vmatmul.mubr.bf16.gmra.mrb[0].mxu0 %v1526
    %v2167 = vpop.f32.mrb[0].mxu0
    %v2168 = vadd.f32 %v1659, %v2167
    %v2169 = vpop.f32.mrb[0].mxu0
    %v2170 = vpop.f32.mrb[0].mxu0
    %v2171 = vadd.f32 %v1659, %v2170
    %v2172 = vpop.f32.mrb[0].mxu0
    %2173 = vdwg.mxu0
    %2174 = vmatprep.subr.bf16.mxu0 0
    %2175 = vmatpush1.bf16.msra.mxu0 %v1953
    %2176 = vmatprep.subr.bf16.mxu0 0
    %2177 = vmatpush1.bf16.msra.mxu0 %v1956
    %2178 = vmatprep.subr.bf16.mxu0 0
    %2179 = vmatpush1.bf16.msra.mxu0 %v1959
    %2180 = vmatprep.subr.bf16.mxu0 0
    %2181 = vmatpush1.bf16.msra.mxu0 %v1962
    %2182 = vmatprep.subr.bf16.mxu0 0
    %2183 = vmatpush1.bf16.msra.mxu0 %v1965
    %2184 = vmatprep.subr.bf16.mxu0 0
    %2185 = vmatpush1.bf16.msra.mxu0 %v1968
    %2186 = vmatprep.subr.bf16.mxu0 0
    %2187 = vmatpush1.bf16.msra.mxu0 %v1971
    %2188 = vmatprep.subr.bf16.mxu0 0
    %2189 = vmatpush1.bf16.msra.mxu0 %v1974
    %2190 = vmatprep.subr.bf16.mxu0 0
    %2191 = vmatpush1.bf16.msra.mxu0 0
    %2192 = vmatprep.subr.bf16.mxu0 0
    %2193 = vmatpush1.bf16.msra.mxu0 0
    %2194 = vmatprep.subr.bf16.mxu0 0
    %2195 = vmatpush1.bf16.msra.mxu0 0
    %2196 = vmatprep.subr.bf16.mxu0 0
    %2197 = vmatpush1.bf16.msra.mxu0 0
    %2198 = vmatprep.subr.bf16.mxu0 0
    %2199 = vmatpush1.bf16.msra.mxu0 0
    %2200 = vmatprep.subr.bf16.mxu0 0
    %2201 = vmatpush1.bf16.msra.mxu0 0
    %2202 = vmatprep.subr.bf16.mxu0 0
    %2203 = vmatpush1.bf16.msra.mxu0 0
    %2204 = vmatprep.subr.bf16.mxu0 0
    %2205 = vmatpush1.bf16.msra.mxu0 0
    %2206 = vmatprep.mubr.bf16.mxu0 0
    %2207 = vmatmul.mubr.bf16.gmra.mrb[0].mxu0 %v1528
    %v2208 = vpop.f32.mrb[0].mxu0
    %v2209 = vadd.f32 %v2168, %v2208
    %v2210 = vpop.f32.mrb[0].mxu0
    %v2211 = vpop.f32.mrb[0].mxu0
    %v2212 = vadd.f32 %v2171, %v2211
    %v2213 = vpop.f32.mrb[0].mxu0
    %2214 = vdwg.mxu0
    %v2215 = vmax.f32 %v2125, 0.0
    %v2216 = vmax.f32 %v2127, 0.0
    %v2217 = vmax.f32 %v2209, 0.0
    %v2218 = vmax.f32 %v2129, 0.0
    %v2219 = vmax.f32 %v2131, 0.0
    %v2220 = vmax.f32 %v2212, 0.0
    %v2221 = vpack.c.bf16 %v2218, %v2215
    %v2222 = vpack.c.bf16 %v2219, %v2216
    %v2223 = vpack.c.bf16 %v2220, %v2217
    %v2227 = vunpack.c.l.b16 %v2221
    %v2228 = vunpack.c.l.b16 %v2222
    %v2229 = vunpack.c.l.b16 %v2223
    %v2230 = vunpack.c.h.b16 %v2221
    %v2231 = vunpack.c.h.b16 %v2222
    %v2232 = vunpack.c.h.b16 %v2223
    %v2233 = vpack.c.b16 %v2228, %v2227
    %v2234 = vpack.c.b16 %v2229, %v2229
    %v2235 = vpack.c.b16 %v2231, %v2230
    %v2236 = vpack.c.b16 %v2232, %v2232
    %2241 = vst [vmem:[%s16] sm:$0xff] %v2233
    %2242 = vst [vmem:[%s16 + $0x8] sm:$0xf] %v2234
    %2243 = vst [vmem:[%s16 + $0xc] sm:$0xff] %v2235
    %2244 = vst [vmem:[%s16 + $0x14] sm:$0xf] %v2236
    %v2245 = vld [vmem:[#allocation6] sm:$0xff]
    %v2246 = vld [vmem:[#allocation6 + $0x8] sm:$0xf]
    %v2247 = vld [vmem:[#allocation6 + $0xc] sm:$0xff]
    %v2248 = vld [vmem:[#allocation6 + $0x14] sm:$0xf]
    %v2249 = vld [vmem:[#allocation6 + $0x18] sm:$0xff]
    %v2250 = vld [vmem:[#allocation6 + $0x20] sm:$0xf]
    %v2251 = vld [vmem:[#allocation6 + $0x24] sm:$0xff]
    %v2252 = vld [vmem:[#allocation6 + $0x2c] sm:$0xf]
    %v2253 = vld [vmem:[#allocation6 + $0x30] sm:$0xff]
    %v2254 = vld [vmem:[#allocation6 + $0x38] sm:$0xf]
    %v2255 = vld [vmem:[#allocation6 + $0x3c] sm:$0xff]
    %v2256 = vld [vmem:[#allocation6 + $0x44] sm:$0xf]
    %v2257 = vld [vmem:[#allocation6 + $0x48] sm:$0xff]
    %v2258 = vld [vmem:[#allocation6 + $0x50] sm:$0xf]
    %v2259 = vld [vmem:[#allocation6 + $0x54] sm:$0xff]
    %v2260 = vld [vmem:[#allocation6 + $0x5c] sm:$0xf]
    %v2261 = vld [vmem:[#allocation6 + $0x60] sm:$0xff]
    %v2262 = vld [vmem:[#allocation6 + $0x68] sm:$0xf]
    %v2263 = vld [vmem:[#allocation6 + $0x6c] sm:$0xff]
    %v2264 = vld [vmem:[#allocation6 + $0x74] sm:$0xf]
    %v2265 = vld [vmem:[#allocation6 + $0x78] sm:$0xff]
    %v2266 = vld [vmem:[#allocation6 + $0x80] sm:$0xf]
    %v2267 = vld [vmem:[#allocation6 + $0x84] sm:$0xff]
    %v2268 = vld [vmem:[#allocation6 + $0x8c] sm:$0xf]
    %v2269 = vld [vmem:[#allocation6 + $0x90] sm:$0xff]
    %v2270 = vld [vmem:[#allocation6 + $0x98] sm:$0xf]
    %v2271 = vld [vmem:[#allocation6 + $0x9c] sm:$0xff]
    %v2272 = vld [vmem:[#allocation6 + $0xa4] sm:$0xf]
    %v2273 = vld [vmem:[#allocation6 + $0xa8] sm:$0xff]
    %v2274 = vld [vmem:[#allocation6 + $0xb0] sm:$0xf]
    %v2275 = vld [vmem:[#allocation6 + $0xb4] sm:$0xff]
    %v2276 = vld [vmem:[#allocation6 + $0xbc] sm:$0xf]
    %v2277 = vld [vmem:[#allocation6 + $0xc0] sm:$0xff]
    %v2278 = vld [vmem:[#allocation6 + $0xc8] sm:$0xf]
    %v2279 = vld [vmem:[#allocation6 + $0xcc] sm:$0xff]
    %v2280 = vld [vmem:[#allocation6 + $0xd4] sm:$0xf]
    %v2281 = vld [vmem:[#allocation6 + $0xd8] sm:$0xff]
    %v2282 = vld [vmem:[#allocation6 + $0xe0] sm:$0xf]
    %v2283 = vld [vmem:[#allocation6 + $0xe4] sm:$0xff]
    %v2284 = vld [vmem:[#allocation6 + $0xec] sm:$0xf]
    %v2285 = vld [vmem:[#allocation6 + $0xf0] sm:$0xff]
    %v2286 = vld [vmem:[#allocation6 + $0xf8] sm:$0xf]
    %v2287 = vld [vmem:[#allocation6 + $0xfc] sm:$0xff]
    %v2288 = vld [vmem:[#allocation6 + $0x104] sm:$0xf]
    %v2289 = vld [vmem:[#allocation6 + $0x108] sm:$0xff]
    %v2290 = vld [vmem:[#allocation6 + $0x110] sm:$0xf]
    %v2291 = vld [vmem:[#allocation6 + $0x114] sm:$0xff]
    %v2292 = vld [vmem:[#allocation6 + $0x11c] sm:$0xf]
    %v2293 = vld [vmem:[#allocation6 + $0x120] sm:$0xff]
    %v2294 = vld [vmem:[#allocation6 + $0x128] sm:$0xf]
    %v2295 = vld [vmem:[#allocation6 + $0x12c] sm:$0xff]
    %v2296 = vld [vmem:[#allocation6 + $0x134] sm:$0xf]
    %v2297 = vld [vmem:[#allocation6 + $0x138] sm:$0xff]
    %v2298 = vld [vmem:[#allocation6 + $0x140] sm:$0xf]
    %v2299 = vld [vmem:[#allocation6 + $0x144] sm:$0xff]
    %v2300 = vld [vmem:[#allocation6 + $0x14c] sm:$0xf]
    %v2301 = vld [vmem:[#allocation6 + $0x150] sm:$0xff]
    %v2302 = vld [vmem:[#allocation6 + $0x158] sm:$0xf]
    %v2303 = vld [vmem:[#allocation6 + $0x15c] sm:$0xff]
    %v2304 = vld [vmem:[#allocation6 + $0x164] sm:$0xf]
    %v2305 = vld [vmem:[#allocation6 + $0x168] sm:$0xff]
    %v2306 = vld [vmem:[#allocation6 + $0x170] sm:$0xf]
    %v2307 = vld [vmem:[#allocation6 + $0x174] sm:$0xff]
    %v2308 = vld [vmem:[#allocation6 + $0x17c] sm:$0xf]
    %v2309 = vld [vmem:[#allocation6 + $0x180] sm:$0xff]
    %v2310 = vld [vmem:[#allocation6 + $0x188] sm:$0xf]
    %v2311 = vld [vmem:[#allocation6 + $0x18c] sm:$0xff]
    %v2312 = vld [vmem:[#allocation6 + $0x194] sm:$0xf]
    %v2313 = vld [vmem:[#allocation6 + $0x198] sm:$0xff]
    %v2314 = vld [vmem:[#allocation6 + $0x1a0] sm:$0xf]
    %v2315 = vld [vmem:[#allocation6 + $0x1a4] sm:$0xff]
    %v2316 = vld [vmem:[#allocation6 + $0x1ac] sm:$0xf]
    %v2317 = vld [vmem:[#allocation6 + $0x1b0] sm:$0xff]
    %v2318 = vld [vmem:[#allocation6 + $0x1b8] sm:$0xf]
    %v2319 = vld [vmem:[#allocation6 + $0x1bc] sm:$0xff]
    %v2320 = vld [vmem:[#allocation6 + $0x1c4] sm:$0xf]
    %v2321 = vld [vmem:[#allocation6 + $0x1c8] sm:$0xff]
    %v2322 = vld [vmem:[#allocation6 + $0x1d0] sm:$0xf]
    %v2323 = vld [vmem:[#allocation6 + $0x1d4] sm:$0xff]
    %v2324 = vld [vmem:[#allocation6 + $0x1dc] sm:$0xf]
    %v2325 = vld [vmem:[#allocation6 + $0x1e0] sm:$0xff]
    %v2326 = vld [vmem:[#allocation6 + $0x1e8] sm:$0xf]
    %v2327 = vld [vmem:[#allocation6 + $0x1ec] sm:$0xff]
    %v2328 = vld [vmem:[#allocation6 + $0x1f4] sm:$0xf]
    %v2329 = vld [vmem:[#allocation6 + $0x1f8] sm:$0xff]
    %v2330 = vld [vmem:[#allocation6 + $0x200] sm:$0xf]
    %v2331 = vld [vmem:[#allocation6 + $0x204] sm:$0xff]
    %v2332 = vld [vmem:[#allocation6 + $0x20c] sm:$0xf]
    %v2333 = vld [vmem:[#allocation6 + $0x210] sm:$0xff]
    %v2334 = vld [vmem:[#allocation6 + $0x218] sm:$0xf]
    %v2335 = vld [vmem:[#allocation6 + $0x21c] sm:$0xff]
    %v2336 = vld [vmem:[#allocation6 + $0x224] sm:$0xf]
    %v2337 = vld [vmem:[#allocation6 + $0x228] sm:$0xff]
    %v2338 = vld [vmem:[#allocation6 + $0x230] sm:$0xf]
    %v2339 = vld [vmem:[#allocation6 + $0x234] sm:$0xff]
    %v2340 = vld [vmem:[#allocation6 + $0x23c] sm:$0xf]
    %v2341 = vld [vmem:[%s10] sm:$0x7]
    %v2343 = vlaneseq
    %v2344 = vshrl.u32 %v2343, 7
    %v2345 = vsub.s32 0, %v2344
    %v2346 = vrot.slane %v2341, %v2345
    %v2347 = vlaneseq
    %v2348 = vshrl.u32 %v2347, 7
    %v2349 = vsub.s32 1, %v2348
    %v2350 = vrot.slane %v2341, %v2349
    %v2351 = vlaneseq
    %v2352 = vshrl.u32 %v2351, 7
    %v2353 = vsub.s32 2, %v2352
    %v2354 = vrot.slane %v2341, %v2353
    %v2454 = vunpack.c.l.b16 %v2245
    %v2455 = vunpack.c.h.b16 %v2245
    %v2456 = vunpack.c.l.b16 %v2246
    %v2457 = vunpack.c.l.b16 %v2247
    %v2458 = vunpack.c.h.b16 %v2247
    %v2459 = vunpack.c.l.b16 %v2248
    %v2460 = vunpack.c.l.b16 %v2249
    %v2461 = vunpack.c.h.b16 %v2249
    %v2462 = vunpack.c.l.b16 %v2250
    %v2463 = vunpack.c.l.b16 %v2251
    %v2464 = vunpack.c.h.b16 %v2251
    %v2465 = vunpack.c.l.b16 %v2252
    %v2466 = vunpack.c.l.b16 %v2253
    %v2467 = vunpack.c.h.b16 %v2253
    %v2468 = vunpack.c.l.b16 %v2254
    %v2469 = vunpack.c.l.b16 %v2255
    %v2470 = vunpack.c.h.b16 %v2255
    %v2471 = vunpack.c.l.b16 %v2256
    %v2472 = vunpack.c.l.b16 %v2257
    %v2473 = vunpack.c.h.b16 %v2257
    %v2474 = vunpack.c.l.b16 %v2258
    %v2475 = vunpack.c.l.b16 %v2259
    %v2476 = vunpack.c.h.b16 %v2259
    %v2477 = vunpack.c.l.b16 %v2260
    %v2478 = vunpack.c.l.b16 %v2261
    %v2479 = vunpack.c.h.b16 %v2261
    %v2480 = vunpack.c.l.b16 %v2262
    %v2481 = vunpack.c.l.b16 %v2263
    %v2482 = vunpack.c.h.b16 %v2263
    %v2483 = vunpack.c.l.b16 %v2264
    %v2484 = vunpack.c.l.b16 %v2265
    %v2485 = vunpack.c.h.b16 %v2265
    %v2486 = vunpack.c.l.b16 %v2266
    %v2487 = vunpack.c.l.b16 %v2267
    %v2488 = vunpack.c.h.b16 %v2267
    %v2489 = vunpack.c.l.b16 %v2268
    %v2490 = vunpack.c.l.b16 %v2269
    %v2491 = vunpack.c.h.b16 %v2269
    %v2492 = vunpack.c.l.b16 %v2270
    %v2493 = vunpack.c.l.b16 %v2271
    %v2494 = vunpack.c.h.b16 %v2271
    %v2495 = vunpack.c.l.b16 %v2272
    %v2496 = vunpack.c.l.b16 %v2273
    %v2497 = vunpack.c.h.b16 %v2273
    %v2498 = vunpack.c.l.b16 %v2274
    %v2499 = vunpack.c.l.b16 %v2275
    %v2500 = vunpack.c.h.b16 %v2275
    %v2501 = vunpack.c.l.b16 %v2276
    %v2502 = vunpack.c.l.b16 %v2277
    %v2503 = vunpack.c.h.b16 %v2277
    %v2504 = vunpack.c.l.b16 %v2278
    %v2505 = vunpack.c.l.b16 %v2279
    %v2506 = vunpack.c.h.b16 %v2279
    %v2507 = vunpack.c.l.b16 %v2280
    %v2508 = vunpack.c.l.b16 %v2281
    %v2509 = vunpack.c.h.b16 %v2281
    %v2510 = vunpack.c.l.b16 %v2282
    %v2511 = vunpack.c.l.b16 %v2283
    %v2512 = vunpack.c.h.b16 %v2283
    %v2513 = vunpack.c.l.b16 %v2284
    %v2514 = vunpack.c.l.b16 %v2285
    %v2515 = vunpack.c.h.b16 %v2285
    %v2516 = vunpack.c.l.b16 %v2286
    %v2517 = vunpack.c.l.b16 %v2287
    %v2518 = vunpack.c.h.b16 %v2287
    %v2519 = vunpack.c.l.b16 %v2288
    %v2520 = vunpack.c.l.b16 %v2289
    %v2521 = vunpack.c.h.b16 %v2289
    %v2522 = vunpack.c.l.b16 %v2290
    %v2523 = vunpack.c.l.b16 %v2291
    %v2524 = vunpack.c.h.b16 %v2291
    %v2525 = vunpack.c.l.b16 %v2292
    %v2526 = vunpack.c.l.b16 %v2293
    %v2527 = vunpack.c.h.b16 %v2293
    %v2528 = vunpack.c.l.b16 %v2294
    %v2529 = vunpack.c.l.b16 %v2295
    %v2530 = vunpack.c.h.b16 %v2295
    %v2531 = vunpack.c.l.b16 %v2296
    %v2532 = vunpack.c.l.b16 %v2297
    %v2533 = vunpack.c.h.b16 %v2297
    %v2534 = vunpack.c.l.b16 %v2298
    %v2535 = vunpack.c.l.b16 %v2299
    %v2536 = vunpack.c.h.b16 %v2299
    %v2537 = vunpack.c.l.b16 %v2300
    %v2538 = vunpack.c.l.b16 %v2301
    %v2539 = vunpack.c.h.b16 %v2301
    %v2540 = vunpack.c.l.b16 %v2302
    %v2541 = vunpack.c.l.b16 %v2303
    %v2542 = vunpack.c.h.b16 %v2303
    %v2543 = vunpack.c.l.b16 %v2304
    %v2544 = vunpack.c.l.b16 %v2305
    %v2545 = vunpack.c.h.b16 %v2305
    %v2546 = vunpack.c.l.b16 %v2306
    %v2547 = vunpack.c.l.b16 %v2307
    %v2548 = vunpack.c.h.b16 %v2307
    %v2549 = vunpack.c.l.b16 %v2308
    %v2550 = vunpack.c.l.b16 %v2309
    %v2551 = vunpack.c.h.b16 %v2309
    %v2552 = vunpack.c.l.b16 %v2310
    %v2553 = vunpack.c.l.b16 %v2311
    %v2554 = vunpack.c.h.b16 %v2311
    %v2555 = vunpack.c.l.b16 %v2312
    %v2556 = vunpack.c.l.b16 %v2313
    %v2557 = vunpack.c.h.b16 %v2313
    %v2558 = vunpack.c.l.b16 %v2314
    %v2559 = vunpack.c.l.b16 %v2315
    %v2560 = vunpack.c.h.b16 %v2315
    %v2561 = vunpack.c.l.b16 %v2316
    %v2562 = vunpack.c.l.b16 %v2317
    %v2563 = vunpack.c.h.b16 %v2317
    %v2564 = vunpack.c.l.b16 %v2318
    %v2565 = vunpack.c.l.b16 %v2319
    %v2566 = vunpack.c.h.b16 %v2319
    %v2567 = vunpack.c.l.b16 %v2320
    %v2568 = vunpack.c.l.b16 %v2321
    %v2569 = vunpack.c.h.b16 %v2321
    %v2570 = vunpack.c.l.b16 %v2322
    %v2571 = vunpack.c.l.b16 %v2323
    %v2572 = vunpack.c.h.b16 %v2323
    %v2573 = vunpack.c.l.b16 %v2324
    %v2574 = vunpack.c.l.b16 %v2325
    %v2575 = vunpack.c.h.b16 %v2325
    %v2576 = vunpack.c.l.b16 %v2326
    %v2577 = vunpack.c.l.b16 %v2327
    %v2578 = vunpack.c.h.b16 %v2327
    %v2579 = vunpack.c.l.b16 %v2328
    %v2580 = vunpack.c.l.b16 %v2329
    %v2581 = vunpack.c.h.b16 %v2329
    %v2582 = vunpack.c.l.b16 %v2330
    %v2583 = vunpack.c.l.b16 %v2331
    %v2584 = vunpack.c.h.b16 %v2331
    %v2585 = vunpack.c.l.b16 %v2332
    %v2586 = vunpack.c.l.b16 %v2333
    %v2587 = vunpack.c.h.b16 %v2333
    %v2588 = vunpack.c.l.b16 %v2334
    %v2589 = vunpack.c.l.b16 %v2335
    %v2590 = vunpack.c.h.b16 %v2335
    %v2591 = vunpack.c.l.b16 %v2336
    %v2592 = vunpack.c.l.b16 %v2337
    %v2593 = vunpack.c.h.b16 %v2337
    %v2594 = vunpack.c.l.b16 %v2338
    %v2595 = vunpack.c.l.b16 %v2339
    %v2596 = vunpack.c.h.b16 %v2339
    %v2597 = vunpack.c.l.b16 %v2340
    %v2598 = vpack.c.b16 %v2457, %v2454
    %v2599 = vpack.c.b16 %v2458, %v2455
    %v2600 = vpack.c.b16 %v2459, %v2456
    %v2601 = vpack.c.b16 %v2463, %v2460
    %v2602 = vpack.c.b16 %v2464, %v2461
    %v2603 = vpack.c.b16 %v2465, %v2462
    %v2604 = vpack.c.b16 %v2469, %v2466
    %v2605 = vpack.c.b16 %v2470, %v2467
    %v2606 = vpack.c.b16 %v2471, %v2468
    %v2607 = vpack.c.b16 %v2475, %v2472
    %v2608 = vpack.c.b16 %v2476, %v2473
    %v2609 = vpack.c.b16 %v2477, %v2474
    %v2610 = vpack.c.b16 %v2481, %v2478
    %v2611 = vpack.c.b16 %v2482, %v2479
    %v2612 = vpack.c.b16 %v2483, %v2480
    %v2613 = vpack.c.b16 %v2487, %v2484
    %v2614 = vpack.c.b16 %v2488, %v2485
    %v2615 = vpack.c.b16 %v2489, %v2486
    %v2616 = vpack.c.b16 %v2493, %v2490
    %v2617 = vpack.c.b16 %v2494, %v2491
    %v2618 = vpack.c.b16 %v2495, %v2492
    %v2619 = vpack.c.b16 %v2499, %v2496
    %v2620 = vpack.c.b16 %v2500, %v2497
    %v2621 = vpack.c.b16 %v2501, %v2498
    %v2622 = vpack.c.b16 %v2505, %v2502
    %v2623 = vpack.c.b16 %v2506, %v2503
    %v2624 = vpack.c.b16 %v2507, %v2504
    %v2625 = vpack.c.b16 %v2511, %v2508
    %v2626 = vpack.c.b16 %v2512, %v2509
    %v2627 = vpack.c.b16 %v2513, %v2510
    %v2628 = vpack.c.b16 %v2517, %v2514
    %v2629 = vpack.c.b16 %v2518, %v2515
    %v2630 = vpack.c.b16 %v2519, %v2516
    %v2631 = vpack.c.b16 %v2523, %v2520
    %v2632 = vpack.c.b16 %v2524, %v2521
    %v2633 = vpack.c.b16 %v2525, %v2522
    %v2634 = vpack.c.b16 %v2529, %v2526
    %v2635 = vpack.c.b16 %v2530, %v2527
    %v2636 = vpack.c.b16 %v2531, %v2528
    %v2637 = vpack.c.b16 %v2535, %v2532
    %v2638 = vpack.c.b16 %v2536, %v2533
    %v2639 = vpack.c.b16 %v2537, %v2534
    %v2640 = vpack.c.b16 %v2541, %v2538
    %v2641 = vpack.c.b16 %v2542, %v2539
    %v2642 = vpack.c.b16 %v2543, %v2540
    %v2643 = vpack.c.b16 %v2547, %v2544
    %v2644 = vpack.c.b16 %v2548, %v2545
    %v2645 = vpack.c.b16 %v2549, %v2546
    %v2646 = vpack.c.b16 %v2553, %v2550
    %v2647 = vpack.c.b16 %v2554, %v2551
    %v2648 = vpack.c.b16 %v2555, %v2552
    %v2649 = vpack.c.b16 %v2559, %v2556
    %v2650 = vpack.c.b16 %v2560, %v2557
    %v2651 = vpack.c.b16 %v2561, %v2558
    %v2652 = vpack.c.b16 %v2565, %v2562
    %v2653 = vpack.c.b16 %v2566, %v2563
    %v2654 = vpack.c.b16 %v2567, %v2564
    %v2655 = vpack.c.b16 %v2571, %v2568
    %v2656 = vpack.c.b16 %v2572, %v2569
    %v2657 = vpack.c.b16 %v2573, %v2570
    %v2658 = vpack.c.b16 %v2577, %v2574
    %v2659 = vpack.c.b16 %v2578, %v2575
    %v2660 = vpack.c.b16 %v2579, %v2576
    %v2661 = vpack.c.b16 %v2583, %v2580
    %v2662 = vpack.c.b16 %v2584, %v2581
    %v2663 = vpack.c.b16 %v2585, %v2582
    %v2664 = vpack.c.b16 %v2589, %v2586
    %v2665 = vpack.c.b16 %v2590, %v2587
    %v2666 = vpack.c.b16 %v2591, %v2588
    %v2667 = vpack.c.b16 %v2595, %v2592
    %v2668 = vpack.c.b16 %v2596, %v2593
    %v2669 = vpack.c.b16 %v2597, %v2594
    %2742 = vmatprep.subr.bf16.mxu0 %v2599
    %2743 = vmatpush1.bf16.msra.mxu0 %v2598
    %2744 = vmatprep.subr.bf16.mxu0 %v2602
    %2745 = vmatpush1.bf16.msra.mxu0 %v2601
    %2746 = vmatprep.subr.bf16.mxu0 %v2605
    %2747 = vmatpush1.bf16.msra.mxu0 %v2604
    %2748 = vmatprep.subr.bf16.mxu0 %v2608
    %2749 = vmatpush1.bf16.msra.mxu0 %v2607
    %2750 = vmatprep.subr.bf16.mxu0 %v2611
    %2751 = vmatpush1.bf16.msra.mxu0 %v2610
    %2752 = vmatprep.subr.bf16.mxu0 %v2614
    %2753 = vmatpush1.bf16.msra.mxu0 %v2613
    %2754 = vmatprep.subr.bf16.mxu0 %v2617
    %2755 = vmatpush1.bf16.msra.mxu0 %v2616
    %2756 = vmatprep.subr.bf16.mxu0 %v2620
    %2757 = vmatpush1.bf16.msra.mxu0 %v2619
    %2758 = vmatprep.subr.bf16.mxu0 %v2623
    %2759 = vmatpush1.bf16.msra.mxu0 %v2622
    %2760 = vmatprep.subr.bf16.mxu0 %v2626
    %2761 = vmatpush1.bf16.msra.mxu0 %v2625
    %2762 = vmatprep.subr.bf16.mxu0 %v2629
    %2763 = vmatpush1.bf16.msra.mxu0 %v2628
    %2764 = vmatprep.subr.bf16.mxu0 %v2632
    %2765 = vmatpush1.bf16.msra.mxu0 %v2631
    %2766 = vmatprep.subr.bf16.mxu0 %v2635
    %2767 = vmatpush1.bf16.msra.mxu0 %v2634
    %2768 = vmatprep.subr.bf16.mxu0 %v2638
    %2769 = vmatpush1.bf16.msra.mxu0 %v2637
    %2770 = vmatprep.subr.bf16.mxu0 %v2641
    %2771 = vmatpush1.bf16.msra.mxu0 %v2640
    %2772 = vmatprep.subr.bf16.mxu0 %v2644
    %2773 = vmatpush1.bf16.msra.mxu0 %v2643
    %2774 = vmatprep.mubr.bf16.mxu0 %v2222
    %2775 = vmatmul.mubr.bf16.gmra.mrb[0].mxu0 %v2221
    %v2776 = vpop.f32.mrb[0].mxu0
    %v2777 = vadd.f32 %v2346, %v2776
    %v2778 = vpop.f32.mrb[0].mxu0
    %v2779 = vadd.f32 %v2350, %v2778
    %v2780 = vpop.f32.mrb[0].mxu0
    %v2781 = vadd.f32 %v2346, %v2780
    %v2782 = vpop.f32.mrb[0].mxu0
    %v2783 = vadd.f32 %v2350, %v2782
    %2784 = vdwg.mxu0
    %2785 = vmatprep.subr.bf16.mxu0 %v2647
    %2786 = vmatpush1.bf16.msra.mxu0 %v2646
    %2787 = vmatprep.subr.bf16.mxu0 %v2650
    %2788 = vmatpush1.bf16.msra.mxu0 %v2649
    %2789 = vmatprep.subr.bf16.mxu0 %v2653
    %2790 = vmatpush1.bf16.msra.mxu0 %v2652
    %2791 = vmatprep.subr.bf16.mxu0 %v2656
    %2792 = vmatpush1.bf16.msra.mxu0 %v2655
    %2793 = vmatprep.subr.bf16.mxu0 %v2659
    %2794 = vmatpush1.bf16.msra.mxu0 %v2658
    %2795 = vmatprep.subr.bf16.mxu0 %v2662
    %2796 = vmatpush1.bf16.msra.mxu0 %v2661
    %2797 = vmatprep.subr.bf16.mxu0 %v2665
    %2798 = vmatpush1.bf16.msra.mxu0 %v2664
    %2799 = vmatprep.subr.bf16.mxu0 %v2668
    %2800 = vmatpush1.bf16.msra.mxu0 %v2667
    %2801 = vmatprep.subr.bf16.mxu0 0
    %2802 = vmatpush1.bf16.msra.mxu0 0
    %2803 = vmatprep.subr.bf16.mxu0 0
    %2804 = vmatpush1.bf16.msra.mxu0 0
    %2805 = vmatprep.subr.bf16.mxu0 0
    %2806 = vmatpush1.bf16.msra.mxu0 0
    %2807 = vmatprep.subr.bf16.mxu0 0
    %2808 = vmatpush1.bf16.msra.mxu0 0
    %2809 = vmatprep.subr.bf16.mxu0 0
    %2810 = vmatpush1.bf16.msra.mxu0 0
    %2811 = vmatprep.subr.bf16.mxu0 0
    %2812 = vmatpush1.bf16.msra.mxu0 0
    %2813 = vmatprep.subr.bf16.mxu0 0
    %2814 = vmatpush1.bf16.msra.mxu0 0
    %2815 = vmatprep.subr.bf16.mxu0 0
    %2816 = vmatpush1.bf16.msra.mxu0 0
    %2817 = vmatprep.mubr.bf16.mxu0 0
    %2818 = vmatmul.mubr.bf16.gmra.mrb[0].mxu0 %v2223
    %v2819 = vpop.f32.mrb[0].mxu0
    %v2820 = vadd.f32 %v2777, %v2819
    %v2821 = vpop.f32.mrb[0].mxu0
    %v2822 = vadd.f32 %v2779, %v2821
    %v2823 = vpop.f32.mrb[0].mxu0
    %v2824 = vadd.f32 %v2781, %v2823
    %v2825 = vpop.f32.mrb[0].mxu0
    %v2826 = vadd.f32 %v2783, %v2825
    %2827 = vdwg.mxu0
    %2828 = vmatprep.subr.bf16.mxu0 0
    %2829 = vmatpush1.bf16.msra.mxu0 %v2600
    %2830 = vmatprep.subr.bf16.mxu0 0
    %2831 = vmatpush1.bf16.msra.mxu0 %v2603
    %2832 = vmatprep.subr.bf16.mxu0 0
    %2833 = vmatpush1.bf16.msra.mxu0 %v2606
    %2834 = vmatprep.subr.bf16.mxu0 0
    %2835 = vmatpush1.bf16.msra.mxu0 %v2609
    %2836 = vmatprep.subr.bf16.mxu0 0
    %2837 = vmatpush1.bf16.msra.mxu0 %v2612
    %2838 = vmatprep.subr.bf16.mxu0 0
    %2839 = vmatpush1.bf16.msra.mxu0 %v2615
    %2840 = vmatprep.subr.bf16.mxu0 0
    %2841 = vmatpush1.bf16.msra.mxu0 %v2618
    %2842 = vmatprep.subr.bf16.mxu0 0
    %2843 = vmatpush1.bf16.msra.mxu0 %v2621
    %2844 = vmatprep.subr.bf16.mxu0 0
    %2845 = vmatpush1.bf16.msra.mxu0 %v2624
    %2846 = vmatprep.subr.bf16.mxu0 0
    %2847 = vmatpush1.bf16.msra.mxu0 %v2627
    %2848 = vmatprep.subr.bf16.mxu0 0
    %2849 = vmatpush1.bf16.msra.mxu0 %v2630
    %2850 = vmatprep.subr.bf16.mxu0 0
    %2851 = vmatpush1.bf16.msra.mxu0 %v2633
    %2852 = vmatprep.subr.bf16.mxu0 0
    %2853 = vmatpush1.bf16.msra.mxu0 %v2636
    %2854 = vmatprep.subr.bf16.mxu0 0
    %2855 = vmatpush1.bf16.msra.mxu0 %v2639
    %2856 = vmatprep.subr.bf16.mxu0 0
    %2857 = vmatpush1.bf16.msra.mxu0 %v2642
    %2858 = vmatprep.subr.bf16.mxu0 0
    %2859 = vmatpush1.bf16.msra.mxu0 %v2645
    %2860 = vmatprep.mubr.bf16.mxu0 %v2222
    %2861 = vmatmul.mubr.bf16.gmra.mrb[0].mxu0 %v2221
    %v2862 = vpop.f32.mrb[0].mxu0
    %v2863 = vadd.f32 %v2354, %v2862
    %v2864 = vpop.f32.mrb[0].mxu0
    %v2865 = vpop.f32.mrb[0].mxu0
    %v2866 = vadd.f32 %v2354, %v2865
    %v2867 = vpop.f32.mrb[0].mxu0
    %2868 = vdwg.mxu0
    %2869 = vmatprep.subr.bf16.mxu0 0
    %2870 = vmatpush1.bf16.msra.mxu0 %v2648
    %2871 = vmatprep.subr.bf16.mxu0 0
    %2872 = vmatpush1.bf16.msra.mxu0 %v2651
    %2873 = vmatprep.subr.bf16.mxu0 0
    %2874 = vmatpush1.bf16.msra.mxu0 %v2654
    %2875 = vmatprep.subr.bf16.mxu0 0
    %2876 = vmatpush1.bf16.msra.mxu0 %v2657
    %2877 = vmatprep.subr.bf16.mxu0 0
    %2878 = vmatpush1.bf16.msra.mxu0 %v2660
    %2879 = vmatprep.subr.bf16.mxu0 0
    %2880 = vmatpush1.bf16.msra.mxu0 %v2663
    %2881 = vmatprep.subr.bf16.mxu0 0
    %2882 = vmatpush1.bf16.msra.mxu0 %v2666
    %2883 = vmatprep.subr.bf16.mxu0 0
    %2884 = vmatpush1.bf16.msra.mxu0 %v2669
    %2885 = vmatprep.subr.bf16.mxu0 0
    %2886 = vmatpush1.bf16.msra.mxu0 0
    %2887 = vmatprep.subr.bf16.mxu0 0
    %2888 = vmatpush1.bf16.msra.mxu0 0
    %2889 = vmatprep.subr.bf16.mxu0 0
    %2890 = vmatpush1.bf16.msra.mxu0 0
    %2891 = vmatprep.subr.bf16.mxu0 0
    %2892 = vmatpush1.bf16.msra.mxu0 0
    %2893 = vmatprep.subr.bf16.mxu0 0
    %2894 = vmatpush1.bf16.msra.mxu0 0
    %2895 = vmatprep.subr.bf16.mxu0 0
    %2896 = vmatpush1.bf16.msra.mxu0 0
    %2897 = vmatprep.subr.bf16.mxu0 0
    %2898 = vmatpush1.bf16.msra.mxu0 0
    %2899 = vmatprep.subr.bf16.mxu0 0
    %2900 = vmatpush1.bf16.msra.mxu0 0
    %2901 = vmatprep.mubr.bf16.mxu0 0
    %2902 = vmatmul.mubr.bf16.gmra.mrb[0].mxu0 %v2223
    %v2903 = vpop.f32.mrb[0].mxu0
    %v2904 = vadd.f32 %v2863, %v2903
    %v2905 = vpop.f32.mrb[0].mxu0
    %v2906 = vpop.f32.mrb[0].mxu0
    %v2907 = vadd.f32 %v2866, %v2906
    %v2908 = vpop.f32.mrb[0].mxu0
    %2909 = vdwg.mxu0
    %v2910 = vmax.f32 %v2820, 0.0
    %v2911 = vmax.f32 %v2822, 0.0
    %v2912 = vmax.f32 %v2904, 0.0
    %v2913 = vmax.f32 %v2824, 0.0
    %v2914 = vmax.f32 %v2826, 0.0
    %v2915 = vmax.f32 %v2907, 0.0
    %v2916 = vpack.c.bf16 %v2913, %v2910
    %v2917 = vpack.c.bf16 %v2914, %v2911
    %v2918 = vpack.c.bf16 %v2915, %v2912
    %v2922 = vunpack.c.l.b16 %v2916
    %v2923 = vunpack.c.l.b16 %v2917
    %v2924 = vunpack.c.l.b16 %v2918
    %v2925 = vunpack.c.h.b16 %v2916
    %v2926 = vunpack.c.h.b16 %v2917
    %v2927 = vunpack.c.h.b16 %v2918
    %v2928 = vpack.c.b16 %v2923, %v2922
    %v2929 = vpack.c.b16 %v2924, %v2924
    %v2930 = vpack.c.b16 %v2926, %v2925
    %v2931 = vpack.c.b16 %v2927, %v2927
    %2936 = vst [vmem:[%s17] sm:$0xff] %v2928
    %2937 = vst [vmem:[%s17 + $0x8] sm:$0xf] %v2929
    %2938 = vst [vmem:[%s17 + $0xc] sm:$0xff] %v2930
    %2939 = vst [vmem:[%s17 + $0x14] sm:$0xf] %v2931
    %v2940 = vld [vmem:[#allocation7] sm:$0xff]
    %v2941 = vld [vmem:[#allocation7 + $0x8] sm:$0xf]
    %v2942 = vld [vmem:[#allocation7 + $0xc] sm:$0xff]
    %v2943 = vld [vmem:[#allocation7 + $0x14] sm:$0xf]
    %v2944 = vld [vmem:[#allocation7 + $0x18] sm:$0xff]
    %v2945 = vld [vmem:[#allocation7 + $0x20] sm:$0xf]
    %v2946 = vld [vmem:[#allocation7 + $0x24] sm:$0xff]
    %v2947 = vld [vmem:[#allocation7 + $0x2c] sm:$0xf]
    %v2948 = vld [vmem:[#allocation7 + $0x30] sm:$0xff]
    %v2949 = vld [vmem:[#allocation7 + $0x38] sm:$0xf]
    %v2950 = vld [vmem:[#allocation7 + $0x3c] sm:$0xff]
    %v2951 = vld [vmem:[#allocation7 + $0x44] sm:$0xf]
    %v2952 = vld [vmem:[#allocation7 + $0x48] sm:$0xff]
    %v2953 = vld [vmem:[#allocation7 + $0x50] sm:$0xf]
    %v2954 = vld [vmem:[#allocation7 + $0x54] sm:$0xff]
    %v2955 = vld [vmem:[#allocation7 + $0x5c] sm:$0xf]
    %v2956 = vld [vmem:[#allocation7 + $0x60] sm:$0xff]
    %v2957 = vld [vmem:[#allocation7 + $0x68] sm:$0xf]
    %v2958 = vld [vmem:[#allocation7 + $0x6c] sm:$0xff]
    %v2959 = vld [vmem:[#allocation7 + $0x74] sm:$0xf]
    %v2960 = vld [vmem:[#allocation7 + $0x78] sm:$0xff]
    %v2961 = vld [vmem:[#allocation7 + $0x80] sm:$0xf]
    %v2962 = vld [vmem:[#allocation7 + $0x84] sm:$0xff]
    %v2963 = vld [vmem:[#allocation7 + $0x8c] sm:$0xf]
    %v2964 = vld [vmem:[#allocation7 + $0x90] sm:$0xff]
    %v2965 = vld [vmem:[#allocation7 + $0x98] sm:$0xf]
    %v2966 = vld [vmem:[#allocation7 + $0x9c] sm:$0xff]
    %v2967 = vld [vmem:[#allocation7 + $0xa4] sm:$0xf]
    %v2968 = vld [vmem:[#allocation7 + $0xa8] sm:$0xff]
    %v2969 = vld [vmem:[#allocation7 + $0xb0] sm:$0xf]
    %v2970 = vld [vmem:[#allocation7 + $0xb4] sm:$0xff]
    %v2971 = vld [vmem:[#allocation7 + $0xbc] sm:$0xf]
    %v2972 = vld [vmem:[#allocation7 + $0xc0] sm:$0xff]
    %v2973 = vld [vmem:[#allocation7 + $0xc8] sm:$0xf]
    %v2974 = vld [vmem:[#allocation7 + $0xcc] sm:$0xff]
    %v2975 = vld [vmem:[#allocation7 + $0xd4] sm:$0xf]
    %v2976 = vld [vmem:[#allocation7 + $0xd8] sm:$0xff]
    %v2977 = vld [vmem:[#allocation7 + $0xe0] sm:$0xf]
    %v2978 = vld [vmem:[#allocation7 + $0xe4] sm:$0xff]
    %v2979 = vld [vmem:[#allocation7 + $0xec] sm:$0xf]
    %v2980 = vld [vmem:[#allocation7 + $0xf0] sm:$0xff]
    %v2981 = vld [vmem:[#allocation7 + $0xf8] sm:$0xf]
    %v2982 = vld [vmem:[#allocation7 + $0xfc] sm:$0xff]
    %v2983 = vld [vmem:[#allocation7 + $0x104] sm:$0xf]
    %v2984 = vld [vmem:[#allocation7 + $0x108] sm:$0xff]
    %v2985 = vld [vmem:[#allocation7 + $0x110] sm:$0xf]
    %v2986 = vld [vmem:[#allocation7 + $0x114] sm:$0xff]
    %v2987 = vld [vmem:[#allocation7 + $0x11c] sm:$0xf]
    %v2988 = vld [vmem:[#allocation7 + $0x120] sm:$0xff]
    %v2989 = vld [vmem:[#allocation7 + $0x128] sm:$0xf]
    %v2990 = vld [vmem:[#allocation7 + $0x12c] sm:$0xff]
    %v2991 = vld [vmem:[#allocation7 + $0x134] sm:$0xf]
    %v2992 = vld [vmem:[#allocation7 + $0x138] sm:$0xff]
    %v2993 = vld [vmem:[#allocation7 + $0x140] sm:$0xf]
    %v2994 = vld [vmem:[#allocation7 + $0x144] sm:$0xff]
    %v2995 = vld [vmem:[#allocation7 + $0x14c] sm:$0xf]
    %v2996 = vld [vmem:[#allocation7 + $0x150] sm:$0xff]
    %v2997 = vld [vmem:[#allocation7 + $0x158] sm:$0xf]
    %v2998 = vld [vmem:[#allocation7 + $0x15c] sm:$0xff]
    %v2999 = vld [vmem:[#allocation7 + $0x164] sm:$0xf]
    %v3000 = vld [vmem:[#allocation7 + $0x168] sm:$0xff]
    %v3001 = vld [vmem:[#allocation7 + $0x170] sm:$0xf]
    %v3002 = vld [vmem:[#allocation7 + $0x174] sm:$0xff]
    %v3003 = vld [vmem:[#allocation7 + $0x17c] sm:$0xf]
    %v3004 = vld [vmem:[#allocation7 + $0x180] sm:$0xff]
    %v3005 = vld [vmem:[#allocation7 + $0x188] sm:$0xf]
    %v3006 = vld [vmem:[#allocation7 + $0x18c] sm:$0xff]
    %v3007 = vld [vmem:[#allocation7 + $0x194] sm:$0xf]
    %v3008 = vld [vmem:[#allocation7 + $0x198] sm:$0xff]
    %v3009 = vld [vmem:[#allocation7 + $0x1a0] sm:$0xf]
    %v3010 = vld [vmem:[#allocation7 + $0x1a4] sm:$0xff]
    %v3011 = vld [vmem:[#allocation7 + $0x1ac] sm:$0xf]
    %v3012 = vld [vmem:[#allocation7 + $0x1b0] sm:$0xff]
    %v3013 = vld [vmem:[#allocation7 + $0x1b8] sm:$0xf]
    %v3014 = vld [vmem:[#allocation7 + $0x1bc] sm:$0xff]
    %v3015 = vld [vmem:[#allocation7 + $0x1c4] sm:$0xf]
    %v3016 = vld [vmem:[#allocation7 + $0x1c8] sm:$0xff]
    %v3017 = vld [vmem:[#allocation7 + $0x1d0] sm:$0xf]
    %v3018 = vld [vmem:[#allocation7 + $0x1d4] sm:$0xff]
    %v3019 = vld [vmem:[#allocation7 + $0x1dc] sm:$0xf]
    %v3020 = vld [vmem:[#allocation7 + $0x1e0] sm:$0xff]
    %v3021 = vld [vmem:[#allocation7 + $0x1e8] sm:$0xf]
    %v3022 = vld [vmem:[#allocation7 + $0x1ec] sm:$0xff]
    %v3023 = vld [vmem:[#allocation7 + $0x1f4] sm:$0xf]
    %v3024 = vld [vmem:[#allocation7 + $0x1f8] sm:$0xff]
    %v3025 = vld [vmem:[#allocation7 + $0x200] sm:$0xf]
    %v3026 = vld [vmem:[#allocation7 + $0x204] sm:$0xff]
    %v3027 = vld [vmem:[#allocation7 + $0x20c] sm:$0xf]
    %v3028 = vld [vmem:[#allocation7 + $0x210] sm:$0xff]
    %v3029 = vld [vmem:[#allocation7 + $0x218] sm:$0xf]
    %v3030 = vld [vmem:[#allocation7 + $0x21c] sm:$0xff]
    %v3031 = vld [vmem:[#allocation7 + $0x224] sm:$0xf]
    %v3032 = vld [vmem:[#allocation7 + $0x228] sm:$0xff]
    %v3033 = vld [vmem:[#allocation7 + $0x230] sm:$0xf]
    %v3034 = vld [vmem:[#allocation7 + $0x234] sm:$0xff]
    %v3035 = vld [vmem:[#allocation7 + $0x23c] sm:$0xf]
    %v3036 = vld [vmem:[%s11] sm:$0x7]
    %v3038 = vlaneseq
    %v3039 = vshrl.u32 %v3038, 7
    %v3040 = vsub.s32 0, %v3039
    %v3041 = vrot.slane %v3036, %v3040
    %v3042 = vlaneseq
    %v3043 = vshrl.u32 %v3042, 7
    %v3044 = vsub.s32 1, %v3043
    %v3045 = vrot.slane %v3036, %v3044
    %v3046 = vlaneseq
    %v3047 = vshrl.u32 %v3046, 7
    %v3048 = vsub.s32 2, %v3047
    %v3049 = vrot.slane %v3036, %v3048
    %v3149 = vunpack.c.l.b16 %v2940
    %v3150 = vunpack.c.h.b16 %v2940
    %v3151 = vunpack.c.l.b16 %v2941
    %v3152 = vunpack.c.l.b16 %v2942
    %v3153 = vunpack.c.h.b16 %v2942
    %v3154 = vunpack.c.l.b16 %v2943
    %v3155 = vunpack.c.l.b16 %v2944
    %v3156 = vunpack.c.h.b16 %v2944
    %v3157 = vunpack.c.l.b16 %v2945
    %v3158 = vunpack.c.l.b16 %v2946
    %v3159 = vunpack.c.h.b16 %v2946
    %v3160 = vunpack.c.l.b16 %v2947
    %v3161 = vunpack.c.l.b16 %v2948
    %v3162 = vunpack.c.h.b16 %v2948
    %v3163 = vunpack.c.l.b16 %v2949
    %v3164 = vunpack.c.l.b16 %v2950
    %v3165 = vunpack.c.h.b16 %v2950
    %v3166 = vunpack.c.l.b16 %v2951
    %v3167 = vunpack.c.l.b16 %v2952
    %v3168 = vunpack.c.h.b16 %v2952
    %v3169 = vunpack.c.l.b16 %v2953
    %v3170 = vunpack.c.l.b16 %v2954
    %v3171 = vunpack.c.h.b16 %v2954
    %v3172 = vunpack.c.l.b16 %v2955
    %v3173 = vunpack.c.l.b16 %v2956
    %v3174 = vunpack.c.h.b16 %v2956
    %v3175 = vunpack.c.l.b16 %v2957
    %v3176 = vunpack.c.l.b16 %v2958
    %v3177 = vunpack.c.h.b16 %v2958
    %v3178 = vunpack.c.l.b16 %v2959
    %v3179 = vunpack.c.l.b16 %v2960
    %v3180 = vunpack.c.h.b16 %v2960
    %v3181 = vunpack.c.l.b16 %v2961
    %v3182 = vunpack.c.l.b16 %v2962
    %v3183 = vunpack.c.h.b16 %v2962
    %v3184 = vunpack.c.l.b16 %v2963
    %v3185 = vunpack.c.l.b16 %v2964
    %v3186 = vunpack.c.h.b16 %v2964
    %v3187 = vunpack.c.l.b16 %v2965
    %v3188 = vunpack.c.l.b16 %v2966
    %v3189 = vunpack.c.h.b16 %v2966
    %v3190 = vunpack.c.l.b16 %v2967
    %v3191 = vunpack.c.l.b16 %v2968
    %v3192 = vunpack.c.h.b16 %v2968
    %v3193 = vunpack.c.l.b16 %v2969
    %v3194 = vunpack.c.l.b16 %v2970
    %v3195 = vunpack.c.h.b16 %v2970
    %v3196 = vunpack.c.l.b16 %v2971
    %v3197 = vunpack.c.l.b16 %v2972
    %v3198 = vunpack.c.h.b16 %v2972
    %v3199 = vunpack.c.l.b16 %v2973
    %v3200 = vunpack.c.l.b16 %v2974
    %v3201 = vunpack.c.h.b16 %v2974
    %v3202 = vunpack.c.l.b16 %v2975
    %v3203 = vunpack.c.l.b16 %v2976
    %v3204 = vunpack.c.h.b16 %v2976
    %v3205 = vunpack.c.l.b16 %v2977
    %v3206 = vunpack.c.l.b16 %v2978
    %v3207 = vunpack.c.h.b16 %v2978
    %v3208 = vunpack.c.l.b16 %v2979
    %v3209 = vunpack.c.l.b16 %v2980
    %v3210 = vunpack.c.h.b16 %v2980
    %v3211 = vunpack.c.l.b16 %v2981
    %v3212 = vunpack.c.l.b16 %v2982
    %v3213 = vunpack.c.h.b16 %v2982
    %v3214 = vunpack.c.l.b16 %v2983
    %v3215 = vunpack.c.l.b16 %v2984
    %v3216 = vunpack.c.h.b16 %v2984
    %v3217 = vunpack.c.l.b16 %v2985
    %v3218 = vunpack.c.l.b16 %v2986
    %v3219 = vunpack.c.h.b16 %v2986
    %v3220 = vunpack.c.l.b16 %v2987
    %v3221 = vunpack.c.l.b16 %v2988
    %v3222 = vunpack.c.h.b16 %v2988
    %v3223 = vunpack.c.l.b16 %v2989
    %v3224 = vunpack.c.l.b16 %v2990
    %v3225 = vunpack.c.h.b16 %v2990
    %v3226 = vunpack.c.l.b16 %v2991
    %v3227 = vunpack.c.l.b16 %v2992
    %v3228 = vunpack.c.h.b16 %v2992
    %v3229 = vunpack.c.l.b16 %v2993
    %v3230 = vunpack.c.l.b16 %v2994
    %v3231 = vunpack.c.h.b16 %v2994
    %v3232 = vunpack.c.l.b16 %v2995
    %v3233 = vunpack.c.l.b16 %v2996
    %v3234 = vunpack.c.h.b16 %v2996
    %v3235 = vunpack.c.l.b16 %v2997
    %v3236 = vunpack.c.l.b16 %v2998
    %v3237 = vunpack.c.h.b16 %v2998
    %v3238 = vunpack.c.l.b16 %v2999
    %v3239 = vunpack.c.l.b16 %v3000
    %v3240 = vunpack.c.h.b16 %v3000
    %v3241 = vunpack.c.l.b16 %v3001
    %v3242 = vunpack.c.l.b16 %v3002
    %v3243 = vunpack.c.h.b16 %v3002
    %v3244 = vunpack.c.l.b16 %v3003
    %v3245 = vunpack.c.l.b16 %v3004
    %v3246 = vunpack.c.h.b16 %v3004
    %v3247 = vunpack.c.l.b16 %v3005
    %v3248 = vunpack.c.l.b16 %v3006
    %v3249 = vunpack.c.h.b16 %v3006
    %v3250 = vunpack.c.l.b16 %v3007
    %v3251 = vunpack.c.l.b16 %v3008
    %v3252 = vunpack.c.h.b16 %v3008
    %v3253 = vunpack.c.l.b16 %v3009
    %v3254 = vunpack.c.l.b16 %v3010
    %v3255 = vunpack.c.h.b16 %v3010
    %v3256 = vunpack.c.l.b16 %v3011
    %v3257 = vunpack.c.l.b16 %v3012
    %v3258 = vunpack.c.h.b16 %v3012
    %v3259 = vunpack.c.l.b16 %v3013
    %v3260 = vunpack.c.l.b16 %v3014
    %v3261 = vunpack.c.h.b16 %v3014
    %v3262 = vunpack.c.l.b16 %v3015
    %v3263 = vunpack.c.l.b16 %v3016
    %v3264 = vunpack.c.h.b16 %v3016
    %v3265 = vunpack.c.l.b16 %v3017
    %v3266 = vunpack.c.l.b16 %v3018
    %v3267 = vunpack.c.h.b16 %v3018
    %v3268 = vunpack.c.l.b16 %v3019
    %v3269 = vunpack.c.l.b16 %v3020
    %v3270 = vunpack.c.h.b16 %v3020
    %v3271 = vunpack.c.l.b16 %v3021
    %v3272 = vunpack.c.l.b16 %v3022
    %v3273 = vunpack.c.h.b16 %v3022
    %v3274 = vunpack.c.l.b16 %v3023
    %v3275 = vunpack.c.l.b16 %v3024
    %v3276 = vunpack.c.h.b16 %v3024
    %v3277 = vunpack.c.l.b16 %v3025
    %v3278 = vunpack.c.l.b16 %v3026
    %v3279 = vunpack.c.h.b16 %v3026
    %v3280 = vunpack.c.l.b16 %v3027
    %v3281 = vunpack.c.l.b16 %v3028
    %v3282 = vunpack.c.h.b16 %v3028
    %v3283 = vunpack.c.l.b16 %v3029
    %v3284 = vunpack.c.l.b16 %v3030
    %v3285 = vunpack.c.h.b16 %v3030
    %v3286 = vunpack.c.l.b16 %v3031
    %v3287 = vunpack.c.l.b16 %v3032
    %v3288 = vunpack.c.h.b16 %v3032
    %v3289 = vunpack.c.l.b16 %v3033
    %v3290 = vunpack.c.l.b16 %v3034
    %v3291 = vunpack.c.h.b16 %v3034
    %v3292 = vunpack.c.l.b16 %v3035
    %v3293 = vpack.c.b16 %v3152, %v3149
    %v3294 = vpack.c.b16 %v3153, %v3150
    %v3295 = vpack.c.b16 %v3154, %v3151
    %v3296 = vpack.c.b16 %v3158, %v3155
    %v3297 = vpack.c.b16 %v3159, %v3156
    %v3298 = vpack.c.b16 %v3160, %v3157
    %v3299 = vpack.c.b16 %v3164, %v3161
    %v3300 = vpack.c.b16 %v3165, %v3162
    %v3301 = vpack.c.b16 %v3166, %v3163
    %v3302 = vpack.c.b16 %v3170, %v3167
    %v3303 = vpack.c.b16 %v3171, %v3168
    %v3304 = vpack.c.b16 %v3172, %v3169
    %v3305 = vpack.c.b16 %v3176, %v3173
    %v3306 = vpack.c.b16 %v3177, %v3174
    %v3307 = vpack.c.b16 %v3178, %v3175
    %v3308 = vpack.c.b16 %v3182, %v3179
    %v3309 = vpack.c.b16 %v3183, %v3180
    %v3310 = vpack.c.b16 %v3184, %v3181
    %v3311 = vpack.c.b16 %v3188, %v3185
    %v3312 = vpack.c.b16 %v3189, %v3186
    %v3313 = vpack.c.b16 %v3190, %v3187
    %v3314 = vpack.c.b16 %v3194, %v3191
    %v3315 = vpack.c.b16 %v3195, %v3192
    %v3316 = vpack.c.b16 %v3196, %v3193
    %v3317 = vpack.c.b16 %v3200, %v3197
    %v3318 = vpack.c.b16 %v3201, %v3198
    %v3319 = vpack.c.b16 %v3202, %v3199
    %v3320 = vpack.c.b16 %v3206, %v3203
    %v3321 = vpack.c.b16 %v3207, %v3204
    %v3322 = vpack.c.b16 %v3208, %v3205
    %v3323 = vpack.c.b16 %v3212, %v3209
    %v3324 = vpack.c.b16 %v3213, %v3210
    %v3325 = vpack.c.b16 %v3214, %v3211
    %v3326 = vpack.c.b16 %v3218, %v3215
    %v3327 = vpack.c.b16 %v3219, %v3216
    %v3328 = vpack.c.b16 %v3220, %v3217
    %v3329 = vpack.c.b16 %v3224, %v3221
    %v3330 = vpack.c.b16 %v3225, %v3222
    %v3331 = vpack.c.b16 %v3226, %v3223
    %v3332 = vpack.c.b16 %v3230, %v3227
    %v3333 = vpack.c.b16 %v3231, %v3228
    %v3334 = vpack.c.b16 %v3232, %v3229
    %v3335 = vpack.c.b16 %v3236, %v3233
    %v3336 = vpack.c.b16 %v3237, %v3234
    %v3337 = vpack.c.b16 %v3238, %v3235
    %v3338 = vpack.c.b16 %v3242, %v3239
    %v3339 = vpack.c.b16 %v3243, %v3240
    %v3340 = vpack.c.b16 %v3244, %v3241
    %v3341 = vpack.c.b16 %v3248, %v3245
    %v3342 = vpack.c.b16 %v3249, %v3246
    %v3343 = vpack.c.b16 %v3250, %v3247
    %v3344 = vpack.c.b16 %v3254, %v3251
    %v3345 = vpack.c.b16 %v3255, %v3252
    %v3346 = vpack.c.b16 %v3256, %v3253
    %v3347 = vpack.c.b16 %v3260, %v3257
    %v3348 = vpack.c.b16 %v3261, %v3258
    %v3349 = vpack.c.b16 %v3262, %v3259
    %v3350 = vpack.c.b16 %v3266, %v3263
    %v3351 = vpack.c.b16 %v3267, %v3264
    %v3352 = vpack.c.b16 %v3268, %v3265
    %v3353 = vpack.c.b16 %v3272, %v3269
    %v3354 = vpack.c.b16 %v3273, %v3270
    %v3355 = vpack.c.b16 %v3274, %v3271
    %v3356 = vpack.c.b16 %v3278, %v3275
    %v3357 = vpack.c.b16 %v3279, %v3276
    %v3358 = vpack.c.b16 %v3280, %v3277
    %v3359 = vpack.c.b16 %v3284, %v3281
    %v3360 = vpack.c.b16 %v3285, %v3282
    %v3361 = vpack.c.b16 %v3286, %v3283
    %v3362 = vpack.c.b16 %v3290, %v3287
    %v3363 = vpack.c.b16 %v3291, %v3288
    %v3364 = vpack.c.b16 %v3292, %v3289
    %3437 = vmatprep.subr.bf16.mxu0 %v3294
    %3438 = vmatpush1.bf16.msra.mxu0 %v3293
    %3439 = vmatprep.subr.bf16.mxu0 %v3297
    %3440 = vmatpush1.bf16.msra.mxu0 %v3296
    %3441 = vmatprep.subr.bf16.mxu0 %v3300
    %3442 = vmatpush1.bf16.msra.mxu0 %v3299
    %3443 = vmatprep.subr.bf16.mxu0 %v3303
    %3444 = vmatpush1.bf16.msra.mxu0 %v3302
    %3445 = vmatprep.subr.bf16.mxu0 %v3306
    %3446 = vmatpush1.bf16.msra.mxu0 %v3305
    %3447 = vmatprep.subr.bf16.mxu0 %v3309
    %3448 = vmatpush1.bf16.msra.mxu0 %v3308
    %3449 = vmatprep.subr.bf16.mxu0 %v3312
    %3450 = vmatpush1.bf16.msra.mxu0 %v3311
    %3451 = vmatprep.subr.bf16.mxu0 %v3315
    %3452 = vmatpush1.bf16.msra.mxu0 %v3314
    %3453 = vmatprep.subr.bf16.mxu0 %v3318
    %3454 = vmatpush1.bf16.msra.mxu0 %v3317
    %3455 = vmatprep.subr.bf16.mxu0 %v3321
    %3456 = vmatpush1.bf16.msra.mxu0 %v3320
    %3457 = vmatprep.subr.bf16.mxu0 %v3324
    %3458 = vmatpush1.bf16.msra.mxu0 %v3323
    %3459 = vmatprep.subr.bf16.mxu0 %v3327
    %3460 = vmatpush1.bf16.msra.mxu0 %v3326
    %3461 = vmatprep.subr.bf16.mxu0 %v3330
    %3462 = vmatpush1.bf16.msra.mxu0 %v3329
    %3463 = vmatprep.subr.bf16.mxu0 %v3333
    %3464 = vmatpush1.bf16.msra.mxu0 %v3332
    %3465 = vmatprep.subr.bf16.mxu0 %v3336
    %3466 = vmatpush1.bf16.msra.mxu0 %v3335
    %3467 = vmatprep.subr.bf16.mxu0 %v3339
    %3468 = vmatpush1.bf16.msra.mxu0 %v3338
    %3469 = vmatprep.mubr.bf16.mxu0 %v2917
    %3470 = vmatmul.mubr.bf16.gmra.mrb[0].mxu0 %v2916
    %v3471 = vpop.f32.mrb[0].mxu0
    %v3472 = vadd.f32 %v3041, %v3471
    %v3473 = vpop.f32.mrb[0].mxu0
    %v3474 = vadd.f32 %v3045, %v3473
    %v3475 = vpop.f32.mrb[0].mxu0
    %v3476 = vadd.f32 %v3041, %v3475
    %v3477 = vpop.f32.mrb[0].mxu0
    %v3478 = vadd.f32 %v3045, %v3477
    %3479 = vdwg.mxu0
    %3480 = vmatprep.subr.bf16.mxu0 %v3342
    %3481 = vmatpush1.bf16.msra.mxu0 %v3341
    %3482 = vmatprep.subr.bf16.mxu0 %v3345
    %3483 = vmatpush1.bf16.msra.mxu0 %v3344
    %3484 = vmatprep.subr.bf16.mxu0 %v3348
    %3485 = vmatpush1.bf16.msra.mxu0 %v3347
    %3486 = vmatprep.subr.bf16.mxu0 %v3351
    %3487 = vmatpush1.bf16.msra.mxu0 %v3350
    %3488 = vmatprep.subr.bf16.mxu0 %v3354
    %3489 = vmatpush1.bf16.msra.mxu0 %v3353
    %3490 = vmatprep.subr.bf16.mxu0 %v3357
    %3491 = vmatpush1.bf16.msra.mxu0 %v3356
    %3492 = vmatprep.subr.bf16.mxu0 %v3360
    %3493 = vmatpush1.bf16.msra.mxu0 %v3359
    %3494 = vmatprep.subr.bf16.mxu0 %v3363
    %3495 = vmatpush1.bf16.msra.mxu0 %v3362
    %3496 = vmatprep.subr.bf16.mxu0 0
    %3497 = vmatpush1.bf16.msra.mxu0 0
    %3498 = vmatprep.subr.bf16.mxu0 0
    %3499 = vmatpush1.bf16.msra.mxu0 0
    %3500 = vmatprep.subr.bf16.mxu0 0
    %3501 = vmatpush1.bf16.msra.mxu0 0
    %3502 = vmatprep.subr.bf16.mxu0 0
    %3503 = vmatpush1.bf16.msra.mxu0 0
    %3504 = vmatprep.subr.bf16.mxu0 0
    %3505 = vmatpush1.bf16.msra.mxu0 0
    %3506 = vmatprep.subr.bf16.mxu0 0
    %3507 = vmatpush1.bf16.msra.mxu0 0
    %3508 = vmatprep.subr.bf16.mxu0 0
    %3509 = vmatpush1.bf16.msra.mxu0 0
    %3510 = vmatprep.subr.bf16.mxu0 0
    %3511 = vmatpush1.bf16.msra.mxu0 0
    %3512 = vmatprep.mubr.bf16.mxu0 0
    %3513 = vmatmul.mubr.bf16.gmra.mrb[0].mxu0 %v2918
    %v3514 = vpop.f32.mrb[0].mxu0
    %v3515 = vadd.f32 %v3472, %v3514
    %v3516 = vpop.f32.mrb[0].mxu0
    %v3517 = vadd.f32 %v3474, %v3516
    %v3518 = vpop.f32.mrb[0].mxu0
    %v3519 = vadd.f32 %v3476, %v3518
    %v3520 = vpop.f32.mrb[0].mxu0
    %v3521 = vadd.f32 %v3478, %v3520
    %3522 = vdwg.mxu0
    %3523 = vmatprep.subr.bf16.mxu0 0
    %3524 = vmatpush1.bf16.msra.mxu0 %v3295
    %3525 = vmatprep.subr.bf16.mxu0 0
    %3526 = vmatpush1.bf16.msra.mxu0 %v3298
    %3527 = vmatprep.subr.bf16.mxu0 0
    %3528 = vmatpush1.bf16.msra.mxu0 %v3301
    %3529 = vmatprep.subr.bf16.mxu0 0
    %3530 = vmatpush1.bf16.msra.mxu0 %v3304
    %3531 = vmatprep.subr.bf16.mxu0 0
    %3532 = vmatpush1.bf16.msra.mxu0 %v3307
    %3533 = vmatprep.subr.bf16.mxu0 0
    %3534 = vmatpush1.bf16.msra.mxu0 %v3310
    %3535 = vmatprep.subr.bf16.mxu0 0
    %3536 = vmatpush1.bf16.msra.mxu0 %v3313
    %3537 = vmatprep.subr.bf16.mxu0 0
    %3538 = vmatpush1.bf16.msra.mxu0 %v3316
    %3539 = vmatprep.subr.bf16.mxu0 0
    %3540 = vmatpush1.bf16.msra.mxu0 %v3319
    %3541 = vmatprep.subr.bf16.mxu0 0
    %3542 = vmatpush1.bf16.msra.mxu0 %v3322
    %3543 = vmatprep.subr.bf16.mxu0 0
    %3544 = vmatpush1.bf16.msra.mxu0 %v3325
    %3545 = vmatprep.subr.bf16.mxu0 0
    %3546 = vmatpush1.bf16.msra.mxu0 %v3328
    %3547 = vmatprep.subr.bf16.mxu0 0
    %3548 = vmatpush1.bf16.msra.mxu0 %v3331
    %3549 = vmatprep.subr.bf16.mxu0 0
    %3550 = vmatpush1.bf16.msra.mxu0 %v3334
    %3551 = vmatprep.subr.bf16.mxu0 0
    %3552 = vmatpush1.bf16.msra.mxu0 %v3337
    %3553 = vmatprep.subr.bf16.mxu0 0
    %3554 = vmatpush1.bf16.msra.mxu0 %v3340
    %3555 = vmatprep.mubr.bf16.mxu0 %v2917
    %3556 = vmatmul.mubr.bf16.gmra.mrb[0].mxu0 %v2916
    %v3557 = vpop.f32.mrb[0].mxu0
    %v3558 = vadd.f32 %v3049, %v3557
    %v3559 = vpop.f32.mrb[0].mxu0
    %v3560 = vpop.f32.mrb[0].mxu0
    %v3561 = vadd.f32 %v3049, %v3560
    %v3562 = vpop.f32.mrb[0].mxu0
    %3563 = vdwg.mxu0
    %3564 = vmatprep.subr.bf16.mxu0 0
    %3565 = vmatpush1.bf16.msra.mxu0 %v3343
    %3566 = vmatprep.subr.bf16.mxu0 0
    %3567 = vmatpush1.bf16.msra.mxu0 %v3346
    %3568 = vmatprep.subr.bf16.mxu0 0
    %3569 = vmatpush1.bf16.msra.mxu0 %v3349
    %3570 = vmatprep.subr.bf16.mxu0 0
    %3571 = vmatpush1.bf16.msra.mxu0 %v3352
    %3572 = vmatprep.subr.bf16.mxu0 0
    %3573 = vmatpush1.bf16.msra.mxu0 %v3355
    %3574 = vmatprep.subr.bf16.mxu0 0
    %3575 = vmatpush1.bf16.msra.mxu0 %v3358
    %3576 = vmatprep.subr.bf16.mxu0 0
    %3577 = vmatpush1.bf16.msra.mxu0 %v3361
    %3578 = vmatprep.subr.bf16.mxu0 0
    %3579 = vmatpush1.bf16.msra.mxu0 %v3364
    %3580 = vmatprep.subr.bf16.mxu0 0
    %3581 = vmatpush1.bf16.msra.mxu0 0
    %3582 = vmatprep.subr.bf16.mxu0 0
    %3583 = vmatpush1.bf16.msra.mxu0 0
    %3584 = vmatprep.subr.bf16.mxu0 0
    %3585 = vmatpush1.bf16.msra.mxu0 0
    %3586 = vmatprep.subr.bf16.mxu0 0
    %3587 = vmatpush1.bf16.msra.mxu0 0
    %3588 = vmatprep.subr.bf16.mxu0 0
    %3589 = vmatpush1.bf16.msra.mxu0 0
    %3590 = vmatprep.subr.bf16.mxu0 0
    %3591 = vmatpush1.bf16.msra.mxu0 0
    %3592 = vmatprep.subr.bf16.mxu0 0
    %3593 = vmatpush1.bf16.msra.mxu0 0
    %3594 = vmatprep.subr.bf16.mxu0 0
    %3595 = vmatpush1.bf16.msra.mxu0 0
    %3596 = vmatprep.mubr.bf16.mxu0 0
    %3597 = vmatmul.mubr.bf16.gmra.mrb[0].mxu0 %v2918
    %v3598 = vpop.f32.mrb[0].mxu0
    %v3599 = vadd.f32 %v3558, %v3598
    %v3600 = vpop.f32.mrb[0].mxu0
    %v3601 = vpop.f32.mrb[0].mxu0
    %v3602 = vadd.f32 %v3561, %v3601
    %v3603 = vpop.f32.mrb[0].mxu0
    %3604 = vdwg.mxu0
    %v3605 = vmax.f32 %v3515, 0.0
    %v3606 = vmax.f32 %v3517, 0.0
    %v3607 = vmax.f32 %v3599, 0.0
    %v3608 = vmax.f32 %v3519, 0.0
    %v3609 = vmax.f32 %v3521, 0.0
    %v3610 = vmax.f32 %v3602, 0.0
    %v3611 = vpack.c.bf16 %v3608, %v3605
    %v3612 = vpack.c.bf16 %v3609, %v3606
    %v3613 = vpack.c.bf16 %v3610, %v3607
    %v3617 = vunpack.c.l.b16 %v3611
    %v3618 = vunpack.c.l.b16 %v3612
    %v3619 = vunpack.c.l.b16 %v3613
    %v3620 = vunpack.c.h.b16 %v3611
    %v3621 = vunpack.c.h.b16 %v3612
    %v3622 = vunpack.c.h.b16 %v3613
    %v3623 = vpack.c.b16 %v3618, %v3617
    %v3624 = vpack.c.b16 %v3619, %v3619
    %v3625 = vpack.c.b16 %v3621, %v3620
    %v3626 = vpack.c.b16 %v3622, %v3622
    %3631 = vst [vmem:[%s18] sm:$0xff] %v3623
    %3632 = vst [vmem:[%s18 + $0x8] sm:$0xf] %v3624
    %3633 = vst [vmem:[%s18 + $0xc] sm:$0xff] %v3625
    %3634 = vst [vmem:[%s18 + $0x14] sm:$0xf] %v3626
    %v3635 = vld [vmem:[#allocation9] sm:$0xff]
    %v3636 = vld [vmem:[#allocation9 + $0x8] sm:$0xf]
    %v3637 = vld [vmem:[#allocation9 + $0xc] sm:$0xff]
    %v3638 = vld [vmem:[#allocation9 + $0x14] sm:$0xf]
    %v3639 = vld [vmem:[#allocation9 + $0x18] sm:$0xff]
    %v3640 = vld [vmem:[#allocation9 + $0x20] sm:$0xf]
    %v3641 = vld [vmem:[#allocation9 + $0x24] sm:$0xff]
    %v3642 = vld [vmem:[#allocation9 + $0x2c] sm:$0xf]
    %v3643 = vld [vmem:[#allocation9 + $0x30] sm:$0xff]
    %v3644 = vld [vmem:[#allocation9 + $0x38] sm:$0xf]
    %v3645 = vld [vmem:[#allocation9 + $0x3c] sm:$0xff]
    %v3646 = vld [vmem:[#allocation9 + $0x44] sm:$0xf]
    %v3647 = vld [vmem:[#allocation9 + $0x48] sm:$0xff]
    %v3648 = vld [vmem:[#allocation9 + $0x50] sm:$0xf]
    %v3649 = vld [vmem:[#allocation9 + $0x54] sm:$0xff]
    %v3650 = vld [vmem:[#allocation9 + $0x5c] sm:$0xf]
    %v3651 = vld [vmem:[#allocation9 + $0x60] sm:$0xff]
    %v3652 = vld [vmem:[#allocation9 + $0x68] sm:$0xf]
    %v3653 = vld [vmem:[#allocation9 + $0x6c] sm:$0xff]
    %v3654 = vld [vmem:[#allocation9 + $0x74] sm:$0xf]
    %v3655 = vld [vmem:[#allocation9 + $0x78] sm:$0xff]
    %v3656 = vld [vmem:[#allocation9 + $0x80] sm:$0xf]
    %v3657 = vld [vmem:[#allocation9 + $0x84] sm:$0xff]
    %v3658 = vld [vmem:[#allocation9 + $0x8c] sm:$0xf]
    %v3659 = vld [vmem:[#allocation9 + $0x90] sm:$0xff]
    %v3660 = vld [vmem:[#allocation9 + $0x98] sm:$0xf]
    %v3661 = vld [vmem:[#allocation9 + $0x9c] sm:$0xff]
    %v3662 = vld [vmem:[#allocation9 + $0xa4] sm:$0xf]
    %v3663 = vld [vmem:[#allocation9 + $0xa8] sm:$0xff]
    %v3664 = vld [vmem:[#allocation9 + $0xb0] sm:$0xf]
    %v3665 = vld [vmem:[#allocation9 + $0xb4] sm:$0xff]
    %v3666 = vld [vmem:[#allocation9 + $0xbc] sm:$0xf]
    %v3667 = vld [vmem:[#allocation9 + $0xc0] sm:$0xff]
    %v3668 = vld [vmem:[#allocation9 + $0xc8] sm:$0xf]
    %v3669 = vld [vmem:[#allocation9 + $0xcc] sm:$0xff]
    %v3670 = vld [vmem:[#allocation9 + $0xd4] sm:$0xf]
    %v3671 = vld [vmem:[#allocation9 + $0xd8] sm:$0xff]
    %v3672 = vld [vmem:[#allocation9 + $0xe0] sm:$0xf]
    %v3673 = vld [vmem:[#allocation9 + $0xe4] sm:$0xff]
    %v3674 = vld [vmem:[#allocation9 + $0xec] sm:$0xf]
    %v3675 = vld [vmem:[#allocation9 + $0xf0] sm:$0xff]
    %v3676 = vld [vmem:[#allocation9 + $0xf8] sm:$0xf]
    %v3677 = vld [vmem:[#allocation9 + $0xfc] sm:$0xff]
    %v3678 = vld [vmem:[#allocation9 + $0x104] sm:$0xf]
    %v3679 = vld [vmem:[#allocation9 + $0x108] sm:$0xff]
    %v3680 = vld [vmem:[#allocation9 + $0x110] sm:$0xf]
    %v3681 = vld [vmem:[#allocation9 + $0x114] sm:$0xff]
    %v3682 = vld [vmem:[#allocation9 + $0x11c] sm:$0xf]
    %v3683 = vld [vmem:[#allocation9 + $0x120] sm:$0xff]
    %v3684 = vld [vmem:[#allocation9 + $0x128] sm:$0xf]
    %v3685 = vld [vmem:[#allocation9 + $0x12c] sm:$0xff]
    %v3686 = vld [vmem:[#allocation9 + $0x134] sm:$0xf]
    %v3687 = vld [vmem:[#allocation9 + $0x138] sm:$0xff]
    %v3688 = vld [vmem:[#allocation9 + $0x140] sm:$0xf]
    %v3689 = vld [vmem:[#allocation9 + $0x144] sm:$0xff]
    %v3690 = vld [vmem:[#allocation9 + $0x14c] sm:$0xf]
    %v3691 = vld [vmem:[#allocation9 + $0x150] sm:$0xff]
    %v3692 = vld [vmem:[#allocation9 + $0x158] sm:$0xf]
    %v3693 = vld [vmem:[#allocation9 + $0x15c] sm:$0xff]
    %v3694 = vld [vmem:[#allocation9 + $0x164] sm:$0xf]
    %v3695 = vld [vmem:[#allocation9 + $0x168] sm:$0xff]
    %v3696 = vld [vmem:[#allocation9 + $0x170] sm:$0xf]
    %v3697 = vld [vmem:[#allocation9 + $0x174] sm:$0xff]
    %v3698 = vld [vmem:[#allocation9 + $0x17c] sm:$0xf]
    %v3699 = vld [vmem:[#allocation9 + $0x180] sm:$0xff]
    %v3700 = vld [vmem:[#allocation9 + $0x188] sm:$0xf]
    %v3701 = vld [vmem:[#allocation9 + $0x18c] sm:$0xff]
    %v3702 = vld [vmem:[#allocation9 + $0x194] sm:$0xf]
    %v3703 = vld [vmem:[#allocation9 + $0x198] sm:$0xff]
    %v3704 = vld [vmem:[#allocation9 + $0x1a0] sm:$0xf]
    %v3705 = vld [vmem:[#allocation9 + $0x1a4] sm:$0xff]
    %v3706 = vld [vmem:[#allocation9 + $0x1ac] sm:$0xf]
    %v3707 = vld [vmem:[#allocation9 + $0x1b0] sm:$0xff]
    %v3708 = vld [vmem:[#allocation9 + $0x1b8] sm:$0xf]
    %v3709 = vld [vmem:[#allocation9 + $0x1bc] sm:$0xff]
    %v3710 = vld [vmem:[#allocation9 + $0x1c4] sm:$0xf]
    %v3711 = vld [vmem:[#allocation9 + $0x1c8] sm:$0xff]
    %v3712 = vld [vmem:[#allocation9 + $0x1d0] sm:$0xf]
    %v3713 = vld [vmem:[#allocation9 + $0x1d4] sm:$0xff]
    %v3714 = vld [vmem:[#allocation9 + $0x1dc] sm:$0xf]
    %v3715 = vld [vmem:[#allocation9 + $0x1e0] sm:$0xff]
    %v3716 = vld [vmem:[#allocation9 + $0x1e8] sm:$0xf]
    %v3717 = vld [vmem:[#allocation9 + $0x1ec] sm:$0xff]
    %v3718 = vld [vmem:[#allocation9 + $0x1f4] sm:$0xf]
    %v3719 = vld [vmem:[#allocation9 + $0x1f8] sm:$0xff]
    %v3720 = vld [vmem:[#allocation9 + $0x200] sm:$0xf]
    %v3721 = vld [vmem:[#allocation9 + $0x204] sm:$0xff]
    %v3722 = vld [vmem:[#allocation9 + $0x20c] sm:$0xf]
    %v3723 = vld [vmem:[#allocation9 + $0x210] sm:$0xff]
    %v3724 = vld [vmem:[#allocation9 + $0x218] sm:$0xf]
    %v3725 = vld [vmem:[#allocation9 + $0x21c] sm:$0xff]
    %v3726 = vld [vmem:[#allocation9 + $0x224] sm:$0xf]
    %v3727 = vld [vmem:[#allocation9 + $0x228] sm:$0xff]
    %v3728 = vld [vmem:[#allocation9 + $0x230] sm:$0xf]
    %v3729 = vld [vmem:[#allocation9 + $0x234] sm:$0xff]
    %v3730 = vld [vmem:[#allocation9 + $0x23c] sm:$0xf]
    %v3731 = vld [vmem:[%s12] sm:$0x7]
    %v3733 = vlaneseq
    %v3734 = vshrl.u32 %v3733, 7
    %v3735 = vsub.s32 0, %v3734
    %v3736 = vrot.slane %v3731, %v3735
    %v3737 = vlaneseq
    %v3738 = vshrl.u32 %v3737, 7
    %v3739 = vsub.s32 1, %v3738
    %v3740 = vrot.slane %v3731, %v3739
    %v3741 = vlaneseq
    %v3742 = vshrl.u32 %v3741, 7
    %v3743 = vsub.s32 2, %v3742
    %v3744 = vrot.slane %v3731, %v3743
    %v3844 = vunpack.c.l.b16 %v3635
    %v3845 = vunpack.c.h.b16 %v3635
    %v3846 = vunpack.c.l.b16 %v3636
    %v3847 = vunpack.c.l.b16 %v3637
    %v3848 = vunpack.c.h.b16 %v3637
    %v3849 = vunpack.c.l.b16 %v3638
    %v3850 = vunpack.c.l.b16 %v3639
    %v3851 = vunpack.c.h.b16 %v3639
    %v3852 = vunpack.c.l.b16 %v3640
    %v3853 = vunpack.c.l.b16 %v3641
    %v3854 = vunpack.c.h.b16 %v3641
    %v3855 = vunpack.c.l.b16 %v3642
    %v3856 = vunpack.c.l.b16 %v3643
    %v3857 = vunpack.c.h.b16 %v3643
    %v3858 = vunpack.c.l.b16 %v3644
    %v3859 = vunpack.c.l.b16 %v3645
    %v3860 = vunpack.c.h.b16 %v3645
    %v3861 = vunpack.c.l.b16 %v3646
    %v3862 = vunpack.c.l.b16 %v3647
    %v3863 = vunpack.c.h.b16 %v3647
    %v3864 = vunpack.c.l.b16 %v3648
    %v3865 = vunpack.c.l.b16 %v3649
    %v3866 = vunpack.c.h.b16 %v3649
    %v3867 = vunpack.c.l.b16 %v3650
    %v3868 = vunpack.c.l.b16 %v3651
    %v3869 = vunpack.c.h.b16 %v3651
    %v3870 = vunpack.c.l.b16 %v3652
    %v3871 = vunpack.c.l.b16 %v3653
    %v3872 = vunpack.c.h.b16 %v3653
    %v3873 = vunpack.c.l.b16 %v3654
    %v3874 = vunpack.c.l.b16 %v3655
    %v3875 = vunpack.c.h.b16 %v3655
    %v3876 = vunpack.c.l.b16 %v3656
    %v3877 = vunpack.c.l.b16 %v3657
    %v3878 = vunpack.c.h.b16 %v3657
    %v3879 = vunpack.c.l.b16 %v3658
    %v3880 = vunpack.c.l.b16 %v3659
    %v3881 = vunpack.c.h.b16 %v3659
    %v3882 = vunpack.c.l.b16 %v3660
    %v3883 = vunpack.c.l.b16 %v3661
    %v3884 = vunpack.c.h.b16 %v3661
    %v3885 = vunpack.c.l.b16 %v3662
    %v3886 = vunpack.c.l.b16 %v3663
    %v3887 = vunpack.c.h.b16 %v3663
    %v3888 = vunpack.c.l.b16 %v3664
    %v3889 = vunpack.c.l.b16 %v3665
    %v3890 = vunpack.c.h.b16 %v3665
    %v3891 = vunpack.c.l.b16 %v3666
    %v3892 = vunpack.c.l.b16 %v3667
    %v3893 = vunpack.c.h.b16 %v3667
    %v3894 = vunpack.c.l.b16 %v3668
    %v3895 = vunpack.c.l.b16 %v3669
    %v3896 = vunpack.c.h.b16 %v3669
    %v3897 = vunpack.c.l.b16 %v3670
    %v3898 = vunpack.c.l.b16 %v3671
    %v3899 = vunpack.c.h.b16 %v3671
    %v3900 = vunpack.c.l.b16 %v3672
    %v3901 = vunpack.c.l.b16 %v3673
    %v3902 = vunpack.c.h.b16 %v3673
    %v3903 = vunpack.c.l.b16 %v3674
    %v3904 = vunpack.c.l.b16 %v3675
    %v3905 = vunpack.c.h.b16 %v3675
    %v3906 = vunpack.c.l.b16 %v3676
    %v3907 = vunpack.c.l.b16 %v3677
    %v3908 = vunpack.c.h.b16 %v3677
    %v3909 = vunpack.c.l.b16 %v3678
    %v3910 = vunpack.c.l.b16 %v3679
    %v3911 = vunpack.c.h.b16 %v3679
    %v3912 = vunpack.c.l.b16 %v3680
    %v3913 = vunpack.c.l.b16 %v3681
    %v3914 = vunpack.c.h.b16 %v3681
    %v3915 = vunpack.c.l.b16 %v3682
    %v3916 = vunpack.c.l.b16 %v3683
    %v3917 = vunpack.c.h.b16 %v3683
    %v3918 = vunpack.c.l.b16 %v3684
    %v3919 = vunpack.c.l.b16 %v3685
    %v3920 = vunpack.c.h.b16 %v3685
    %v3921 = vunpack.c.l.b16 %v3686
    %v3922 = vunpack.c.l.b16 %v3687
    %v3923 = vunpack.c.h.b16 %v3687
    %v3924 = vunpack.c.l.b16 %v3688
    %v3925 = vunpack.c.l.b16 %v3689
    %v3926 = vunpack.c.h.b16 %v3689
    %v3927 = vunpack.c.l.b16 %v3690
    %v3928 = vunpack.c.l.b16 %v3691
    %v3929 = vunpack.c.h.b16 %v3691
    %v3930 = vunpack.c.l.b16 %v3692
    %v3931 = vunpack.c.l.b16 %v3693
    %v3932 = vunpack.c.h.b16 %v3693
    %v3933 = vunpack.c.l.b16 %v3694
    %v3934 = vunpack.c.l.b16 %v3695
    %v3935 = vunpack.c.h.b16 %v3695
    %v3936 = vunpack.c.l.b16 %v3696
    %v3937 = vunpack.c.l.b16 %v3697
    %v3938 = vunpack.c.h.b16 %v3697
    %v3939 = vunpack.c.l.b16 %v3698
    %v3940 = vunpack.c.l.b16 %v3699
    %v3941 = vunpack.c.h.b16 %v3699
    %v3942 = vunpack.c.l.b16 %v3700
    %v3943 = vunpack.c.l.b16 %v3701
    %v3944 = vunpack.c.h.b16 %v3701
    %v3945 = vunpack.c.l.b16 %v3702
    %v3946 = vunpack.c.l.b16 %v3703
    %v3947 = vunpack.c.h.b16 %v3703
    %v3948 = vunpack.c.l.b16 %v3704
    %v3949 = vunpack.c.l.b16 %v3705
    %v3950 = vunpack.c.h.b16 %v3705
    %v3951 = vunpack.c.l.b16 %v3706
    %v3952 = vunpack.c.l.b16 %v3707
    %v3953 = vunpack.c.h.b16 %v3707
    %v3954 = vunpack.c.l.b16 %v3708
    %v3955 = vunpack.c.l.b16 %v3709
    %v3956 = vunpack.c.h.b16 %v3709
    %v3957 = vunpack.c.l.b16 %v3710
    %v3958 = vunpack.c.l.b16 %v3711
    %v3959 = vunpack.c.h.b16 %v3711
    %v3960 = vunpack.c.l.b16 %v3712
    %v3961 = vunpack.c.l.b16 %v3713
    %v3962 = vunpack.c.h.b16 %v3713
    %v3963 = vunpack.c.l.b16 %v3714
    %v3964 = vunpack.c.l.b16 %v3715
    %v3965 = vunpack.c.h.b16 %v3715
    %v3966 = vunpack.c.l.b16 %v3716
    %v3967 = vunpack.c.l.b16 %v3717
    %v3968 = vunpack.c.h.b16 %v3717
    %v3969 = vunpack.c.l.b16 %v3718
    %v3970 = vunpack.c.l.b16 %v3719
    %v3971 = vunpack.c.h.b16 %v3719
    %v3972 = vunpack.c.l.b16 %v3720
    %v3973 = vunpack.c.l.b16 %v3721
    %v3974 = vunpack.c.h.b16 %v3721
    %v3975 = vunpack.c.l.b16 %v3722
    %v3976 = vunpack.c.l.b16 %v3723
    %v3977 = vunpack.c.h.b16 %v3723
    %v3978 = vunpack.c.l.b16 %v3724
    %v3979 = vunpack.c.l.b16 %v3725
    %v3980 = vunpack.c.h.b16 %v3725
    %v3981 = vunpack.c.l.b16 %v3726
    %v3982 = vunpack.c.l.b16 %v3727
    %v3983 = vunpack.c.h.b16 %v3727
    %v3984 = vunpack.c.l.b16 %v3728
    %v3985 = vunpack.c.l.b16 %v3729
    %v3986 = vunpack.c.h.b16 %v3729
    %v3987 = vunpack.c.l.b16 %v3730
    %v3988 = vpack.c.b16 %v3847, %v3844
    %v3989 = vpack.c.b16 %v3848, %v3845
    %v3990 = vpack.c.b16 %v3849, %v3846
    %v3991 = vpack.c.b16 %v3853, %v3850
    %v3992 = vpack.c.b16 %v3854, %v3851
    %v3993 = vpack.c.b16 %v3855, %v3852
    %v3994 = vpack.c.b16 %v3859, %v3856
    %v3995 = vpack.c.b16 %v3860, %v3857
    %v3996 = vpack.c.b16 %v3861, %v3858
    %v3997 = vpack.c.b16 %v3865, %v3862
    %v3998 = vpack.c.b16 %v3866, %v3863
    %v3999 = vpack.c.b16 %v3867, %v3864
    %v4000 = vpack.c.b16 %v3871, %v3868
    %v4001 = vpack.c.b16 %v3872, %v3869
    %v4002 = vpack.c.b16 %v3873, %v3870
    %v4003 = vpack.c.b16 %v3877, %v3874
    %v4004 = vpack.c.b16 %v3878, %v3875
    %v4005 = vpack.c.b16 %v3879, %v3876
    %v4006 = vpack.c.b16 %v3883, %v3880
    %v4007 = vpack.c.b16 %v3884, %v3881
    %v4008 = vpack.c.b16 %v3885, %v3882
    %v4009 = vpack.c.b16 %v3889, %v3886
    %v4010 = vpack.c.b16 %v3890, %v3887
    %v4011 = vpack.c.b16 %v3891, %v3888
    %v4012 = vpack.c.b16 %v3895, %v3892
    %v4013 = vpack.c.b16 %v3896, %v3893
    %v4014 = vpack.c.b16 %v3897, %v3894
    %v4015 = vpack.c.b16 %v3901, %v3898
    %v4016 = vpack.c.b16 %v3902, %v3899
    %v4017 = vpack.c.b16 %v3903, %v3900
    %v4018 = vpack.c.b16 %v3907, %v3904
    %v4019 = vpack.c.b16 %v3908, %v3905
    %v4020 = vpack.c.b16 %v3909, %v3906
    %v4021 = vpack.c.b16 %v3913, %v3910
    %v4022 = vpack.c.b16 %v3914, %v3911
    %v4023 = vpack.c.b16 %v3915, %v3912
    %v4024 = vpack.c.b16 %v3919, %v3916
    %v4025 = vpack.c.b16 %v3920, %v3917
    %v4026 = vpack.c.b16 %v3921, %v3918
    %v4027 = vpack.c.b16 %v3925, %v3922
    %v4028 = vpack.c.b16 %v3926, %v3923
    %v4029 = vpack.c.b16 %v3927, %v3924
    %v4030 = vpack.c.b16 %v3931, %v3928
    %v4031 = vpack.c.b16 %v3932, %v3929
    %v4032 = vpack.c.b16 %v3933, %v3930
    %v4033 = vpack.c.b16 %v3937, %v3934
    %v4034 = vpack.c.b16 %v3938, %v3935
    %v4035 = vpack.c.b16 %v3939, %v3936
    %v4036 = vpack.c.b16 %v3943, %v3940
    %v4037 = vpack.c.b16 %v3944, %v3941
    %v4038 = vpack.c.b16 %v3945, %v3942
    %v4039 = vpack.c.b16 %v3949, %v3946
    %v4040 = vpack.c.b16 %v3950, %v3947
    %v4041 = vpack.c.b16 %v3951, %v3948
    %v4042 = vpack.c.b16 %v3955, %v3952
    %v4043 = vpack.c.b16 %v3956, %v3953
    %v4044 = vpack.c.b16 %v3957, %v3954
    %v4045 = vpack.c.b16 %v3961, %v3958
    %v4046 = vpack.c.b16 %v3962, %v3959
    %v4047 = vpack.c.b16 %v3963, %v3960
    %v4048 = vpack.c.b16 %v3967, %v3964
    %v4049 = vpack.c.b16 %v3968, %v3965
    %v4050 = vpack.c.b16 %v3969, %v3966
    %v4051 = vpack.c.b16 %v3973, %v3970
    %v4052 = vpack.c.b16 %v3974, %v3971
    %v4053 = vpack.c.b16 %v3975, %v3972
    %v4054 = vpack.c.b16 %v3979, %v3976
    %v4055 = vpack.c.b16 %v3980, %v3977
    %v4056 = vpack.c.b16 %v3981, %v3978
    %v4057 = vpack.c.b16 %v3985, %v3982
    %v4058 = vpack.c.b16 %v3986, %v3983
    %v4059 = vpack.c.b16 %v3987, %v3984
    %4132 = vmatprep.subr.bf16.mxu0 %v3989
    %4133 = vmatpush1.bf16.msra.mxu0 %v3988
    %4134 = vmatprep.subr.bf16.mxu0 %v3992
    %4135 = vmatpush1.bf16.msra.mxu0 %v3991
    %4136 = vmatprep.subr.bf16.mxu0 %v3995
    %4137 = vmatpush1.bf16.msra.mxu0 %v3994
    %4138 = vmatprep.subr.bf16.mxu0 %v3998
    %4139 = vmatpush1.bf16.msra.mxu0 %v3997
    %4140 = vmatprep.subr.bf16.mxu0 %v4001
    %4141 = vmatpush1.bf16.msra.mxu0 %v4000
    %4142 = vmatprep.subr.bf16.mxu0 %v4004
    %4143 = vmatpush1.bf16.msra.mxu0 %v4003
    %4144 = vmatprep.subr.bf16.mxu0 %v4007
    %4145 = vmatpush1.bf16.msra.mxu0 %v4006
    %4146 = vmatprep.subr.bf16.mxu0 %v4010
    %4147 = vmatpush1.bf16.msra.mxu0 %v4009
    %4148 = vmatprep.subr.bf16.mxu0 %v4013
    %4149 = vmatpush1.bf16.msra.mxu0 %v4012
    %4150 = vmatprep.subr.bf16.mxu0 %v4016
    %4151 = vmatpush1.bf16.msra.mxu0 %v4015
    %4152 = vmatprep.subr.bf16.mxu0 %v4019
    %4153 = vmatpush1.bf16.msra.mxu0 %v4018
    %4154 = vmatprep.subr.bf16.mxu0 %v4022
    %4155 = vmatpush1.bf16.msra.mxu0 %v4021
    %4156 = vmatprep.subr.bf16.mxu0 %v4025
    %4157 = vmatpush1.bf16.msra.mxu0 %v4024
    %4158 = vmatprep.subr.bf16.mxu0 %v4028
    %4159 = vmatpush1.bf16.msra.mxu0 %v4027
    %4160 = vmatprep.subr.bf16.mxu0 %v4031
    %4161 = vmatpush1.bf16.msra.mxu0 %v4030
    %4162 = vmatprep.subr.bf16.mxu0 %v4034
    %4163 = vmatpush1.bf16.msra.mxu0 %v4033
    %4164 = vmatprep.mubr.bf16.mxu0 %v3612
    %4165 = vmatmul.mubr.bf16.gmra.mrb[0].mxu0 %v3611
    %v4166 = vpop.f32.mrb[0].mxu0
    %v4167 = vadd.f32 %v3736, %v4166
    %v4168 = vpop.f32.mrb[0].mxu0
    %v4169 = vadd.f32 %v3740, %v4168
    %v4170 = vpop.f32.mrb[0].mxu0
    %v4171 = vadd.f32 %v3736, %v4170
    %v4172 = vpop.f32.mrb[0].mxu0
    %v4173 = vadd.f32 %v3740, %v4172
    %4174 = vdwg.mxu0
    %4175 = vmatprep.subr.bf16.mxu0 %v4037
    %4176 = vmatpush1.bf16.msra.mxu0 %v4036
    %4177 = vmatprep.subr.bf16.mxu0 %v4040
    %4178 = vmatpush1.bf16.msra.mxu0 %v4039
    %4179 = vmatprep.subr.bf16.mxu0 %v4043
    %4180 = vmatpush1.bf16.msra.mxu0 %v4042
    %4181 = vmatprep.subr.bf16.mxu0 %v4046
    %4182 = vmatpush1.bf16.msra.mxu0 %v4045
    %4183 = vmatprep.subr.bf16.mxu0 %v4049
    %4184 = vmatpush1.bf16.msra.mxu0 %v4048
    %4185 = vmatprep.subr.bf16.mxu0 %v4052
    %4186 = vmatpush1.bf16.msra.mxu0 %v4051
    %4187 = vmatprep.subr.bf16.mxu0 %v4055
    %4188 = vmatpush1.bf16.msra.mxu0 %v4054
    %4189 = vmatprep.subr.bf16.mxu0 %v4058
    %4190 = vmatpush1.bf16.msra.mxu0 %v4057
    %4191 = vmatprep.subr.bf16.mxu0 0
    %4192 = vmatpush1.bf16.msra.mxu0 0
    %4193 = vmatprep.subr.bf16.mxu0 0
    %4194 = vmatpush1.bf16.msra.mxu0 0
    %4195 = vmatprep.subr.bf16.mxu0 0
    %4196 = vmatpush1.bf16.msra.mxu0 0
    %4197 = vmatprep.subr.bf16.mxu0 0
    %4198 = vmatpush1.bf16.msra.mxu0 0
    %4199 = vmatprep.subr.bf16.mxu0 0
    %4200 = vmatpush1.bf16.msra.mxu0 0
    %4201 = vmatprep.subr.bf16.mxu0 0
    %4202 = vmatpush1.bf16.msra.mxu0 0
    %4203 = vmatprep.subr.bf16.mxu0 0
    %4204 = vmatpush1.bf16.msra.mxu0 0
    %4205 = vmatprep.subr.bf16.mxu0 0
    %4206 = vmatpush1.bf16.msra.mxu0 0
    %4207 = vmatprep.mubr.bf16.mxu0 0
    %4208 = vmatmul.mubr.bf16.gmra.mrb[0].mxu0 %v3613
    %v4209 = vpop.f32.mrb[0].mxu0
    %v4210 = vadd.f32 %v4167, %v4209
    %v4211 = vpop.f32.mrb[0].mxu0
    %v4212 = vadd.f32 %v4169, %v4211
    %v4213 = vpop.f32.mrb[0].mxu0
    %v4214 = vadd.f32 %v4171, %v4213
    %v4215 = vpop.f32.mrb[0].mxu0
    %v4216 = vadd.f32 %v4173, %v4215
    %4217 = vdwg.mxu0
    %4218 = vmatprep.subr.bf16.mxu0 0
    %4219 = vmatpush1.bf16.msra.mxu0 %v3990
    %4220 = vmatprep.subr.bf16.mxu0 0
    %4221 = vmatpush1.bf16.msra.mxu0 %v3993
    %4222 = vmatprep.subr.bf16.mxu0 0
    %4223 = vmatpush1.bf16.msra.mxu0 %v3996
    %4224 = vmatprep.subr.bf16.mxu0 0
    %4225 = vmatpush1.bf16.msra.mxu0 %v3999
    %4226 = vmatprep.subr.bf16.mxu0 0
    %4227 = vmatpush1.bf16.msra.mxu0 %v4002
    %4228 = vmatprep.subr.bf16.mxu0 0
    %4229 = vmatpush1.bf16.msra.mxu0 %v4005
    %4230 = vmatprep.subr.bf16.mxu0 0
    %4231 = vmatpush1.bf16.msra.mxu0 %v4008
    %4232 = vmatprep.subr.bf16.mxu0 0
    %4233 = vmatpush1.bf16.msra.mxu0 %v4011
    %4234 = vmatprep.subr.bf16.mxu0 0
    %4235 = vmatpush1.bf16.msra.mxu0 %v4014
    %4236 = vmatprep.subr.bf16.mxu0 0
    %4237 = vmatpush1.bf16.msra.mxu0 %v4017
    %4238 = vmatprep.subr.bf16.mxu0 0
    %4239 = vmatpush1.bf16.msra.mxu0 %v4020
    %4240 = vmatprep.subr.bf16.mxu0 0
    %4241 = vmatpush1.bf16.msra.mxu0 %v4023
    %4242 = vmatprep.subr.bf16.mxu0 0
    %4243 = vmatpush1.bf16.msra.mxu0 %v4026
    %4244 = vmatprep.subr.bf16.mxu0 0
    %4245 = vmatpush1.bf16.msra.mxu0 %v4029
    %4246 = vmatprep.subr.bf16.mxu0 0
    %4247 = vmatpush1.bf16.msra.mxu0 %v4032
    %4248 = vmatprep.subr.bf16.mxu0 0
    %4249 = vmatpush1.bf16.msra.mxu0 %v4035
    %4250 = vmatprep.mubr.bf16.mxu0 %v3612
    %4251 = vmatmul.mubr.bf16.gmra.mrb[0].mxu0 %v3611
    %v4252 = vpop.f32.mrb[0].mxu0
    %v4253 = vadd.f32 %v3744, %v4252
    %v4254 = vpop.f32.mrb[0].mxu0
    %v4255 = vpop.f32.mrb[0].mxu0
    %v4256 = vadd.f32 %v3744, %v4255
    %v4257 = vpop.f32.mrb[0].mxu0
    %4258 = vdwg.mxu0
    %4259 = vmatprep.subr.bf16.mxu0 0
    %4260 = vmatpush1.bf16.msra.mxu0 %v4038
    %4261 = vmatprep.subr.bf16.mxu0 0
    %4262 = vmatpush1.bf16.msra.mxu0 %v4041
    %4263 = vmatprep.subr.bf16.mxu0 0
    %4264 = vmatpush1.bf16.msra.mxu0 %v4044
    %4265 = vmatprep.subr.bf16.mxu0 0
    %4266 = vmatpush1.bf16.msra.mxu0 %v4047
    %4267 = vmatprep.subr.bf16.mxu0 0
    %4268 = vmatpush1.bf16.msra.mxu0 %v4050
    %4269 = vmatprep.subr.bf16.mxu0 0
    %4270 = vmatpush1.bf16.msra.mxu0 %v4053
    %4271 = vmatprep.subr.bf16.mxu0 0
    %4272 = vmatpush1.bf16.msra.mxu0 %v4056
    %4273 = vmatprep.subr.bf16.mxu0 0
    %4274 = vmatpush1.bf16.msra.mxu0 %v4059
    %4275 = vmatprep.subr.bf16.mxu0 0
    %4276 = vmatpush1.bf16.msra.mxu0 0
    %4277 = vmatprep.subr.bf16.mxu0 0
    %4278 = vmatpush1.bf16.msra.mxu0 0
    %4279 = vmatprep.subr.bf16.mxu0 0
    %4280 = vmatpush1.bf16.msra.mxu0 0
    %4281 = vmatprep.subr.bf16.mxu0 0
    %4282 = vmatpush1.bf16.msra.mxu0 0
    %4283 = vmatprep.subr.bf16.mxu0 0
    %4284 = vmatpush1.bf16.msra.mxu0 0
    %4285 = vmatprep.subr.bf16.mxu0 0
    %4286 = vmatpush1.bf16.msra.mxu0 0
    %4287 = vmatprep.subr.bf16.mxu0 0
    %4288 = vmatpush1.bf16.msra.mxu0 0
    %4289 = vmatprep.subr.bf16.mxu0 0
    %4290 = vmatpush1.bf16.msra.mxu0 0
    %4291 = vmatprep.mubr.bf16.mxu0 0
    %4292 = vmatmul.mubr.bf16.gmra.mrb[0].mxu0 %v3613
    %v4293 = vpop.f32.mrb[0].mxu0
    %v4294 = vadd.f32 %v4253, %v4293
    %v4295 = vpop.f32.mrb[0].mxu0
    %v4296 = vpop.f32.mrb[0].mxu0
    %v4297 = vadd.f32 %v4256, %v4296
    %v4298 = vpop.f32.mrb[0].mxu0
    %4299 = vdwg.mxu0
    %v4300 = vmax.f32 %v4210, 0.0
    %v4301 = vmax.f32 %v4212, 0.0
    %v4302 = vmax.f32 %v4294, 0.0
    %v4303 = vmax.f32 %v4214, 0.0
    %v4304 = vmax.f32 %v4216, 0.0
    %v4305 = vmax.f32 %v4297, 0.0
    %v4306 = vpack.c.bf16 %v4303, %v4300
    %v4307 = vpack.c.bf16 %v4304, %v4301
    %v4308 = vpack.c.bf16 %v4305, %v4302
    %v4312 = vunpack.c.l.b16 %v4306
    %v4313 = vunpack.c.l.b16 %v4307
    %v4314 = vunpack.c.l.b16 %v4308
    %v4315 = vunpack.c.h.b16 %v4306
    %v4316 = vunpack.c.h.b16 %v4307
    %v4317 = vunpack.c.h.b16 %v4308
    %v4318 = vpack.c.b16 %v4313, %v4312
    %v4319 = vpack.c.b16 %v4314, %v4314
    %v4320 = vpack.c.b16 %v4316, %v4315
    %v4321 = vpack.c.b16 %v4317, %v4317
    %4326 = vst [vmem:[%s19] sm:$0xff] %v4318
    %4327 = vst [vmem:[%s19 + $0x8] sm:$0xf] %v4319
    %4328 = vst [vmem:[%s19 + $0xc] sm:$0xff] %v4320
    %4329 = vst [vmem:[%s19 + $0x14] sm:$0xf] %v4321
    %v4330 = vld [vmem:[#allocation10] sm:$0xff]
    %v4331 = vld [vmem:[#allocation10 + $0x8] sm:$0xf]
    %v4332 = vld [vmem:[#allocation10 + $0xc] sm:$0xff]
    %v4333 = vld [vmem:[#allocation10 + $0x14] sm:$0xf]
    %v4334 = vld [vmem:[#allocation10 + $0x18] sm:$0xff]
    %v4335 = vld [vmem:[#allocation10 + $0x20] sm:$0xf]
    %v4336 = vld [vmem:[#allocation10 + $0x24] sm:$0xff]
    %v4337 = vld [vmem:[#allocation10 + $0x2c] sm:$0xf]
    %v4338 = vld [vmem:[#allocation10 + $0x30] sm:$0xff]
    %v4339 = vld [vmem:[#allocation10 + $0x38] sm:$0xf]
    %v4340 = vld [vmem:[#allocation10 + $0x3c] sm:$0xff]
    %v4341 = vld [vmem:[#allocation10 + $0x44] sm:$0xf]
    %v4342 = vld [vmem:[#allocation10 + $0x48] sm:$0xff]
    %v4343 = vld [vmem:[#allocation10 + $0x50] sm:$0xf]
    %v4344 = vld [vmem:[#allocation10 + $0x54] sm:$0xff]
    %v4345 = vld [vmem:[#allocation10 + $0x5c] sm:$0xf]
    %v4346 = vld [vmem:[#allocation10 + $0x60] sm:$0xff]
    %v4347 = vld [vmem:[#allocation10 + $0x68] sm:$0xf]
    %v4348 = vld [vmem:[#allocation10 + $0x6c] sm:$0xff]
    %v4349 = vld [vmem:[#allocation10 + $0x74] sm:$0xf]
    %v4350 = vld [vmem:[#allocation10 + $0x78] sm:$0xff]
    %v4351 = vld [vmem:[#allocation10 + $0x80] sm:$0xf]
    %v4352 = vld [vmem:[#allocation10 + $0x84] sm:$0xff]
    %v4353 = vld [vmem:[#allocation10 + $0x8c] sm:$0xf]
    %v4354 = vld [vmem:[#allocation10 + $0x90] sm:$0xff]
    %v4355 = vld [vmem:[#allocation10 + $0x98] sm:$0xf]
    %v4356 = vld [vmem:[#allocation10 + $0x9c] sm:$0xff]
    %v4357 = vld [vmem:[#allocation10 + $0xa4] sm:$0xf]
    %v4358 = vld [vmem:[#allocation10 + $0xa8] sm:$0xff]
    %v4359 = vld [vmem:[#allocation10 + $0xb0] sm:$0xf]
    %v4360 = vld [vmem:[#allocation10 + $0xb4] sm:$0xff]
    %v4361 = vld [vmem:[#allocation10 + $0xbc] sm:$0xf]
    %v4362 = vld [vmem:[#allocation10 + $0xc0] sm:$0xff]
    %v4363 = vld [vmem:[#allocation10 + $0xc8] sm:$0xf]
    %v4364 = vld [vmem:[#allocation10 + $0xcc] sm:$0xff]
    %v4365 = vld [vmem:[#allocation10 + $0xd4] sm:$0xf]
    %v4366 = vld [vmem:[#allocation10 + $0xd8] sm:$0xff]
    %v4367 = vld [vmem:[#allocation10 + $0xe0] sm:$0xf]
    %v4368 = vld [vmem:[#allocation10 + $0xe4] sm:$0xff]
    %v4369 = vld [vmem:[#allocation10 + $0xec] sm:$0xf]
    %v4370 = vld [vmem:[#allocation10 + $0xf0] sm:$0xff]
    %v4371 = vld [vmem:[#allocation10 + $0xf8] sm:$0xf]
    %v4372 = vld [vmem:[#allocation10 + $0xfc] sm:$0xff]
    %v4373 = vld [vmem:[#allocation10 + $0x104] sm:$0xf]
    %v4374 = vld [vmem:[#allocation10 + $0x108] sm:$0xff]
    %v4375 = vld [vmem:[#allocation10 + $0x110] sm:$0xf]
    %v4376 = vld [vmem:[#allocation10 + $0x114] sm:$0xff]
    %v4377 = vld [vmem:[#allocation10 + $0x11c] sm:$0xf]
    %v4378 = vld [vmem:[#allocation10 + $0x120] sm:$0xff]
    %v4379 = vld [vmem:[#allocation10 + $0x128] sm:$0xf]
    %v4380 = vld [vmem:[#allocation10 + $0x12c] sm:$0xff]
    %v4381 = vld [vmem:[#allocation10 + $0x134] sm:$0xf]
    %v4382 = vld [vmem:[#allocation10 + $0x138] sm:$0xff]
    %v4383 = vld [vmem:[#allocation10 + $0x140] sm:$0xf]
    %v4384 = vld [vmem:[#allocation10 + $0x144] sm:$0xff]
    %v4385 = vld [vmem:[#allocation10 + $0x14c] sm:$0xf]
    %v4386 = vld [vmem:[#allocation10 + $0x150] sm:$0xff]
    %v4387 = vld [vmem:[#allocation10 + $0x158] sm:$0xf]
    %v4388 = vld [vmem:[#allocation10 + $0x15c] sm:$0xff]
    %v4389 = vld [vmem:[#allocation10 + $0x164] sm:$0xf]
    %v4390 = vld [vmem:[#allocation10 + $0x168] sm:$0xff]
    %v4391 = vld [vmem:[#allocation10 + $0x170] sm:$0xf]
    %v4392 = vld [vmem:[#allocation10 + $0x174] sm:$0xff]
    %v4393 = vld [vmem:[#allocation10 + $0x17c] sm:$0xf]
    %v4394 = vld [vmem:[#allocation10 + $0x180] sm:$0xff]
    %v4395 = vld [vmem:[#allocation10 + $0x188] sm:$0xf]
    %v4396 = vld [vmem:[#allocation10 + $0x18c] sm:$0xff]
    %v4397 = vld [vmem:[#allocation10 + $0x194] sm:$0xf]
    %v4398 = vld [vmem:[#allocation10 + $0x198] sm:$0xff]
    %v4399 = vld [vmem:[#allocation10 + $0x1a0] sm:$0xf]
    %v4400 = vld [vmem:[#allocation10 + $0x1a4] sm:$0xff]
    %v4401 = vld [vmem:[#allocation10 + $0x1ac] sm:$0xf]
    %v4402 = vld [vmem:[#allocation10 + $0x1b0] sm:$0xff]
    %v4403 = vld [vmem:[#allocation10 + $0x1b8] sm:$0xf]
    %v4404 = vld [vmem:[#allocation10 + $0x1bc] sm:$0xff]
    %v4405 = vld [vmem:[#allocation10 + $0x1c4] sm:$0xf]
    %v4406 = vld [vmem:[#allocation10 + $0x1c8] sm:$0xff]
    %v4407 = vld [vmem:[#allocation10 + $0x1d0] sm:$0xf]
    %v4408 = vld [vmem:[#allocation10 + $0x1d4] sm:$0xff]
    %v4409 = vld [vmem:[#allocation10 + $0x1dc] sm:$0xf]
    %v4410 = vld [vmem:[#allocation10 + $0x1e0] sm:$0xff]
    %v4411 = vld [vmem:[#allocation10 + $0x1e8] sm:$0xf]
    %v4412 = vld [vmem:[#allocation10 + $0x1ec] sm:$0xff]
    %v4413 = vld [vmem:[#allocation10 + $0x1f4] sm:$0xf]
    %v4414 = vld [vmem:[#allocation10 + $0x1f8] sm:$0xff]
    %v4415 = vld [vmem:[#allocation10 + $0x200] sm:$0xf]
    %v4416 = vld [vmem:[#allocation10 + $0x204] sm:$0xff]
    %v4417 = vld [vmem:[#allocation10 + $0x20c] sm:$0xf]
    %v4418 = vld [vmem:[#allocation10 + $0x210] sm:$0xff]
    %v4419 = vld [vmem:[#allocation10 + $0x218] sm:$0xf]
    %v4420 = vld [vmem:[#allocation10 + $0x21c] sm:$0xff]
    %v4421 = vld [vmem:[#allocation10 + $0x224] sm:$0xf]
    %v4422 = vld [vmem:[#allocation10 + $0x228] sm:$0xff]
    %v4423 = vld [vmem:[#allocation10 + $0x230] sm:$0xf]
    %v4424 = vld [vmem:[#allocation10 + $0x234] sm:$0xff]
    %v4425 = vld [vmem:[#allocation10 + $0x23c] sm:$0xf]
    %v4426 = vld [vmem:[%s13] sm:$0x7]
    %v4428 = vlaneseq
    %v4429 = vshrl.u32 %v4428, 7
    %v4430 = vsub.s32 0, %v4429
    %v4431 = vrot.slane %v4426, %v4430
    %v4432 = vlaneseq
    %v4433 = vshrl.u32 %v4432, 7
    %v4434 = vsub.s32 1, %v4433
    %v4435 = vrot.slane %v4426, %v4434
    %v4436 = vlaneseq
    %v4437 = vshrl.u32 %v4436, 7
    %v4438 = vsub.s32 2, %v4437
    %v4439 = vrot.slane %v4426, %v4438
    %v4539 = vunpack.c.l.b16 %v4330
    %v4540 = vunpack.c.h.b16 %v4330
    %v4541 = vunpack.c.l.b16 %v4331
    %v4542 = vunpack.c.l.b16 %v4332
    %v4543 = vunpack.c.h.b16 %v4332
    %v4544 = vunpack.c.l.b16 %v4333
    %v4545 = vunpack.c.l.b16 %v4334
    %v4546 = vunpack.c.h.b16 %v4334
    %v4547 = vunpack.c.l.b16 %v4335
    %v4548 = vunpack.c.l.b16 %v4336
    %v4549 = vunpack.c.h.b16 %v4336
    %v4550 = vunpack.c.l.b16 %v4337
    %v4551 = vunpack.c.l.b16 %v4338
    %v4552 = vunpack.c.h.b16 %v4338
    %v4553 = vunpack.c.l.b16 %v4339
    %v4554 = vunpack.c.l.b16 %v4340
    %v4555 = vunpack.c.h.b16 %v4340
    %v4556 = vunpack.c.l.b16 %v4341
    %v4557 = vunpack.c.l.b16 %v4342
    %v4558 = vunpack.c.h.b16 %v4342
    %v4559 = vunpack.c.l.b16 %v4343
    %v4560 = vunpack.c.l.b16 %v4344
    %v4561 = vunpack.c.h.b16 %v4344
    %v4562 = vunpack.c.l.b16 %v4345
    %v4563 = vunpack.c.l.b16 %v4346
    %v4564 = vunpack.c.h.b16 %v4346
    %v4565 = vunpack.c.l.b16 %v4347
    %v4566 = vunpack.c.l.b16 %v4348
    %v4567 = vunpack.c.h.b16 %v4348
    %v4568 = vunpack.c.l.b16 %v4349
    %v4569 = vunpack.c.l.b16 %v4350
    %v4570 = vunpack.c.h.b16 %v4350
    %v4571 = vunpack.c.l.b16 %v4351
    %v4572 = vunpack.c.l.b16 %v4352
    %v4573 = vunpack.c.h.b16 %v4352
    %v4574 = vunpack.c.l.b16 %v4353
    %v4575 = vunpack.c.l.b16 %v4354
    %v4576 = vunpack.c.h.b16 %v4354
    %v4577 = vunpack.c.l.b16 %v4355
    %v4578 = vunpack.c.l.b16 %v4356
    %v4579 = vunpack.c.h.b16 %v4356
    %v4580 = vunpack.c.l.b16 %v4357
    %v4581 = vunpack.c.l.b16 %v4358
    %v4582 = vunpack.c.h.b16 %v4358
    %v4583 = vunpack.c.l.b16 %v4359
    %v4584 = vunpack.c.l.b16 %v4360
    %v4585 = vunpack.c.h.b16 %v4360
    %v4586 = vunpack.c.l.b16 %v4361
    %v4587 = vunpack.c.l.b16 %v4362
    %v4588 = vunpack.c.h.b16 %v4362
    %v4589 = vunpack.c.l.b16 %v4363
    %v4590 = vunpack.c.l.b16 %v4364
    %v4591 = vunpack.c.h.b16 %v4364
    %v4592 = vunpack.c.l.b16 %v4365
    %v4593 = vunpack.c.l.b16 %v4366
    %v4594 = vunpack.c.h.b16 %v4366
    %v4595 = vunpack.c.l.b16 %v4367
    %v4596 = vunpack.c.l.b16 %v4368
    %v4597 = vunpack.c.h.b16 %v4368
    %v4598 = vunpack.c.l.b16 %v4369
    %v4599 = vunpack.c.l.b16 %v4370
    %v4600 = vunpack.c.h.b16 %v4370
    %v4601 = vunpack.c.l.b16 %v4371
    %v4602 = vunpack.c.l.b16 %v4372
    %v4603 = vunpack.c.h.b16 %v4372
    %v4604 = vunpack.c.l.b16 %v4373
    %v4605 = vunpack.c.l.b16 %v4374
    %v4606 = vunpack.c.h.b16 %v4374
    %v4607 = vunpack.c.l.b16 %v4375
    %v4608 = vunpack.c.l.b16 %v4376
    %v4609 = vunpack.c.h.b16 %v4376
    %v4610 = vunpack.c.l.b16 %v4377
    %v4611 = vunpack.c.l.b16 %v4378
    %v4612 = vunpack.c.h.b16 %v4378
    %v4613 = vunpack.c.l.b16 %v4379
    %v4614 = vunpack.c.l.b16 %v4380
    %v4615 = vunpack.c.h.b16 %v4380
    %v4616 = vunpack.c.l.b16 %v4381
    %v4617 = vunpack.c.l.b16 %v4382
    %v4618 = vunpack.c.h.b16 %v4382
    %v4619 = vunpack.c.l.b16 %v4383
    %v4620 = vunpack.c.l.b16 %v4384
    %v4621 = vunpack.c.h.b16 %v4384
    %v4622 = vunpack.c.l.b16 %v4385
    %v4623 = vunpack.c.l.b16 %v4386
    %v4624 = vunpack.c.h.b16 %v4386
    %v4625 = vunpack.c.l.b16 %v4387
    %v4626 = vunpack.c.l.b16 %v4388
    %v4627 = vunpack.c.h.b16 %v4388
    %v4628 = vunpack.c.l.b16 %v4389
    %v4629 = vunpack.c.l.b16 %v4390
    %v4630 = vunpack.c.h.b16 %v4390
    %v4631 = vunpack.c.l.b16 %v4391
    %v4632 = vunpack.c.l.b16 %v4392
    %v4633 = vunpack.c.h.b16 %v4392
    %v4634 = vunpack.c.l.b16 %v4393
    %v4635 = vunpack.c.l.b16 %v4394
    %v4636 = vunpack.c.h.b16 %v4394
    %v4637 = vunpack.c.l.b16 %v4395
    %v4638 = vunpack.c.l.b16 %v4396
    %v4639 = vunpack.c.h.b16 %v4396
    %v4640 = vunpack.c.l.b16 %v4397
    %v4641 = vunpack.c.l.b16 %v4398
    %v4642 = vunpack.c.h.b16 %v4398
    %v4643 = vunpack.c.l.b16 %v4399
    %v4644 = vunpack.c.l.b16 %v4400
    %v4645 = vunpack.c.h.b16 %v4400
    %v4646 = vunpack.c.l.b16 %v4401
    %v4647 = vunpack.c.l.b16 %v4402
    %v4648 = vunpack.c.h.b16 %v4402
    %v4649 = vunpack.c.l.b16 %v4403
    %v4650 = vunpack.c.l.b16 %v4404
    %v4651 = vunpack.c.h.b16 %v4404
    %v4652 = vunpack.c.l.b16 %v4405
    %v4653 = vunpack.c.l.b16 %v4406
    %v4654 = vunpack.c.h.b16 %v4406
    %v4655 = vunpack.c.l.b16 %v4407
    %v4656 = vunpack.c.l.b16 %v4408
    %v4657 = vunpack.c.h.b16 %v4408
    %v4658 = vunpack.c.l.b16 %v4409
    %v4659 = vunpack.c.l.b16 %v4410
    %v4660 = vunpack.c.h.b16 %v4410
    %v4661 = vunpack.c.l.b16 %v4411
    %v4662 = vunpack.c.l.b16 %v4412
    %v4663 = vunpack.c.h.b16 %v4412
    %v4664 = vunpack.c.l.b16 %v4413
    %v4665 = vunpack.c.l.b16 %v4414
    %v4666 = vunpack.c.h.b16 %v4414
    %v4667 = vunpack.c.l.b16 %v4415
    %v4668 = vunpack.c.l.b16 %v4416
    %v4669 = vunpack.c.h.b16 %v4416
    %v4670 = vunpack.c.l.b16 %v4417
    %v4671 = vunpack.c.l.b16 %v4418
    %v4672 = vunpack.c.h.b16 %v4418
    %v4673 = vunpack.c.l.b16 %v4419
    %v4674 = vunpack.c.l.b16 %v4420
    %v4675 = vunpack.c.h.b16 %v4420
    %v4676 = vunpack.c.l.b16 %v4421
    %v4677 = vunpack.c.l.b16 %v4422
    %v4678 = vunpack.c.h.b16 %v4422
    %v4679 = vunpack.c.l.b16 %v4423
    %v4680 = vunpack.c.l.b16 %v4424
    %v4681 = vunpack.c.h.b16 %v4424
    %v4682 = vunpack.c.l.b16 %v4425
    %v4683 = vpack.c.b16 %v4542, %v4539
    %v4684 = vpack.c.b16 %v4543, %v4540
    %v4685 = vpack.c.b16 %v4544, %v4541
    %v4686 = vpack.c.b16 %v4548, %v4545
    %v4687 = vpack.c.b16 %v4549, %v4546
    %v4688 = vpack.c.b16 %v4550, %v4547
    %v4689 = vpack.c.b16 %v4554, %v4551
    %v4690 = vpack.c.b16 %v4555, %v4552
    %v4691 = vpack.c.b16 %v4556, %v4553
    %v4692 = vpack.c.b16 %v4560, %v4557
    %v4693 = vpack.c.b16 %v4561, %v4558
    %v4694 = vpack.c.b16 %v4562, %v4559
    %v4695 = vpack.c.b16 %v4566, %v4563
    %v4696 = vpack.c.b16 %v4567, %v4564
    %v4697 = vpack.c.b16 %v4568, %v4565
    %v4698 = vpack.c.b16 %v4572, %v4569
    %v4699 = vpack.c.b16 %v4573, %v4570
    %v4700 = vpack.c.b16 %v4574, %v4571
    %v4701 = vpack.c.b16 %v4578, %v4575
    %v4702 = vpack.c.b16 %v4579, %v4576
    %v4703 = vpack.c.b16 %v4580, %v4577
    %v4704 = vpack.c.b16 %v4584, %v4581
    %v4705 = vpack.c.b16 %v4585, %v4582
    %v4706 = vpack.c.b16 %v4586, %v4583
    %v4707 = vpack.c.b16 %v4590, %v4587
    %v4708 = vpack.c.b16 %v4591, %v4588
    %v4709 = vpack.c.b16 %v4592, %v4589
    %v4710 = vpack.c.b16 %v4596, %v4593
    %v4711 = vpack.c.b16 %v4597, %v4594
    %v4712 = vpack.c.b16 %v4598, %v4595
    %v4713 = vpack.c.b16 %v4602, %v4599
    %v4714 = vpack.c.b16 %v4603, %v4600
    %v4715 = vpack.c.b16 %v4604, %v4601
    %v4716 = vpack.c.b16 %v4608, %v4605
    %v4717 = vpack.c.b16 %v4609, %v4606
    %v4718 = vpack.c.b16 %v4610, %v4607
    %v4719 = vpack.c.b16 %v4614, %v4611
    %v4720 = vpack.c.b16 %v4615, %v4612
    %v4721 = vpack.c.b16 %v4616, %v4613
    %v4722 = vpack.c.b16 %v4620, %v4617
    %v4723 = vpack.c.b16 %v4621, %v4618
    %v4724 = vpack.c.b16 %v4622, %v4619
    %v4725 = vpack.c.b16 %v4626, %v4623
    %v4726 = vpack.c.b16 %v4627, %v4624
    %v4727 = vpack.c.b16 %v4628, %v4625
    %v4728 = vpack.c.b16 %v4632, %v4629
    %v4729 = vpack.c.b16 %v4633, %v4630
    %v4730 = vpack.c.b16 %v4634, %v4631
    %v4731 = vpack.c.b16 %v4638, %v4635
    %v4732 = vpack.c.b16 %v4639, %v4636
    %v4733 = vpack.c.b16 %v4640, %v4637
    %v4734 = vpack.c.b16 %v4644, %v4641
    %v4735 = vpack.c.b16 %v4645, %v4642
    %v4736 = vpack.c.b16 %v4646, %v4643
    %v4737 = vpack.c.b16 %v4650, %v4647
    %v4738 = vpack.c.b16 %v4651, %v4648
    %v4739 = vpack.c.b16 %v4652, %v4649
    %v4740 = vpack.c.b16 %v4656, %v4653
    %v4741 = vpack.c.b16 %v4657, %v4654
    %v4742 = vpack.c.b16 %v4658, %v4655
    %v4743 = vpack.c.b16 %v4662, %v4659
    %v4744 = vpack.c.b16 %v4663, %v4660
    %v4745 = vpack.c.b16 %v4664, %v4661
    %v4746 = vpack.c.b16 %v4668, %v4665
    %v4747 = vpack.c.b16 %v4669, %v4666
    %v4748 = vpack.c.b16 %v4670, %v4667
    %v4749 = vpack.c.b16 %v4674, %v4671
    %v4750 = vpack.c.b16 %v4675, %v4672
    %v4751 = vpack.c.b16 %v4676, %v4673
    %v4752 = vpack.c.b16 %v4680, %v4677
    %v4753 = vpack.c.b16 %v4681, %v4678
    %v4754 = vpack.c.b16 %v4682, %v4679
    %4827 = vmatprep.subr.bf16.mxu0 %v4684
    %4828 = vmatpush1.bf16.msra.mxu0 %v4683
    %4829 = vmatprep.subr.bf16.mxu0 %v4687
    %4830 = vmatpush1.bf16.msra.mxu0 %v4686
    %4831 = vmatprep.subr.bf16.mxu0 %v4690
    %4832 = vmatpush1.bf16.msra.mxu0 %v4689
    %4833 = vmatprep.subr.bf16.mxu0 %v4693
    %4834 = vmatpush1.bf16.msra.mxu0 %v4692
    %4835 = vmatprep.subr.bf16.mxu0 %v4696
    %4836 = vmatpush1.bf16.msra.mxu0 %v4695
    %4837 = vmatprep.subr.bf16.mxu0 %v4699
    %4838 = vmatpush1.bf16.msra.mxu0 %v4698
    %4839 = vmatprep.subr.bf16.mxu0 %v4702
    %4840 = vmatpush1.bf16.msra.mxu0 %v4701
    %4841 = vmatprep.subr.bf16.mxu0 %v4705
    %4842 = vmatpush1.bf16.msra.mxu0 %v4704
    %4843 = vmatprep.subr.bf16.mxu0 %v4708
    %4844 = vmatpush1.bf16.msra.mxu0 %v4707
    %4845 = vmatprep.subr.bf16.mxu0 %v4711
    %4846 = vmatpush1.bf16.msra.mxu0 %v4710
    %4847 = vmatprep.subr.bf16.mxu0 %v4714
    %4848 = vmatpush1.bf16.msra.mxu0 %v4713
    %4849 = vmatprep.subr.bf16.mxu0 %v4717
    %4850 = vmatpush1.bf16.msra.mxu0 %v4716
    %4851 = vmatprep.subr.bf16.mxu0 %v4720
    %4852 = vmatpush1.bf16.msra.mxu0 %v4719
    %4853 = vmatprep.subr.bf16.mxu0 %v4723
    %4854 = vmatpush1.bf16.msra.mxu0 %v4722
    %4855 = vmatprep.subr.bf16.mxu0 %v4726
    %4856 = vmatpush1.bf16.msra.mxu0 %v4725
    %4857 = vmatprep.subr.bf16.mxu0 %v4729
    %4858 = vmatpush1.bf16.msra.mxu0 %v4728
    %4859 = vmatprep.mubr.bf16.mxu0 %v4307
    %4860 = vmatmul.mubr.bf16.gmra.mrb[0].mxu0 %v4306
    %v4861 = vpop.f32.mrb[0].mxu0
    %v4862 = vadd.f32 %v4431, %v4861
    %v4863 = vpop.f32.mrb[0].mxu0
    %v4864 = vadd.f32 %v4435, %v4863
    %v4865 = vpop.f32.mrb[0].mxu0
    %v4866 = vadd.f32 %v4431, %v4865
    %v4867 = vpop.f32.mrb[0].mxu0
    %v4868 = vadd.f32 %v4435, %v4867
    %4869 = vdwg.mxu0
    %4870 = vmatprep.subr.bf16.mxu0 %v4732
    %4871 = vmatpush1.bf16.msra.mxu0 %v4731
    %4872 = vmatprep.subr.bf16.mxu0 %v4735
    %4873 = vmatpush1.bf16.msra.mxu0 %v4734
    %4874 = vmatprep.subr.bf16.mxu0 %v4738
    %4875 = vmatpush1.bf16.msra.mxu0 %v4737
    %4876 = vmatprep.subr.bf16.mxu0 %v4741
    %4877 = vmatpush1.bf16.msra.mxu0 %v4740
    %4878 = vmatprep.subr.bf16.mxu0 %v4744
    %4879 = vmatpush1.bf16.msra.mxu0 %v4743
    %4880 = vmatprep.subr.bf16.mxu0 %v4747
    %4881 = vmatpush1.bf16.msra.mxu0 %v4746
    %4882 = vmatprep.subr.bf16.mxu0 %v4750
    %4883 = vmatpush1.bf16.msra.mxu0 %v4749
    %4884 = vmatprep.subr.bf16.mxu0 %v4753
    %4885 = vmatpush1.bf16.msra.mxu0 %v4752
    %4886 = vmatprep.subr.bf16.mxu0 0
    %4887 = vmatpush1.bf16.msra.mxu0 0
    %4888 = vmatprep.subr.bf16.mxu0 0
    %4889 = vmatpush1.bf16.msra.mxu0 0
    %4890 = vmatprep.subr.bf16.mxu0 0
    %4891 = vmatpush1.bf16.msra.mxu0 0
    %4892 = vmatprep.subr.bf16.mxu0 0
    %4893 = vmatpush1.bf16.msra.mxu0 0
    %4894 = vmatprep.subr.bf16.mxu0 0
    %4895 = vmatpush1.bf16.msra.mxu0 0
    %4896 = vmatprep.subr.bf16.mxu0 0
    %4897 = vmatpush1.bf16.msra.mxu0 0
    %4898 = vmatprep.subr.bf16.mxu0 0
    %4899 = vmatpush1.bf16.msra.mxu0 0
    %4900 = vmatprep.subr.bf16.mxu0 0
    %4901 = vmatpush1.bf16.msra.mxu0 0
    %4902 = vmatprep.mubr.bf16.mxu0 0
    %4903 = vmatmul.mubr.bf16.gmra.mrb[0].mxu0 %v4308
    %v4904 = vpop.f32.mrb[0].mxu0
    %v4905 = vadd.f32 %v4862, %v4904
    %v4906 = vpop.f32.mrb[0].mxu0
    %v4907 = vadd.f32 %v4864, %v4906
    %v4908 = vpop.f32.mrb[0].mxu0
    %v4909 = vadd.f32 %v4866, %v4908
    %v4910 = vpop.f32.mrb[0].mxu0
    %v4911 = vadd.f32 %v4868, %v4910
    %4912 = vdwg.mxu0
    %4913 = vmatprep.subr.bf16.mxu0 0
    %4914 = vmatpush1.bf16.msra.mxu0 %v4685
    %4915 = vmatprep.subr.bf16.mxu0 0
    %4916 = vmatpush1.bf16.msra.mxu0 %v4688
    %4917 = vmatprep.subr.bf16.mxu0 0
    %4918 = vmatpush1.bf16.msra.mxu0 %v4691
    %4919 = vmatprep.subr.bf16.mxu0 0
    %4920 = vmatpush1.bf16.msra.mxu0 %v4694
    %4921 = vmatprep.subr.bf16.mxu0 0
    %4922 = vmatpush1.bf16.msra.mxu0 %v4697
    %4923 = vmatprep.subr.bf16.mxu0 0
    %4924 = vmatpush1.bf16.msra.mxu0 %v4700
    %4925 = vmatprep.subr.bf16.mxu0 0
    %4926 = vmatpush1.bf16.msra.mxu0 %v4703
    %4927 = vmatprep.subr.bf16.mxu0 0
    %4928 = vmatpush1.bf16.msra.mxu0 %v4706
    %4929 = vmatprep.subr.bf16.mxu0 0
    %4930 = vmatpush1.bf16.msra.mxu0 %v4709
    %4931 = vmatprep.subr.bf16.mxu0 0
    %4932 = vmatpush1.bf16.msra.mxu0 %v4712
    %4933 = vmatprep.subr.bf16.mxu0 0
    %4934 = vmatpush1.bf16.msra.mxu0 %v4715
    %4935 = vmatprep.subr.bf16.mxu0 0
    %4936 = vmatpush1.bf16.msra.mxu0 %v4718
    %4937 = vmatprep.subr.bf16.mxu0 0
    %4938 = vmatpush1.bf16.msra.mxu0 %v4721
    %4939 = vmatprep.subr.bf16.mxu0 0
    %4940 = vmatpush1.bf16.msra.mxu0 %v4724
    %4941 = vmatprep.subr.bf16.mxu0 0
    %4942 = vmatpush1.bf16.msra.mxu0 %v4727
    %4943 = vmatprep.subr.bf16.mxu0 0
    %4944 = vmatpush1.bf16.msra.mxu0 %v4730
    %4945 = vmatprep.mubr.bf16.mxu0 %v4307
    %4946 = vmatmul.mubr.bf16.gmra.mrb[0].mxu0 %v4306
    %v4947 = vpop.f32.mrb[0].mxu0
    %v4948 = vadd.f32 %v4439, %v4947
    %v4949 = vpop.f32.mrb[0].mxu0
    %v4950 = vpop.f32.mrb[0].mxu0
    %v4951 = vadd.f32 %v4439, %v4950
    %v4952 = vpop.f32.mrb[0].mxu0
    %4953 = vdwg.mxu0
    %4954 = vmatprep.subr.bf16.mxu0 0
    %4955 = vmatpush1.bf16.msra.mxu0 %v4733
    %4956 = vmatprep.subr.bf16.mxu0 0
    %4957 = vmatpush1.bf16.msra.mxu0 %v4736
    %4958 = vmatprep.subr.bf16.mxu0 0
    %4959 = vmatpush1.bf16.msra.mxu0 %v4739
    %4960 = vmatprep.subr.bf16.mxu0 0
    %4961 = vmatpush1.bf16.msra.mxu0 %v4742
    %4962 = vmatprep.subr.bf16.mxu0 0
    %4963 = vmatpush1.bf16.msra.mxu0 %v4745
    %4964 = vmatprep.subr.bf16.mxu0 0
    %4965 = vmatpush1.bf16.msra.mxu0 %v4748
    %4966 = vmatprep.subr.bf16.mxu0 0
    %4967 = vmatpush1.bf16.msra.mxu0 %v4751
    %4968 = vmatprep.subr.bf16.mxu0 0
    %4969 = vmatpush1.bf16.msra.mxu0 %v4754
    %4970 = vmatprep.subr.bf16.mxu0 0
    %4971 = vmatpush1.bf16.msra.mxu0 0
    %4972 = vmatprep.subr.bf16.mxu0 0
    %4973 = vmatpush1.bf16.msra.mxu0 0
    %4974 = vmatprep.subr.bf16.mxu0 0
    %4975 = vmatpush1.bf16.msra.mxu0 0
    %4976 = vmatprep.subr.bf16.mxu0 0
    %4977 = vmatpush1.bf16.msra.mxu0 0
    %4978 = vmatprep.subr.bf16.mxu0 0
    %4979 = vmatpush1.bf16.msra.mxu0 0
    %4980 = vmatprep.subr.bf16.mxu0 0
    %4981 = vmatpush1.bf16.msra.mxu0 0
    %4982 = vmatprep.subr.bf16.mxu0 0
    %4983 = vmatpush1.bf16.msra.mxu0 0
    %4984 = vmatprep.subr.bf16.mxu0 0
    %4985 = vmatpush1.bf16.msra.mxu0 0
    %4986 = vmatprep.mubr.bf16.mxu0 0
    %4987 = vmatmul.mubr.bf16.gmra.mrb[0].mxu0 %v4308
    %v4988 = vpop.f32.mrb[0].mxu0
    %v4989 = vadd.f32 %v4948, %v4988
    %v4990 = vpop.f32.mrb[0].mxu0
    %v4991 = vpop.f32.mrb[0].mxu0
    %v4992 = vadd.f32 %v4951, %v4991
    %v4993 = vpop.f32.mrb[0].mxu0
    %4994 = vdwg.mxu0
    %v4995 = vmax.f32 %v4905, 0.0
    %v4996 = vmax.f32 %v4907, 0.0
    %v4997 = vmax.f32 %v4989, 0.0
    %v4998 = vmax.f32 %v4909, 0.0
    %v4999 = vmax.f32 %v4911, 0.0
    %v5000 = vmax.f32 %v4992, 0.0
    %v5001 = vpack.c.bf16 %v4998, %v4995
    %v5002 = vpack.c.bf16 %v4999, %v4996
    %v5003 = vpack.c.bf16 %v5000, %v4997
    %v5007 = vunpack.c.l.b16 %v5001
    %v5008 = vunpack.c.l.b16 %v5002
    %v5009 = vunpack.c.l.b16 %v5003
    %v5010 = vunpack.c.h.b16 %v5001
    %v5011 = vunpack.c.h.b16 %v5002
    %v5012 = vunpack.c.h.b16 %v5003
    %v5013 = vpack.c.b16 %v5008, %v5007
    %v5014 = vpack.c.b16 %v5009, %v5009
    %v5015 = vpack.c.b16 %v5011, %v5010
    %v5016 = vpack.c.b16 %v5012, %v5012
    %5021 = vst [vmem:[%s20] sm:$0xff] %v5013
    %5022 = vst [vmem:[%s20 + $0x8] sm:$0xf] %v5014
    %5023 = vst [vmem:[%s20 + $0xc] sm:$0xff] %v5015
    %5024 = vst [vmem:[%s20 + $0x14] sm:$0xf] %v5016
    %v5025 = vld [vmem:[%s7] sm:$0xf]
    %v5026 = vld [vmem:[%s7 + $0x4] sm:$0xf]
    %v5027 = vld [vmem:[%s7 + $0x8] sm:$0xf]
    %v5028 = vld [vmem:[%s7 + $0xc] sm:$0xf]
    %v5029 = vld [vmem:[%s7 + $0x10] sm:$0xf]
    %v5030 = vld [vmem:[%s7 + $0x14] sm:$0xf]
    %v5031 = vld [vmem:[%s7 + $0x18] sm:$0xf]
    %v5032 = vld [vmem:[%s7 + $0x1c] sm:$0xf]
    %v5033 = vld [vmem:[%s7 + $0x20] sm:$0xf]
    %v5034 = vld [vmem:[%s7 + $0x24] sm:$0xf]
    %v5035 = vld [vmem:[%s7 + $0x28] sm:$0xf]
    %v5036 = vld [vmem:[%s7 + $0x2c] sm:$0xf]
    %v5037 = vld [vmem:[%s7 + $0x30] sm:$0xf]
    %v5038 = vld [vmem:[%s7 + $0x34] sm:$0xf]
    %v5039 = vld [vmem:[%s7 + $0x38] sm:$0xf]
    %v5040 = vld [vmem:[%s7 + $0x3c] sm:$0xf]
    %v5041 = vld [vmem:[%s7 + $0x40] sm:$0xf]
    %v5042 = vld [vmem:[%s7 + $0x44] sm:$0xf]
    %v5043 = vld [vmem:[%s7 + $0x48] sm:$0xf]
    %v5044 = vld [vmem:[%s7 + $0x4c] sm:$0xf]
    %v5045 = vld [vmem:[%s7 + $0x50] sm:$0xf]
    %v5046 = vld [vmem:[%s7 + $0x54] sm:$0xf]
    %v5047 = vld [vmem:[%s7 + $0x58] sm:$0xf]
    %v5048 = vld [vmem:[%s7 + $0x5c] sm:$0xf]
    %v5049 = vld [vmem:[%s7 + $0x60] sm:$0xf]
    %v5050 = vld [vmem:[%s7 + $0x64] sm:$0xf]
    %v5051 = vld [vmem:[%s7 + $0x68] sm:$0xf]
    %v5052 = vld [vmem:[%s7 + $0x6c] sm:$0xf]
    %v5053 = vld [vmem:[%s7 + $0x70] sm:$0xf]
    %v5054 = vld [vmem:[%s7 + $0x74] sm:$0xf]
    %v5055 = vld [vmem:[%s7 + $0x78] sm:$0xf]
    %v5056 = vld [vmem:[%s7 + $0x7c] sm:$0xf]
    %v5057 = vld [vmem:[%s7 + $0x80] sm:$0xf]
    %v5058 = vld [vmem:[%s7 + $0x84] sm:$0xf]
    %v5059 = vld [vmem:[%s7 + $0x88] sm:$0xf]
    %v5060 = vld [vmem:[%s7 + $0x8c] sm:$0xf]
    %v5061 = vld [vmem:[%s7 + $0x90] sm:$0xf]
    %v5062 = vld [vmem:[%s7 + $0x94] sm:$0xf]
    %v5063 = vld [vmem:[%s7 + $0x98] sm:$0xf]
    %v5064 = vld [vmem:[%s7 + $0x9c] sm:$0xf]
    %v5065 = vld [vmem:[%s7 + $0xa0] sm:$0xf]
    %v5066 = vld [vmem:[%s7 + $0xa4] sm:$0xf]
    %v5067 = vld [vmem:[%s7 + $0xa8] sm:$0xf]
    %v5068 = vld [vmem:[%s7 + $0xac] sm:$0xf]
    %v5069 = vld [vmem:[%s7 + $0xb0] sm:$0xf]
    %v5070 = vld [vmem:[%s7 + $0xb4] sm:$0xf]
    %v5071 = vld [vmem:[%s7 + $0xb8] sm:$0xf]
    %v5072 = vld [vmem:[%s7 + $0xbc] sm:$0xf]
    %v5073 = vld [vmem:[%s14] sm:$0x1]
    %v5075 = vlaneseq
    %v5076 = vshrl.u32 %v5075, 7
    %v5077 = vsub.s32 0, %v5076
    %v5078 = vrot.slane %v5073, %v5077
    %v5128 = vunpack.c.l.b16 %v5025
    %v5129 = vunpack.c.l.b16 %v5026
    %v5130 = vunpack.c.l.b16 %v5027
    %v5131 = vunpack.c.l.b16 %v5028
    %v5132 = vunpack.c.l.b16 %v5029
    %v5133 = vunpack.c.l.b16 %v5030
    %v5134 = vunpack.c.l.b16 %v5031
    %v5135 = vunpack.c.l.b16 %v5032
    %v5136 = vunpack.c.l.b16 %v5033
    %v5137 = vunpack.c.l.b16 %v5034
    %v5138 = vunpack.c.l.b16 %v5035
    %v5139 = vunpack.c.l.b16 %v5036
    %v5140 = vunpack.c.l.b16 %v5037
    %v5141 = vunpack.c.l.b16 %v5038
    %v5142 = vunpack.c.l.b16 %v5039
    %v5143 = vunpack.c.l.b16 %v5040
    %v5144 = vunpack.c.l.b16 %v5041
    %v5145 = vunpack.c.l.b16 %v5042
    %v5146 = vunpack.c.l.b16 %v5043
    %v5147 = vunpack.c.l.b16 %v5044
    %v5148 = vunpack.c.l.b16 %v5045
    %v5149 = vunpack.c.l.b16 %v5046
    %v5150 = vunpack.c.l.b16 %v5047
    %v5151 = vunpack.c.l.b16 %v5048
    %v5152 = vunpack.c.l.b16 %v5049
    %v5153 = vunpack.c.l.b16 %v5050
    %v5154 = vunpack.c.l.b16 %v5051
    %v5155 = vunpack.c.l.b16 %v5052
    %v5156 = vunpack.c.l.b16 %v5053
    %v5157 = vunpack.c.l.b16 %v5054
    %v5158 = vunpack.c.l.b16 %v5055
    %v5159 = vunpack.c.l.b16 %v5056
    %v5160 = vunpack.c.l.b16 %v5057
    %v5161 = vunpack.c.l.b16 %v5058
    %v5162 = vunpack.c.l.b16 %v5059
    %v5163 = vunpack.c.l.b16 %v5060
    %v5164 = vunpack.c.l.b16 %v5061
    %v5165 = vunpack.c.l.b16 %v5062
    %v5166 = vunpack.c.l.b16 %v5063
    %v5167 = vunpack.c.l.b16 %v5064
    %v5168 = vunpack.c.l.b16 %v5065
    %v5169 = vunpack.c.l.b16 %v5066
    %v5170 = vunpack.c.l.b16 %v5067
    %v5171 = vunpack.c.l.b16 %v5068
    %v5172 = vunpack.c.l.b16 %v5069
    %v5173 = vunpack.c.l.b16 %v5070
    %v5174 = vunpack.c.l.b16 %v5071
    %v5175 = vunpack.c.l.b16 %v5072
    %v5176 = vpack.c.b16 %v5129, %v5128
    %v5177 = vpack.c.b16 %v5131, %v5130
    %v5178 = vpack.c.b16 %v5133, %v5132
    %v5179 = vpack.c.b16 %v5135, %v5134
    %v5180 = vpack.c.b16 %v5137, %v5136
    %v5181 = vpack.c.b16 %v5139, %v5138
    %v5182 = vpack.c.b16 %v5141, %v5140
    %v5183 = vpack.c.b16 %v5143, %v5142
    %v5184 = vpack.c.b16 %v5145, %v5144
    %v5185 = vpack.c.b16 %v5147, %v5146
    %v5186 = vpack.c.b16 %v5149, %v5148
    %v5187 = vpack.c.b16 %v5151, %v5150
    %v5188 = vpack.c.b16 %v5153, %v5152
    %v5189 = vpack.c.b16 %v5155, %v5154
    %v5190 = vpack.c.b16 %v5157, %v5156
    %v5191 = vpack.c.b16 %v5159, %v5158
    %v5192 = vpack.c.b16 %v5161, %v5160
    %v5193 = vpack.c.b16 %v5163, %v5162
    %v5194 = vpack.c.b16 %v5165, %v5164
    %v5195 = vpack.c.b16 %v5167, %v5166
    %v5196 = vpack.c.b16 %v5169, %v5168
    %v5197 = vpack.c.b16 %v5171, %v5170
    %v5198 = vpack.c.b16 %v5173, %v5172
    %v5199 = vpack.c.b16 %v5175, %v5174
    %5224 = vmatprep.subr.bf16.mxu0 0
    %5225 = vmatpush1.bf16.msra.mxu0 %v5176
    %5226 = vmatprep.subr.bf16.mxu0 0
    %5227 = vmatpush1.bf16.msra.mxu0 %v5177
    %5228 = vmatprep.subr.bf16.mxu0 0
    %5229 = vmatpush1.bf16.msra.mxu0 %v5178
    %5230 = vmatprep.subr.bf16.mxu0 0
    %5231 = vmatpush1.bf16.msra.mxu0 %v5179
    %5232 = vmatprep.subr.bf16.mxu0 0
    %5233 = vmatpush1.bf16.msra.mxu0 %v5180
    %5234 = vmatprep.subr.bf16.mxu0 0
    %5235 = vmatpush1.bf16.msra.mxu0 %v5181
    %5236 = vmatprep.subr.bf16.mxu0 0
    %5237 = vmatpush1.bf16.msra.mxu0 %v5182
    %5238 = vmatprep.subr.bf16.mxu0 0
    %5239 = vmatpush1.bf16.msra.mxu0 %v5183
    %5240 = vmatprep.subr.bf16.mxu0 0
    %5241 = vmatpush1.bf16.msra.mxu0 %v5184
    %5242 = vmatprep.subr.bf16.mxu0 0
    %5243 = vmatpush1.bf16.msra.mxu0 %v5185
    %5244 = vmatprep.subr.bf16.mxu0 0
    %5245 = vmatpush1.bf16.msra.mxu0 %v5186
    %5246 = vmatprep.subr.bf16.mxu0 0
    %5247 = vmatpush1.bf16.msra.mxu0 %v5187
    %5248 = vmatprep.subr.bf16.mxu0 0
    %5249 = vmatpush1.bf16.msra.mxu0 %v5188
    %5250 = vmatprep.subr.bf16.mxu0 0
    %5251 = vmatpush1.bf16.msra.mxu0 %v5189
    %5252 = vmatprep.subr.bf16.mxu0 0
    %5253 = vmatpush1.bf16.msra.mxu0 %v5190
    %5254 = vmatprep.subr.bf16.mxu0 0
    %5255 = vmatpush1.bf16.msra.mxu0 %v5191
    %5256 = vmatprep.mubr.bf16.mxu0 %v5002
    %5257 = vmatmul.mubr.bf16.gmra.mrb[0].mxu0 %v5001
    %v5258 = vpop.f32.mrb[0].mxu0
    %v5259 = vadd.f32 %v5078, %v5258
    %v5260 = vpop.f32.mrb[0].mxu0
    %v5261 = vpop.f32.mrb[0].mxu0
    %v5262 = vadd.f32 %v5078, %v5261
    %v5263 = vpop.f32.mrb[0].mxu0
    %5264 = vdwg.mxu0
    %5265 = vmatprep.subr.bf16.mxu0 0
    %5266 = vmatpush1.bf16.msra.mxu0 %v5192
    %5267 = vmatprep.subr.bf16.mxu0 0
    %5268 = vmatpush1.bf16.msra.mxu0 %v5193
    %5269 = vmatprep.subr.bf16.mxu0 0
    %5270 = vmatpush1.bf16.msra.mxu0 %v5194
    %5271 = vmatprep.subr.bf16.mxu0 0
    %5272 = vmatpush1.bf16.msra.mxu0 %v5195
    %5273 = vmatprep.subr.bf16.mxu0 0
    %5274 = vmatpush1.bf16.msra.mxu0 %v5196
    %5275 = vmatprep.subr.bf16.mxu0 0
    %5276 = vmatpush1.bf16.msra.mxu0 %v5197
    %5277 = vmatprep.subr.bf16.mxu0 0
    %5278 = vmatpush1.bf16.msra.mxu0 %v5198
    %5279 = vmatprep.subr.bf16.mxu0 0
    %5280 = vmatpush1.bf16.msra.mxu0 %v5199
    %5281 = vmatprep.subr.bf16.mxu0 0
    %5282 = vmatpush1.bf16.msra.mxu0 0
    %5283 = vmatprep.subr.bf16.mxu0 0
    %5284 = vmatpush1.bf16.msra.mxu0 0
    %5285 = vmatprep.subr.bf16.mxu0 0
    %5286 = vmatpush1.bf16.msra.mxu0 0
    %5287 = vmatprep.subr.bf16.mxu0 0
    %5288 = vmatpush1.bf16.msra.mxu0 0
    %5289 = vmatprep.subr.bf16.mxu0 0
    %5290 = vmatpush1.bf16.msra.mxu0 0
    %5291 = vmatprep.subr.bf16.mxu0 0
    %5292 = vmatpush1.bf16.msra.mxu0 0
    %5293 = vmatprep.subr.bf16.mxu0 0
    %5294 = vmatpush1.bf16.msra.mxu0 0
    %5295 = vmatprep.subr.bf16.mxu0 0
    %5296 = vmatpush1.bf16.msra.mxu0 0
    %5297 = vmatprep.mubr.bf16.mxu0 0
    %5298 = vmatmul.mubr.bf16.gmra.mrb[0].mxu0 %v5003
    %v5299 = vpop.f32.mrb[0].mxu0
    %v5300 = vadd.f32 %v5259, %v5299
    %v5301 = vpop.f32.mrb[0].mxu0
    %v5302 = vpop.f32.mrb[0].mxu0
    %v5303 = vadd.f32 %v5262, %v5302
    %v5304 = vpop.f32.mrb[0].mxu0
    %5305 = vdwg.mxu0
    %v5306 = vlaneseq
    %v5307 = vand.u32 %v5306, 127
    %vm5308 = vcmp.lt.s32.totalorder %v5307, 10
    %v5309 = vsel %vm5308, %v5300, -1e+30
    %v5310 = vsel %vm5308, %v5303, -1e+30
    %5311 = vmax.xlane.f32.xlu0 %v5309
    %v5312 = vpop.xlane.xlu0 %5311
    %5313 = vmax.xlane.f32.xlu0 %v5310
    %v5314 = vpop.xlane.xlu0 %5313
    %v5315 = vsub.f32 %v5309, %v5312
    %v5316 = vsub.f32 %v5310, %v5314
    %v5317 = vmul.f32 %v5315, 1.442695
    %v5318 = vpow.pop %v5317
    %v5319 = vmul.f32 %v5316, 1.442695
    %v5320 = vpow.pop %v5319
    %5321 = vadd.xlane.f32.xlu0 %v5318
    %v5322 = vpop.xlane.xlu0 %5321
    %5323 = vadd.xlane.f32.xlu0 %v5320
    %v5324 = vpop.xlane.xlu0 %5323
    %v5325 = vrcp.pop %v5322
    %v5326 = vmul.f32 %v5318, %v5325
    %v5327 = vrcp.pop %v5324
    %v5328 = vmul.f32 %v5320, %v5327
    %5329 = vst [vmem:[%s21] sm:$0xff] %v5326
    %5330 = vst [vmem:[%s21 + $0x8] sm:$0xff] %v5328
    // Predicated region
    $region86: #{deep_mlp_forward.1} parent=1 // pred_check
      _
    $region87: #{deep_mlp_forward.1} parent=1 // pred_check_branch
      %5332 = sbr.rel (0) target = $region89
    $region88: #{deep_mlp_forward.1} parent=1 // pred_region
      _
    $region89: #{deep_mlp_forward.1} parent=1 // pred_fallthru
      _
    // Predicated region
    $region90: #{deep_mlp_forward.1} parent=1 // pred_check
      _
    $region91: #{deep_mlp_forward.1} parent=1 // pred_check_branch
      %5334 = sbr.rel (0) target = $region93
    $region92: #{deep_mlp_forward.1} parent=1 // pred_region
      _
    $region93: #{deep_mlp_forward.1} parent=1 // pred_fallthru
      _
    // Predicated region
    $region94: #{deep_mlp_forward.1} parent=1 // pred_check
      _
    $region95: #{deep_mlp_forward.1} parent=1 // pred_check_branch
      %5336 = sbr.rel (0) target = $region97
    $region96: #{deep_mlp_forward.1} parent=1 // pred_region
      _
    $region97: #{deep_mlp_forward.1} parent=1 // pred_fallthru
      _
    // Predicated region
    $region98: #{deep_mlp_forward.1} parent=1 // pred_check
      _
    $region99: #{deep_mlp_forward.1} parent=1 // pred_check_branch
      %5338 = sbr.rel (0) target = $region101
    $region100: #{deep_mlp_forward.1} parent=1 // pred_region
      _
    $region101: #{deep_mlp_forward.1} parent=1 // pred_fallthru
      _
    // Predicated region
    $region102: #{deep_mlp_forward.1} parent=1 // pred_check
      _
    $region103: #{deep_mlp_forward.1} parent=1 // pred_check_branch
      %5340 = sbr.rel (0) target = $region105
    $region104: #{deep_mlp_forward.1} parent=1 // pred_region
      _
    $region105: #{deep_mlp_forward.1} parent=1 // pred_fallthru
      _
    // Predicated region
    $region106: #{deep_mlp_forward.1} parent=1 // pred_check
      _
    $region107: #{deep_mlp_forward.1} parent=1 // pred_check_branch
      %5342 = sbr.rel (0) target = $region109
    $region108: #{deep_mlp_forward.1} parent=1 // pred_region
      _
    $region109: #{deep_mlp_forward.1} parent=1 // pred_fallthru
      _
    // Predicated region
    $region110: #{deep_mlp_forward.1} parent=1 // pred_check
      _
    $region111: #{deep_mlp_forward.1} parent=1 // pred_check_branch
      %5344 = sbr.rel (0) target = $region113
    $region112: #{deep_mlp_forward.1} parent=1 // pred_region
      _
    $region113: #{deep_mlp_forward.1} parent=1 // pred_fallthru
      _
    // Predicated region
    $region114: #{deep_mlp_forward.1} parent=1 // pred_check
      _
    $region115: #{deep_mlp_forward.1} parent=1 // pred_check_branch
      %5346 = sbr.rel (0) target = $region117
    $region116: #{deep_mlp_forward.1} parent=1 // pred_region
      _
    $region117: #{deep_mlp_forward.1} parent=1 // pred_fallthru
      _
    // Predicated region
    $region118: #{deep_mlp_forward.1} parent=1 // pred_check
      _
    $region119: #{deep_mlp_forward.1} parent=1 // pred_check_branch
      %5348 = sbr.rel (0) target = $region121
    $region120: #{deep_mlp_forward.1} parent=1 // pred_region
      _
    $region121: #{deep_mlp_forward.1} parent=1 // pred_fallthru
      _
    // Predicated region
    $region122: #{deep_mlp_forward.1} parent=1 // pred_check
      _
    $region123: #{deep_mlp_forward.1} parent=1 // pred_check_branch
      %5350 = sbr.rel (0) target = $region125
    $region124: #{deep_mlp_forward.1} parent=1 // pred_region
      _
    $region125: #{deep_mlp_forward.1} parent=1 // pred_fallthru
      _
    // Predicated region
    $region126: #{deep_mlp_forward.1} parent=1 // pred_check
      _
    $region127: #{deep_mlp_forward.1} parent=1 // pred_check_branch
      %5352 = sbr.rel (0) target = $region129
    $region128: #{deep_mlp_forward.1} parent=1 // pred_region
      _
    $region129: #{deep_mlp_forward.1} parent=1 // pred_fallthru
      _
    // Predicated region
    $region130: #{deep_mlp_forward.1} parent=1 // pred_check
      _
    $region131: #{deep_mlp_forward.1} parent=1 // pred_check_branch
      %5354 = sbr.rel (0) target = $region133
    $region132: #{deep_mlp_forward.1} parent=1 // pred_region
      _
    $region133: #{deep_mlp_forward.1} parent=1 // pred_fallthru
      _
    // Predicated region
    $region134: #{deep_mlp_forward.1} parent=1 // pred_check
      _
    $region135: #{deep_mlp_forward.1} parent=1 // pred_check_branch
      %5356 = sbr.rel (0) target = $region137
    $region136: #{deep_mlp_forward.1} parent=1 // pred_region
      _
    $region137: #{deep_mlp_forward.1} parent=1 // pred_fallthru
      _
    // Predicated region
    $region138: #{deep_mlp_forward.1} parent=1 // pred_check
      _
    $region139: #{deep_mlp_forward.1} parent=1 // pred_check_branch
      %5358 = sbr.rel (0) target = $region141
    $region140: #{deep_mlp_forward.1} parent=1 // pred_region
      _
    $region141: #{deep_mlp_forward.1} parent=1 // pred_fallthru
      _
    %5359 = vsyncpa [#allocation3], 1
    %5360 = vsyncpa [#allocation5], 1
    %5361 = vsyncpa [#allocation8], 1
    %5362 = vsyncpa [#allocation11], 1

</llo_original>
